<compile_context>
chip_gen: v6e
topology: v6e:2x2x1
jax: 0.10.0
libtpu: 0.0.40
codegen_flags: <defaults>
</compile_context>

<pallas_src>
import functools

import jax
import jax.numpy as jnp
from jax.experimental import pallas as pl
from jax.experimental.pallas import tpu as pltpu

EPS = 1e-5


# ------------------------------- helpers ----------------------------------- #

def _round_up(x, m):
    return (x + m - 1) // m * m


def _round_up_ch(c):
    # Lane / contraction dims padded to 128; channels already >=256 are padded
    # to a multiple of 256 (fills the 2x256x256 MXU on v6e/v7x; extra zero
    # columns are harmless on v5e).
    return _round_up(c, 256) if c >= 256 else _round_up(c, 128)


@functools.lru_cache(maxsize=None)
def _vmem_capacity_bytes():
    try:
        cap = int(getattr(pltpu.get_tpu_info(), "vmem_capacity_bytes",
                          64 * 1024 * 1024))
        return cap if cap > 0 else 64 * 1024 * 1024
    except Exception:
        return 64 * 1024 * 1024          # conservative (v7x-sized) fallback


def _vmem_limit():
    # Explicit scoped-VMEM limit: above the 16/32 MiB defaults, below physical.
    return (3 * _vmem_capacity_bytes()) // 4


def _tm_cap():
    # Bigger M tiles on v5e/v6e (128 MiB VMEM) amortize per-grid-step overhead
    # and weight re-fetch; keep 512 on v7x (64 MiB VMEM).
    return 1024 if _vmem_capacity_bytes() > (64 * 1024 * 1024) else 512


def _choose_tm(M, cap):
    # Prefer a tile that exactly divides M (no padding copy, no masked stores);
    # otherwise fall back to `cap` with a partial last grid block.
    if M <= cap:
        return M
    for t in range(cap, 15, -16):            # multiples of 16 (bf16 sublane packing)
        if M % t == 0:
            return t
    return cap


def _choose_tn(C):
    return 256 if C % 256 == 0 else 128


def _choose_row_tile(Ho, Wo, max_rows=256):
    # Largest row tile TR dividing Ho with a sublane-aligned (TR*Wo % 8 == 0)
    # flattened block of at most `max_rows` rows; fall back to the whole image.
    cands = [t for t in range(1, Ho + 1)
             if Ho % t == 0 and t * Wo <= max_rows and (t * Wo) % 8 == 0]
    return max(cands) if cands else Ho


def _bn_fold(bn_params):
    gamma, beta, mean, var = bn_params
    scale = gamma / jnp.sqrt(var + EPS)
    bias = beta - mean * scale
    return scale, bias


def _pad2(w, K_p, C_p):
    K, C = w.shape
    return jnp.pad(w, ((0, K_p - K), (0, C_p - C)))


# ----------------------------- Pallas kernels ------------------------------ #

def _matmul_bias_relu_kernel(x_ref, w_ref, b_ref, o_ref):
    # y = relu(x @ w + b)      (BN scale already folded into w)
    y = jnp.dot(x_ref[...], w_ref[...], preferred_element_type=jnp.float32)
    o_ref[...] = jnp.maximum(y + b_ref[...], 0.0).astype(o_ref.dtype)


def _conv3x3_bias_relu_kernel(x_ref, w_ref, b_ref, o_ref, acc_ref, *,
                              stride, tr, wo, n_row_blocks):
    # 3x3 conv (padding=1, given stride) on a row block of `tr` output rows:
    # 9 accumulated matmuls into a VMEM scratch accumulator.  The whole
    # phase-split padded image is resident in VMEM (its index_map ignores the
    # row-block axis), so only dynamic in-VMEM slicing happens per step.
    s = stride
    cin = x_ref.shape[-1]
    rows = tr * wo
    row0 = 0 if n_row_blocks == 1 else pl.program_id(1) * tr

    # Group the 9 taps by (phase, W-offset): the expensive sublane-offset W
    # slice is done once per group and reused across the kh taps, which only
    # slice the cheap H axis of the already-loaded value.
    groups = {}
    for kh in range(3):
        for kw in range(3):
            p = (kh % s) * s + (kw % s)
            rh, cw = kh // s, kw // s
            groups.setdefault((p, cw), []).append((rh, kh * 3 + kw))

    first = True
    for (p, cw), taps in sorted(groups.items()):
        rhs = [rh for rh, _ in taps]
        rh0 = min(rhs)
        span = max(rhs) - rh0 + tr
        base = x_ref[0, p, pl.ds(row0 + rh0, span), pl.ds(cw, wo), :]  # (span, wo, cin)
        for rh, widx in taps:
            lo = rh - rh0
            win = base[lo:lo + tr]                                     # (tr, wo, cin)
            contrib = jnp.dot(win.reshape(rows, cin), w_ref[widx],
                              preferred_element_type=jnp.float32)
            if first:
                acc_ref[...] = contrib                                 # zero-free init
                first = False
            else:
                acc_ref[...] += contrib
    o_ref[0] = jnp.maximum(acc_ref[...] + b_ref[...], 0.0).astype(o_ref.dtype)


def _conv3_proj_shortcut_kernel(y_ref, w3_ref, b3_ref, xs_ref, ws_ref, bs_ref, o_ref):
    # out = relu( y @ w3 + b3  +  x_s @ ws + bs )
    main = jnp.dot(y_ref[...], w3_ref[...], preferred_element_type=jnp.float32) + b3_ref[...]
    sc = jnp.dot(xs_ref[...], ws_ref[...], preferred_element_type=jnp.float32) + bs_ref[...]
    o_ref[...] = jnp.maximum(main + sc, 0.0).astype(o_ref.dtype)


def _conv3_identity_shortcut_kernel(y_ref, w3_ref, b3_ref, xs_ref, o_ref):
    # out = relu( y @ w3 + b3 + x )   -- identity shortcut, no eye matmul
    main = jnp.dot(y_ref[...], w3_ref[...], preferred_element_type=jnp.float32) + b3_ref[...]
    o_ref[...] = jnp.maximum(main + xs_ref[...].astype(jnp.float32), 0.0).astype(o_ref.dtype)


# ------------------------------ kernel wrappers ----------------------------- #

def matmul_bias_relu(x2d, w, bias):
    M, K = x2d.shape
    C = w.shape[1]
    tm = _choose_tm(M, _tm_cap())
    tn = _choose_tn(C)
    grid = (pl.cdiv(M, tm), C // tn)
    return pl.pallas_call(
        _matmul_bias_relu_kernel,
        out_shape=jax.ShapeDtypeStruct((M, C), jnp.bfloat16),
        grid_spec=pltpu.PrefetchScalarGridSpec(
            num_scalar_prefetch=0, grid=grid,
            in_specs=[pl.BlockSpec((tm, K), lambda i, j: (i, 0)),
                      pl.BlockSpec((K, tn), lambda i, j: (0, j)),
                      pl.BlockSpec((1, tn), lambda i, j: (0, j))],
            out_specs=pl.BlockSpec((tm, tn), lambda i, j: (i, j))),
        compiler_params=pltpu.CompilerParams(
            dimension_semantics=("parallel", "parallel"),
            vmem_limit_bytes=_vmem_limit()),
    )(x2d, w, bias.reshape(1, C))


def conv3x3_bias_relu(x_nhwc, w9, bias, stride):
    # x_nhwc: (N, H, W, Cp) bf16; w9: (9, Cp, Coutp) bf16 (scale folded); bias f32.
    # Returns a flat lane-dense slab (N, Ho*Wo, Coutp) in bf16.
    N, H, W, Cp = x_nhwc.shape
    Coutp = w9.shape[2]
    s = stride
    Ho = (H - 1) // s + 1
    Wo = (W - 1) // s + 1
    Hp = _round_up(H + 2, s)
    Wp = _round_up(W + 2, s)
    xpad = jnp.pad(x_nhwc, ((0, 0), (1, Hp - H - 1), (1, Wp - W - 1), (0, 0)))
    Hph, Wph = Hp // s, Wp // s
    if s == 1:
        xph = xpad.reshape(N, 1, Hph, Wph, Cp)            # pure reshape, no copy
    else:
        # TODO(synk): stride>1 phase split is still one XLA transpose copy.
        xph = xpad.reshape(N, Hph, s, Wph, s, Cp).transpose(0, 2, 4, 1, 3, 5)
        xph = xph.reshape(N, s * s, Hph, Wph, Cp)

    tr = _choose_row_tile(Ho, Wo)
    nrb = Ho // tr
    kernel = functools.partial(_conv3x3_bias_relu_kernel,
                               stride=s, tr=tr, wo=Wo, n_row_blocks=nrb)
    return pl.pallas_call(
        kernel,
        out_shape=jax.ShapeDtypeStruct((N, Ho * Wo, Coutp), jnp.bfloat16),
        grid_spec=pltpu.PrefetchScalarGridSpec(
            num_scalar_prefetch=0, grid=(N, nrb),
            in_specs=[
                # Whole phase-split image; index_map ignores the row-block axis,
                # so the block stays resident (no re-DMA) across row blocks.
                pl.BlockSpec((1, s * s, Hph, Wph, Cp), lambda n, r: (n, 0, 0, 0, 0)),
                # Full 3x3 weights, constant index_map -> fetched from HBM once.
                pl.BlockSpec((9, Cp, Coutp), lambda n, r: (0, 0, 0)),
                pl.BlockSpec((1, Coutp), lambda n, r: (0, 0)),
            ],
            out_specs=pl.BlockSpec((1, tr * Wo, Coutp), lambda n, r: (n, r, 0)),
            scratch_shapes=[pltpu.VMEM((tr * Wo, Coutp), jnp.float32)]),
        compiler_params=pltpu.CompilerParams(
            dimension_semantics=("parallel", "parallel"),
            vmem_limit_bytes=_vmem_limit()),
    )(xph, w9, bias.reshape(1, Coutp))


def conv3_proj_shortcut_relu(y2d, w3, b3, xs2d, ws, bs):
    M, K1 = y2d.shape
    C = w3.shape[1]
    K2 = xs2d.shape[1]
    tm = _choose_tm(M, _tm_cap())
    tn = _choose_tn(C)
    grid = (pl.cdiv(M, tm), C // tn)
    return pl.pallas_call(
        _conv3_proj_shortcut_kernel,
        out_shape=jax.ShapeDtypeStruct((M, C), jnp.bfloat16),
        grid_spec=pltpu.PrefetchScalarGridSpec(
            num_scalar_prefetch=0, grid=grid,
            in_specs=[pl.BlockSpec((tm, K1), lambda i, j: (i, 0)),
                      pl.BlockSpec((K1, tn), lambda i, j: (0, j)),
                      pl.BlockSpec((1, tn), lambda i, j: (0, j)),
                      pl.BlockSpec((tm, K2), lambda i, j: (i, 0)),
                      pl.BlockSpec((K2, tn), lambda i, j: (0, j)),
                      pl.BlockSpec((1, tn), lambda i, j: (0, j))],
            out_specs=pl.BlockSpec((tm, tn), lambda i, j: (i, j))),
        compiler_params=pltpu.CompilerParams(
            dimension_semantics=("parallel", "parallel"),
            vmem_limit_bytes=_vmem_limit()),
    )(y2d, w3, b3.reshape(1, C), xs2d, ws, bs.reshape(1, C))


def conv3_identity_shortcut_relu(y2d, w3, b3, xs2d):
    M, K1 = y2d.shape
    C = w3.shape[1]
    tm = _choose_tm(M, _tm_cap())
    tn = _choose_tn(C)
    grid = (pl.cdiv(M, tm), C // tn)
    return pl.pallas_call(
        _conv3_identity_shortcut_kernel,
        out_shape=jax.ShapeDtypeStruct((M, C), jnp.bfloat16),
        grid_spec=pltpu.PrefetchScalarGridSpec(
            num_scalar_prefetch=0, grid=grid,
            in_specs=[pl.BlockSpec((tm, K1), lambda i, j: (i, 0)),
                      pl.BlockSpec((K1, tn), lambda i, j: (0, j)),
                      pl.BlockSpec((1, tn), lambda i, j: (0, j)),
                      pl.BlockSpec((tm, tn), lambda i, j: (i, j))],
            out_specs=pl.BlockSpec((tm, tn), lambda i, j: (i, j))),
        compiler_params=pltpu.CompilerParams(
            dimension_semantics=("parallel", "parallel"),
            vmem_limit_bytes=_vmem_limit()),
    )(y2d, w3, b3.reshape(1, C), xs2d)


# --------------------------------- forward ---------------------------------- #

@functools.partial(jax.jit, static_argnames=("stride",))
def bottleneck_forward(x_nchw, params, stride):
    N, Cin, H, W = x_nchw.shape
    planes = params["w1"].shape[1]
    exp = params["w3"].shape[1]
    Cin_p = _round_up_ch(Cin)
    P_p = _round_up_ch(planes)
    E_p = _round_up_ch(exp)

    s1, b1 = _bn_fold(params["bn1"])
    s2, b2 = _bn_fold(params["bn2"])
    s3, b3 = _bn_fold(params["bn3"])

    x = jnp.transpose(x_nchw, (0, 2, 3, 1))                       # NCHW -> NHWC
    xp = jnp.pad(x, ((0, 0), (0, 0), (0, 0), (0, Cin_p - Cin))).astype(jnp.bfloat16)

    # --- conv1 (1x1) + bn1 + relu ------------------------------------------- #
    w1p = _pad2(params["w1"] * s1[None, :], Cin_p, P_p).astype(jnp.bfloat16)
    b1p = jnp.pad(b1, (0, P_p - planes))
    y1 = matmul_bias_relu(xp.reshape(N * H * W, Cin_p), w1p, b1p)
    y1 = y1.reshape(N, H, W, P_p)

    # --- conv2 (3x3, stride, pad=1) + bn2 + relu ----------------------------- #
    w2f = (params["w2"] * s2[None, None, None, :]).reshape(9, planes, planes)
    w2p = jnp.pad(w2f, ((0, 0), (0, P_p - planes), (0, P_p - planes))).astype(jnp.bfloat16)
    b2p = jnp.pad(b2, (0, P_p - planes))
    y2 = conv3x3_bias_relu(y1, w2p, b2p, stride)                  # (N, Ho*Wo, P_p) flat
    Ho = (H - 1) // stride + 1
    Wo = (W - 1) // stride + 1
    y2 = y2.reshape(N * Ho * Wo, P_p)                             # free (contiguous)

    # --- conv3 (1x1) + bn3 + shortcut + add + relu --------------------------- #
    w3p = _pad2(params["w3"] * s3[None, :], P_p, E_p).astype(jnp.bfloat16)
    b3p = jnp.pad(b3, (0, E_p - exp))

    if stride != 1 or Cin != exp:                                 # projection shortcut
        ss, bs = _bn_fold(params["bns"])
        wsp = _pad2(params["ws"] * ss[None, :], Cin_p, E_p).astype(jnp.bfloat16)
        bsp = jnp.pad(bs, (0, E_p - exp))
        # TODO(synk): strided shortcut sampling is still an XLA slice copy.
        xs = xp[:, ::stride, ::stride, :].reshape(N * Ho * Wo, Cin_p)
        out = conv3_proj_shortcut_relu(y2, w3p, b3p, xs, wsp, bsp)
    else:                                                         # identity shortcut
        xs = xp.reshape(N * H * W, Cin_p)                         # Cin_p == E_p here
        out = conv3_identity_shortcut_relu(y2, w3p, b3p, xs)

    out = out.reshape(N, Ho, Wo, E_p)[:, :, :, :exp].astype(jnp.float32)
    return jnp.transpose(out, (0, 3, 1, 2))                       # back to NCHW


# --------------------------- deterministic params --------------------------- #

def init_params(key, in_planes, planes, stride):
    exp = 4 * planes
    ks = jax.random.split(key, 8)

    def conv_w(k, fan_in, shape):
        return jax.random.normal(k, shape, jnp.float32) * (2.0 / fan_in) ** 0.5

    def bn_p(k, c):
        k1, k2, k3, k4 = jax.random.split(k, 4)
        gamma = jax.random.uniform(k1, (c,), jnp.float32, 0.5, 1.5)
        beta = jax.random.normal(k2, (c,), jnp.float32) * 0.1
        mean = jax.random.normal(k3, (c,), jnp.float32) * 0.1
        var = jax.random.uniform(k4, (c,), jnp.float32, 0.5, 1.5)
        return (gamma, beta, mean, var)

    params = dict(
        w1=conv_w(ks[0], in_planes, (in_planes, planes)),          # 1x1
        bn1=bn_p(ks[1], planes),
        w2=conv_w(ks[2], 9 * planes, (3, 3, planes, planes)),      # HWIO
        bn2=bn_p(ks[3], planes),
        w3=conv_w(ks[4], planes, (planes, exp)),                   # 1x1
        bn3=bn_p(ks[5], exp),
    )
    if stride != 1 or in_planes != exp:
        params["ws"] = conv_w(ks[6], in_planes, (in_planes, exp))  # 1x1 projection
        params["bns"] = bn_p(ks[7], exp)
    return params


# ------------------------------ JAX reference ------------------------------- #

def reference_forward(x_nchw, params, stride):
    x = jnp.transpose(x_nchw, (0, 2, 3, 1))
    dn = ("NHWC", "HWIO", "NHWC")

    def bn(y, p):
        g, b, m, v = p
        return g * (y - m) / jnp.sqrt(v + EPS) + b

    y = jax.nn.relu(bn(jax.lax.conv_general_dilated(
        x, params["w1"][None, None], (1, 1), "VALID", dimension_numbers=dn), params["bn1"]))
    y = jax.nn.relu(bn(jax.lax.conv_general_dilated(
        y, params["w2"], (stride, stride), ((1, 1), (1, 1)), dimension_numbers=dn), params["bn2"]))
    y = bn(jax.lax.conv_general_dilated(
        y, params["w3"][None, None], (1, 1), "VALID", dimension_numbers=dn), params["bn3"])
    if stride != 1 or x.shape[-1] != params["w3"].shape[1]:
        sc = bn(jax.lax.conv_general_dilated(
            x, params["ws"][None, None], (stride, stride), "VALID", dimension_numbers=dn),
            params["bns"])
    else:
        sc = x
    out = jax.nn.relu(y + sc)
    return jnp.transpose(out, (0, 3, 1, 2))


# ---------------------------------- main ------------------------------------ #

if __name__ == "__main__":
    key = jax.random.PRNGKey(0)

    configs = [
        # (N, in_planes, planes, H, W, stride)
        (2, 16, 8, 16, 16, 2),    # projection shortcut (stride 2)
        (2, 32, 8, 16, 16, 1),    # identity shortcut
        (1, 32, 8, 24, 24, 1),    # identity shortcut, multi-row-block conv2 path
    ]

    for idx, (N, in_planes, planes, H, W, stride) in enumerate(configs):
        kx, kp, key = jax.random.split(key, 3)
        x = jax.random.normal(kx, (N, in_planes, H, W), jnp.float32)   # NCHW like PyTorch
        params = init_params(kp, in_planes, planes, stride)

        out = jax.block_until_ready(bottleneck_forward(x, params, stride=stride))
        ref = jax.block_until_ready(reference_forward(x, params, stride))

        Ho = (H - 1) // stride + 1
        Wo = (W - 1) // stride + 1
        assert out.shape == (N, 4 * planes, Ho, Wo), (idx, out.shape)
        rel_err = float(jnp.max(jnp.abs(out - ref) / jnp.maximum(jnp.abs(ref), 1.0)))
        assert rel_err < 5e-2, f"config {idx}: mismatch vs reference rel_err={rel_err}"

    print("KERNEL_OK")
</pallas_src>

<mosaic_0001>
module attributes {stable_mosaic.version = 11 : i64} {
  func.func @_matmul_bias_relu_kernel(%arg0: i32, %arg1: i32, %arg2: memref<512x128xbf16, #tpu.memory_space<vmem>>, %arg3: memref<128x128xbf16, #tpu.memory_space<vmem>>, %arg4: memref<1x128xf32, #tpu.memory_space<vmem>>, %arg5: memref<512x128xbf16, #tpu.memory_space<vmem>>) attributes {dimension_semantics = [#tpu.dimension_semantics<parallel>, #tpu.dimension_semantics<parallel>], iteration_bounds = array<i64: 1, 1>, scalar_prefetch = 0 : i64, scratch_operands = 0 : i64, tpu.core_type = #tpu.core_type<tc>, window_params = [{transform_indices = @transform_0, window_bounds = array<i64: 512, 128>}, {transform_indices = @transform_1, window_bounds = array<i64: 128, 128>}, {transform_indices = @transform_2, window_bounds = array<i64: 1, 128>}, {transform_indices = @transform_3, window_bounds = array<i64: 512, 128>}]} {
    %c0 = arith.constant 0 : index
    %c0_0 = arith.constant 0 : index
    %0 = vector.load %arg2[%c0, %c0_0] : memref<512x128xbf16, #tpu.memory_space<vmem>>, vector<512x128xbf16>
    %c0_1 = arith.constant 0 : index
    %c0_2 = arith.constant 0 : index
    %1 = vector.load %arg3[%c0_1, %c0_2] : memref<128x128xbf16, #tpu.memory_space<vmem>>, vector<128x128xbf16>
    %cst = arith.constant dense<0.000000e+00> : vector<512x128xf32>
    %2 = tpu.matmul %0, %1, %cst {dimension_numbers = #tpu.dot_dimension_numbers<[1], [0], [0], [1], [0, 0, 1, 1], [], []>} : vector<512x128xbf16>, vector<128x128xbf16>, vector<512x128xf32> -> vector<512x128xf32>
    %c0_3 = arith.constant 0 : index
    %c0_4 = arith.constant 0 : index
    %3 = vector.load %arg4[%c0_3, %c0_4] : memref<1x128xf32, #tpu.memory_space<vmem>>, vector<1x128xf32>
    %4 = vector.broadcast %3 : vector<1x128xf32> to vector<512x128xf32>
    %5 = arith.addf %2, %4 : vector<512x128xf32>
    %cst_5 = arith.constant 0.000000e+00 : f32
    %6 = vector.broadcast %cst_5 : f32 to vector<512x128xf32>
    %7 = arith.maximumf %5, %6 : vector<512x128xf32>
    %8 = arith.truncf %7 : vector<512x128xf32> to vector<512x128xbf16>
    %c0_6 = arith.constant 0 : index
    %c0_7 = arith.constant 0 : index
    %9 = vector.load %arg5[%c0_6, %c0_7] : memref<512x128xbf16, #tpu.memory_space<vmem>>, vector<512x128xbf16>
    tpu.vector_store %arg5[%c0_6, %c0_7], %8 {strides = array<i32>} : memref<512x128xbf16, #tpu.memory_space<vmem>>, vector<512x128xbf16>,
    return
  }
  func.func @transform_0(%arg0: i32, %arg1: i32) -> (i32, i32) {
    %c0_i32 = arith.constant 0 : i32
    %c0_i32_0 = arith.constant 0 : i32
    return %arg0, %c0_i32 : i32, i32
  }
  func.func @transform_1(%arg0: i32, %arg1: i32) -> (i32, i32) {
    %c0_i32 = arith.constant 0 : i32
    %c0_i32_0 = arith.constant 0 : i32
    return %c0_i32, %arg1 : i32, i32
  }
  func.func @transform_2(%arg0: i32, %arg1: i32) -> (i32, i32) {
    %c0_i32 = arith.constant 0 : i32
    %c0_i32_0 = arith.constant 0 : i32
    return %c0_i32, %arg1 : i32, i32
  }
  func.func @transform_3(%arg0: i32, %arg1: i32) -> (i32, i32) {
    %c0_i32 = arith.constant 0 : i32
    return %arg0, %arg1 : i32, i32
  }
}

module attributes {stable_mosaic.version = 11 : i64} {
  func.func @_conv3x3_bias_relu_kernel(%arg0: i32, %arg1: i32, %arg2: memref<1x4x9x9x128xbf16, #tpu.memory_space<vmem>>, %arg3: memref<9x128x128xbf16, #tpu.memory_space<vmem>>, %arg4: memref<1x128xf32, #tpu.memory_space<vmem>>, %arg5: memref<1x64x128xbf16, #tpu.memory_space<vmem>>, %arg6: memref<64x128xf32, #tpu.memory_space<vmem>>) attributes {dimension_semantics = [#tpu.dimension_semantics<parallel>, #tpu.dimension_semantics<parallel>], iteration_bounds = array<i64: 2, 1>, scalar_prefetch = 0 : i64, scratch_operands = 1 : i64, tpu.core_type = #tpu.core_type<tc>, window_params = [{transform_indices = @transform_0, window_bounds = array<i64: 1, 4, 9, 9, 128>}, {pipeline_mode = #tpu.pipeline_mode<synchronous>, transform_indices = @transform_1, window_bounds = array<i64: 9, 128, 128>}, {pipeline_mode = #tpu.pipeline_mode<synchronous>, transform_indices = @transform_2, window_bounds = array<i64: 1, 128>}, {transform_indices = @transform_3, window_bounds = array<i64: 1, 64, 128>}]} {
    %c0 = arith.constant 0 : index
    %c0_0 = arith.constant 0 : index
    %c0_1 = arith.constant 0 : index
    %c0_2 = arith.constant 0 : index
    %c0_3 = arith.constant 0 : index
    %0 = vector.load %arg2[%c0, %c0_0, %c0_1, %c0_2, %c0_3] : memref<1x4x9x9x128xbf16, #tpu.memory_space<vmem>>, vector<1x1x9x8x128xbf16>
    %1 = vector.shape_cast %0 : vector<1x1x9x8x128xbf16> to vector<9x8x128xbf16>
    %2 = vector.extract_strided_slice %1 {offsets = [0, 0, 0], sizes = [8, 8, 128], strides = [1, 1, 1]} : vector<9x8x128xbf16> to vector<8x8x128xbf16>
    %3 = vector.shape_cast %2 : vector<8x8x128xbf16> to vector<64x128xbf16>
    %c0_4 = arith.constant 0 : index
    %c0_5 = arith.constant 0 : index
    %c0_6 = arith.constant 0 : index
    %4 = vector.load %arg3[%c0_4, %c0_5, %c0_6] : memref<9x128x128xbf16, #tpu.memory_space<vmem>>, vector<1x128x128xbf16>
    %5 = vector.shape_cast %4 : vector<1x128x128xbf16> to vector<128x128xbf16>
    %cst = arith.constant dense<0.000000e+00> : vector<64x128xf32>
    %6 = tpu.matmul %3, %5, %cst {dimension_numbers = #tpu.dot_dimension_numbers<[1], [0], [0], [1], [0, 0, 1, 1], [], []>} : vector<64x128xbf16>, vector<128x128xbf16>, vector<64x128xf32> -> vector<64x128xf32>
    %c0_7 = arith.constant 0 : index
    %c0_8 = arith.constant 0 : index
    %7 = vector.load %arg6[%c0_7, %c0_8] : memref<64x128xf32, #tpu.memory_space<vmem>>, vector<64x128xf32>
    tpu.vector_store %arg6[%c0_7, %c0_8], %6 {strides = array<i32>} : memref<64x128xf32, #tpu.memory_space<vmem>>, vector<64x128xf32>,
    %8 = vector.extract_strided_slice %1 {offsets = [1, 0, 0], sizes = [8, 8, 128], strides = [1, 1, 1]} : vector<9x8x128xbf16> to vector<8x8x128xbf16>
    %9 = vector.shape_cast %8 : vector<8x8x128xbf16> to vector<64x128xbf16>
    %c6 = arith.constant 6 : index
    %c0_9 = arith.constant 0 : index
    %c0_10 = arith.constant 0 : index
    %10 = vector.load %arg3[%c6, %c0_9, %c0_10] : memref<9x128x128xbf16, #tpu.memory_space<vmem>>, vector<1x128x128xbf16>
    %11 = vector.shape_cast %10 : vector<1x128x128xbf16> to vector<128x128xbf16>
    %cst_11 = arith.constant dense<0.000000e+00> : vector<64x128xf32>
    %12 = tpu.matmul %9, %11, %cst_11 {dimension_numbers = #tpu.dot_dimension_numbers<[1], [0], [0], [1], [0, 0, 1, 1], [], []>} : vector<64x128xbf16>, vector<128x128xbf16>, vector<64x128xf32> -> vector<64x128xf32>
    %c0_12 = arith.constant 0 : index
    %c0_13 = arith.constant 0 : index
    %13 = vector.load %arg6[%c0_12, %c0_13] : memref<64x128xf32, #tpu.memory_space<vmem>>, vector<64x128xf32>
    %14 = arith.addf %13, %12 : vector<64x128xf32>
    %c0_14 = arith.constant 0 : index
    %c0_15 = arith.constant 0 : index
    %15 = vector.load %arg6[%c0_14, %c0_15] : memref<64x128xf32, #tpu.memory_space<vmem>>, vector<64x128xf32>
    tpu.vector_store %arg6[%c0_14, %c0_15], %14 {strides = array<i32>} : memref<64x128xf32, #tpu.memory_space<vmem>>, vector<64x128xf32>,
    %c0_16 = arith.constant 0 : index
    %c0_17 = arith.constant 0 : index
    %c0_18 = arith.constant 0 : index
    %c1 = arith.constant 1 : index
    %c0_19 = arith.constant 0 : index
    %16 = vector.load %arg2[%c0_16, %c0_17, %c0_18, %c1, %c0_19] : memref<1x4x9x9x128xbf16, #tpu.memory_space<vmem>>, vector<1x1x9x8x128xbf16>
    %17 = vector.shape_cast %16 : vector<1x1x9x8x128xbf16> to vector<9x8x128xbf16>
    %18 = vector.extract_strided_slice %17 {offsets = [0, 0, 0], sizes = [8, 8, 128], strides = [1, 1, 1]} : vector<9x8x128xbf16> to vector<8x8x128xbf16>
    %19 = vector.shape_cast %18 : vector<8x8x128xbf16> to vector<64x128xbf16>
    %c2 = arith.constant 2 : index
    %c0_20 = arith.constant 0 : index
    %c0_21 = arith.constant 0 : index
    %20 = vector.load %arg3[%c2, %c0_20, %c0_21] : memref<9x128x128xbf16, #tpu.memory_space<vmem>>, vector<1x128x128xbf16>
    %21 = vector.shape_cast %20 : vector<1x128x128xbf16> to vector<128x128xbf16>
    %cst_22 = arith.constant dense<0.000000e+00> : vector<64x128xf32>
    %22 = tpu.matmul %19, %21, %cst_22 {dimension_numbers = #tpu.dot_dimension_numbers<[1], [0], [0], [1], [0, 0, 1, 1], [], []>} : vector<64x128xbf16>, vector<128x128xbf16>, vector<64x128xf32> -> vector<64x128xf32>
    %c0_23 = arith.constant 0 : index
    %c0_24 = arith.constant 0 : index
    %23 = vector.load %arg6[%c0_23, %c0_24] : memref<64x128xf32, #tpu.memory_space<vmem>>, vector<64x128xf32>
    %24 = arith.addf %23, %22 : vector<64x128xf32>
    %c0_25 = arith.constant 0 : index
    %c0_26 = arith.constant 0 : index
    %25 = vector.load %arg6[%c0_25, %c0_26] : memref<64x128xf32, #tpu.memory_space<vmem>>, vector<64x128xf32>
    tpu.vector_store %arg6[%c0_25, %c0_26], %24 {strides = array<i32>} : memref<64x128xf32, #tpu.memory_space<vmem>>, vector<64x128xf32>,
    %26 = vector.extract_strided_slice %17 {offsets = [1, 0, 0], sizes = [8, 8, 128], strides = [1, 1, 1]} : vector<9x8x128xbf16> to vector<8x8x128xbf16>
    %27 = vector.shape_cast %26 : vector<8x8x128xbf16> to vector<64x128xbf16>
    %c8 = arith.constant 8 : index
    %c0_27 = arith.constant 0 : index
    %c0_28 = arith.constant 0 : index
    %28 = vector.load %arg3[%c8, %c0_27, %c0_28] : memref<9x128x128xbf16, #tpu.memory_space<vmem>>, vector<1x128x128xbf16>
    %29 = vector.shape_cast %28 : vector<1x128x128xbf16> to vector<128x128xbf16>
    %cst_29 = arith.constant dense<0.000000e+00> : vector<64x128xf32>
    %30 = tpu.matmul %27, %29, %cst_29 {dimension_numbers = #tpu.dot_dimension_numbers<[1], [0], [0], [1], [0, 0, 1, 1], [], []>} : vector<64x128xbf16>, vector<128x128xbf16>, vector<64x128xf32> -> vector<64x128xf32>
    %c0_30 = arith.constant 0 : index
    %c0_31 = arith.constant 0 : index
    %31 = vector.load %arg6[%c0_30, %c0_31] : memref<64x128xf32, #tpu.memory_space<vmem>>, vector<64x128xf32>
    %32 = arith.addf %31, %30 : vector<64x128xf32>
    %c0_32 = arith.constant 0 : index
    %c0_33 = arith.constant 0 : index
    %33 = vector.load %arg6[%c0_32, %c0_33] : memref<64x128xf32, #tpu.memory_space<vmem>>, vector<64x128xf32>
    tpu.vector_store %arg6[%c0_32, %c0_33], %32 {strides = array<i32>} : memref<64x128xf32, #tpu.memory_space<vmem>>, vector<64x128xf32>,
    %c0_34 = arith.constant 0 : index
    %c1_35 = arith.constant 1 : index
    %c0_36 = arith.constant 0 : index
    %c0_37 = arith.constant 0 : index
    %c0_38 = arith.constant 0 : index
    %34 = vector.load %arg2[%c0_34, %c1_35, %c0_36, %c0_37, %c0_38] : memref<1x4x9x9x128xbf16, #tpu.memory_space<vmem>>, vector<1x1x9x8x128xbf16>
    %35 = vector.shape_cast %34 : vector<1x1x9x8x128xbf16> to vector<9x8x128xbf16>
    %36 = vector.extract_strided_slice %35 {offsets = [0, 0, 0], sizes = [8, 8, 128], strides = [1, 1, 1]} : vector<9x8x128xbf16> to vector<8x8x128xbf16>
    %37 = vector.shape_cast %36 : vector<8x8x128xbf16> to vector<64x128xbf16>
    %c1_39 = arith.constant 1 : index
    %c0_40 = arith.constant 0 : index
    %c0_41 = arith.constant 0 : index
    %38 = vector.load %arg3[%c1_39, %c0_40, %c0_41] : memref<9x128x128xbf16, #tpu.memory_space<vmem>>, vector<1x128x128xbf16>
    %39 = vector.shape_cast %38 : vector<1x128x128xbf16> to vector<128x128xbf16>
    %cst_42 = arith.constant dense<0.000000e+00> : vector<64x128xf32>
    %40 = tpu.matmul %37, %39, %cst_42 {dimension_numbers = #tpu.dot_dimension_numbers<[1], [0], [0], [1], [0, 0, 1, 1], [], []>} : vector<64x128xbf16>, vector<128x128xbf16>, vector<64x128xf32> -> vector<64x128xf32>
    %c0_43 = arith.constant 0 : index
    %c0_44 = arith.constant 0 : index
    %41 = vector.load %arg6[%c0_43, %c0_44] : memref<64x128xf32, #tpu.memory_space<vmem>>, vector<64x128xf32>
    %42 = arith.addf %41, %40 : vector<64x128xf32>
    %c0_45 = arith.constant 0 : index
    %c0_46 = arith.constant 0 : index
    %43 = vector.load %arg6[%c0_45, %c0_46] : memref<64x128xf32, #tpu.memory_space<vmem>>, vector<64x128xf32>
    tpu.vector_store %arg6[%c0_45, %c0_46], %42 {strides = array<i32>} : memref<64x128xf32, #tpu.memory_space<vmem>>, vector<64x128xf32>,
    %44 = vector.extract_strided_slice %35 {offsets = [1, 0, 0], sizes = [8, 8, 128], strides = [1, 1, 1]} : vector<9x8x128xbf16> to vector<8x8x128xbf16>
    %45 = vector.shape_cast %44 : vector<8x8x128xbf16> to vector<64x128xbf16>
    %c7 = arith.constant 7 : index
    %c0_47 = arith.constant 0 : index
    %c0_48 = arith.constant 0 : index
    %46 = vector.load %arg3[%c7, %c0_47, %c0_48] : memref<9x128x128xbf16, #tpu.memory_space<vmem>>, vector<1x128x128xbf16>
    %47 = vector.shape_cast %46 : vector<1x128x128xbf16> to vector<128x128xbf16>
    %cst_49 = arith.constant dense<0.000000e+00> : vector<64x128xf32>
    %48 = tpu.matmul %45, %47, %cst_49 {dimension_numbers = #tpu.dot_dimension_numbers<[1], [0], [0], [1], [0, 0, 1, 1], [], []>} : vector<64x128xbf16>, vector<128x128xbf16>, vector<64x128xf32> -> vector<64x128xf32>
    %c0_50 = arith.constant 0 : index
    %c0_51 = arith.constant 0 : index
    %49 = vector.load %arg6[%c0_50, %c0_51] : memref<64x128xf32, #tpu.memory_space<vmem>>, vector<64x128xf32>
    %50 = arith.addf %49, %48 : vector<64x128xf32>
    %c0_52 = arith.constant 0 : index
    %c0_53 = arith.constant 0 : index
    %51 = vector.load %arg6[%c0_52, %c0_53] : memref<64x128xf32, #tpu.memory_space<vmem>>, vector<64x128xf32>
    tpu.vector_store %arg6[%c0_52, %c0_53], %50 {strides = array<i32>} : memref<64x128xf32, #tpu.memory_space<vmem>>, vector<64x128xf32>,
    %c0_54 = arith.constant 0 : index
    %c2_55 = arith.constant 2 : index
    %c0_56 = arith.constant 0 : index
    %c0_57 = arith.constant 0 : index
    %c0_58 = arith.constant 0 : index
    %52 = vector.load %arg2[%c0_54, %c2_55, %c0_56, %c0_57, %c0_58] : memref<1x4x9x9x128xbf16, #tpu.memory_space<vmem>>, vector<1x1x8x8x128xbf16>
    %53 = vector.shape_cast %52 : vector<1x1x8x8x128xbf16> to vector<8x8x128xbf16>
    %54 = vector.shape_cast %53 : vector<8x8x128xbf16> to vector<64x128xbf16>
    %c3 = arith.constant 3 : index
    %c0_59 = arith.constant 0 : index
    %c0_60 = arith.constant 0 : index
    %55 = vector.load %arg3[%c3, %c0_59, %c0_60] : memref<9x128x128xbf16, #tpu.memory_space<vmem>>, vector<1x128x128xbf16>
    %56 = vector.shape_cast %55 : vector<1x128x128xbf16> to vector<128x128xbf16>
    %cst_61 = arith.constant dense<0.000000e+00> : vector<64x128xf32>
    %57 = tpu.matmul %54, %56, %cst_61 {dimension_numbers = #tpu.dot_dimension_numbers<[1], [0], [0], [1], [0, 0, 1, 1], [], []>} : vector<64x128xbf16>, vector<128x128xbf16>, vector<64x128xf32> -> vector<64x128xf32>
    %c0_62 = arith.constant 0 : index
    %c0_63 = arith.constant 0 : index
    %58 = vector.load %arg6[%c0_62, %c0_63] : memref<64x128xf32, #tpu.memory_space<vmem>>, vector<64x128xf32>
    %59 = arith.addf %58, %57 : vector<64x128xf32>
    %c0_64 = arith.constant 0 : index
    %c0_65 = arith.constant 0 : index
    %60 = vector.load %arg6[%c0_64, %c0_65] : memref<64x128xf32, #tpu.memory_space<vmem>>, vector<64x128xf32>
    tpu.vector_store %arg6[%c0_64, %c0_65], %59 {strides = array<i32>} : memref<64x128xf32, #tpu.memory_space<vmem>>, vector<64x128xf32>,
    %c0_66 = arith.constant 0 : index
    %c2_67 = arith.constant 2 : index
    %c0_68 = arith.constant 0 : index
    %c1_69 = arith.constant 1 : index
    %c0_70 = arith.constant 0 : index
    %61 = vector.load %arg2[%c0_66, %c2_67, %c0_68, %c1_69, %c0_70] : memref<1x4x9x9x128xbf16, #tpu.memory_space<vmem>>, vector<1x1x8x8x128xbf16>
    %62 = vector.shape_cast %61 : vector<1x1x8x8x128xbf16> to vector<8x8x128xbf16>
    %63 = vector.shape_cast %62 : vector<8x8x128xbf16> to vector<64x128xbf16>
    %c5 = arith.constant 5 : index
    %c0_71 = arith.constant 0 : index
    %c0_72 = arith.constant 0 : index
    %64 = vector.load %arg3[%c5, %c0_71, %c0_72] : memref<9x128x128xbf16, #tpu.memory_space<vmem>>, vector<1x128x128xbf16>
    %65 = vector.shape_cast %64 : vector<1x128x128xbf16> to vector<128x128xbf16>
    %cst_73 = arith.constant dense<0.000000e+00> : vector<64x128xf32>
    %66 = tpu.matmul %63, %65, %cst_73 {dimension_numbers = #tpu.dot_dimension_numbers<[1], [0], [0], [1], [0, 0, 1, 1], [], []>} : vector<64x128xbf16>, vector<128x128xbf16>, vector<64x128xf32> -> vector<64x128xf32>
    %c0_74 = arith.constant 0 : index
    %c0_75 = arith.constant 0 : index
    %67 = vector.load %arg6[%c0_74, %c0_75] : memref<64x128xf32, #tpu.memory_space<vmem>>, vector<64x128xf32>
    %68 = arith.addf %67, %66 : vector<64x128xf32>
    %c0_76 = arith.constant 0 : index
    %c0_77 = arith.constant 0 : index
    %69 = vector.load %arg6[%c0_76, %c0_77] : memref<64x128xf32, #tpu.memory_space<vmem>>, vector<64x128xf32>
    tpu.vector_store %arg6[%c0_76, %c0_77], %68 {strides = array<i32>} : memref<64x128xf32, #tpu.memory_space<vmem>>, vector<64x128xf32>,
    %c0_78 = arith.constant 0 : index
    %c3_79 = arith.constant 3 : index
    %c0_80 = arith.constant 0 : index
    %c0_81 = arith.constant 0 : index
    %c0_82 = arith.constant 0 : index
    %70 = vector.load %arg2[%c0_78, %c3_79, %c0_80, %c0_81, %c0_82] : memref<1x4x9x9x128xbf16, #tpu.memory_space<vmem>>, vector<1x1x8x8x128xbf16>
    %71 = vector.shape_cast %70 : vector<1x1x8x8x128xbf16> to vector<8x8x128xbf16>
    %72 = vector.shape_cast %71 : vector<8x8x128xbf16> to vector<64x128xbf16>
    %c4 = arith.constant 4 : index
    %c0_83 = arith.constant 0 : index
    %c0_84 = arith.constant 0 : index
    %73 = vector.load %arg3[%c4, %c0_83, %c0_84] : memref<9x128x128xbf16, #tpu.memory_space<vmem>>, vector<1x128x128xbf16>
    %74 = vector.shape_cast %73 : vector<1x128x128xbf16> to vector<128x128xbf16>
    %cst_85 = arith.constant dense<0.000000e+00> : vector<64x128xf32>
    %75 = tpu.matmul %72, %74, %cst_85 {dimension_numbers = #tpu.dot_dimension_numbers<[1], [0], [0], [1], [0, 0, 1, 1], [], []>} : vector<64x128xbf16>, vector<128x128xbf16>, vector<64x128xf32> -> vector<64x128xf32>
    %c0_86 = arith.constant 0 : index
    %c0_87 = arith.constant 0 : index
    %76 = vector.load %arg6[%c0_86, %c0_87] : memref<64x128xf32, #tpu.memory_space<vmem>>, vector<64x128xf32>
    %77 = arith.addf %76, %75 : vector<64x128xf32>
    %c0_88 = arith.constant 0 : index
    %c0_89 = arith.constant 0 : index
    %78 = vector.load %arg6[%c0_88, %c0_89] : memref<64x128xf32, #tpu.memory_space<vmem>>, vector<64x128xf32>
    tpu.vector_store %arg6[%c0_88, %c0_89], %77 {strides = array<i32>} : memref<64x128xf32, #tpu.memory_space<vmem>>, vector<64x128xf32>,
    %c0_90 = arith.constant 0 : index
    %c0_91 = arith.constant 0 : index
    %79 = vector.load %arg6[%c0_90, %c0_91] : memref<64x128xf32, #tpu.memory_space<vmem>>, vector<64x128xf32>
    %c0_92 = arith.constant 0 : index
    %c0_93 = arith.constant 0 : index
    %80 = vector.load %arg4[%c0_92, %c0_93] : memref<1x128xf32, #tpu.memory_space<vmem>>, vector<1x128xf32>
    %81 = vector.broadcast %80 : vector<1x128xf32> to vector<64x128xf32>
    %82 = arith.addf %79, %81 : vector<64x128xf32>
    %cst_94 = arith.constant 0.000000e+00 : f32
    %83 = vector.broadcast %cst_94 : f32 to vector<64x128xf32>
    %84 = arith.maximumf %82, %83 : vector<64x128xf32>
    %85 = arith.truncf %84 : vector<64x128xf32> to vector<64x128xbf16>
    %c0_95 = arith.constant 0 : index
    %c0_96 = arith.constant 0 : index
    %c0_97 = arith.constant 0 : index
    %86 = vector.load %arg5[%c0_95, %c0_96, %c0_97] : memref<1x64x128xbf16, #tpu.memory_space<vmem>>, vector<1x64x128xbf16>
    %87 = vector.shape_cast %86 : vector<1x64x128xbf16> to vector<64x128xbf16>
    %88 = vector.shape_cast %85 : vector<64x128xbf16> to vector<1x64x128xbf16>
    tpu.vector_store %arg5[%c0_95, %c0_96, %c0_97], %88 {strides = array<i32>} : memref<1x64x128xbf16, #tpu.memory_space<vmem>>, vector<1x64x128xbf16>,
    return
  }
  func.func @transform_0(%arg0: i32, %arg1: i32) -> (i32, i32, i32, i32, i32) {
    %c0_i32 = arith.constant 0 : i32
    %c0_i32_0 = arith.constant 0 : i32
    %c0_i32_1 = arith.constant 0 : i32
    %c0_i32_2 = arith.constant 0 : i32
    %c0_i32_3 = arith.constant 0 : i32
    return %arg0, %c0_i32, %c0_i32_0, %c0_i32_1, %c0_i32_2 : i32, i32, i32, i32, i32
  }
  func.func @transform_1(%arg0: i32, %arg1: i32) -> (i32, i32, i32) {
    %c0_i32 = arith.constant 0 : i32
    %c0_i32_0 = arith.constant 0 : i32
    %c0_i32_1 = arith.constant 0 : i32
    %c0_i32_2 = arith.constant 0 : i32
    return %c0_i32, %c0_i32_0, %c0_i32_1 : i32, i32, i32
  }
  func.func @transform_2(%arg0: i32, %arg1: i32) -> (i32, i32) {
    %c0_i32 = arith.constant 0 : i32
    %c0_i32_0 = arith.constant 0 : i32
    %c0_i32_1 = arith.constant 0 : i32
    return %c0_i32, %c0_i32_0 : i32, i32
  }
  func.func @transform_3(%arg0: i32, %arg1: i32) -> (i32, i32, i32) {
    %c0_i32 = arith.constant 0 : i32
    %c0_i32_0 = arith.constant 0 : i32
    return %arg0, %arg1, %c0_i32 : i32, i32, i32
  }
}

module attributes {stable_mosaic.version = 11 : i64} {
  func.func @_conv3_proj_shortcut_kernel(%arg0: i32, %arg1: i32, %arg2: memref<128x128xbf16, #tpu.memory_space<vmem>>, %arg3: memref<128x128xbf16, #tpu.memory_space<vmem>>, %arg4: memref<1x128xf32, #tpu.memory_space<vmem>>, %arg5: memref<128x128xbf16, #tpu.memory_space<vmem>>, %arg6: memref<128x128xbf16, #tpu.memory_space<vmem>>, %arg7: memref<1x128xf32, #tpu.memory_space<vmem>>, %arg8: memref<128x128xbf16, #tpu.memory_space<vmem>>) attributes {dimension_semantics = [#tpu.dimension_semantics<parallel>, #tpu.dimension_semantics<parallel>], iteration_bounds = array<i64: 1, 1>, scalar_prefetch = 0 : i64, scratch_operands = 0 : i64, tpu.core_type = #tpu.core_type<tc>, window_params = [{transform_indices = @transform_0, window_bounds = array<i64: 128, 128>}, {transform_indices = @transform_1, window_bounds = array<i64: 128, 128>}, {transform_indices = @transform_2, window_bounds = array<i64: 1, 128>}, {transform_indices = @transform_3, window_bounds = array<i64: 128, 128>}, {transform_indices = @transform_4, window_bounds = array<i64: 128, 128>}, {transform_indices = @transform_5, window_bounds = array<i64: 1, 128>}, {transform_indices = @transform_6, window_bounds = array<i64: 128, 128>}]} {
    %c0 = arith.constant 0 : index
    %c0_0 = arith.constant 0 : index
    %0 = vector.load %arg2[%c0, %c0_0] : memref<128x128xbf16, #tpu.memory_space<vmem>>, vector<128x128xbf16>
    %c0_1 = arith.constant 0 : index
    %c0_2 = arith.constant 0 : index
    %1 = vector.load %arg3[%c0_1, %c0_2] : memref<128x128xbf16, #tpu.memory_space<vmem>>, vector<128x128xbf16>
    %cst = arith.constant dense<0.000000e+00> : vector<128x128xf32>
    %2 = tpu.matmul %0, %1, %cst {dimension_numbers = #tpu.dot_dimension_numbers<[1], [0], [0], [1], [0, 0, 1, 1], [], []>} : vector<128x128xbf16>, vector<128x128xbf16>, vector<128x128xf32> -> vector<128x128xf32>
    %c0_3 = arith.constant 0 : index
    %c0_4 = arith.constant 0 : index
    %3 = vector.load %arg4[%c0_3, %c0_4] : memref<1x128xf32, #tpu.memory_space<vmem>>, vector<1x128xf32>
    %4 = vector.broadcast %3 : vector<1x128xf32> to vector<128x128xf32>
    %5 = arith.addf %2, %4 : vector<128x128xf32>
    %c0_5 = arith.constant 0 : index
    %c0_6 = arith.constant 0 : index
    %6 = vector.load %arg5[%c0_5, %c0_6] : memref<128x128xbf16, #tpu.memory_space<vmem>>, vector<128x128xbf16>
    %c0_7 = arith.constant 0 : index
    %c0_8 = arith.constant 0 : index
    %7 = vector.load %arg6[%c0_7, %c0_8] : memref<128x128xbf16, #tpu.memory_space<vmem>>, vector<128x128xbf16>
    %cst_9 = arith.constant dense<0.000000e+00> : vector<128x128xf32>
    %8 = tpu.matmul %6, %7, %cst_9 {dimension_numbers = #tpu.dot_dimension_numbers<[1], [0], [0], [1], [0, 0, 1, 1], [], []>} : vector<128x128xbf16>, vector<128x128xbf16>, vector<128x128xf32> -> vector<128x128xf32>
    %c0_10 = arith.constant 0 : index
    %c0_11 = arith.constant 0 : index
    %9 = vector.load %arg7[%c0_10, %c0_11] : memref<1x128xf32, #tpu.memory_space<vmem>>, vector<1x128xf32>
    %10 = vector.broadcast %9 : vector<1x128xf32> to vector<128x128xf32>
    %11 = arith.addf %8, %10 : vector<128x128xf32>
    %12 = arith.addf %5, %11 : vector<128x128xf32>
    %cst_12 = arith.constant 0.000000e+00 : f32
    %13 = vector.broadcast %cst_12 : f32 to vector<128x128xf32>
    %14 = arith.maximumf %12, %13 : vector<128x128xf32>
    %15 = arith.truncf %14 : vector<128x128xf32> to vector<128x128xbf16>
    %c0_13 = arith.constant 0 : index
    %c0_14 = arith.constant 0 : index
    %16 = vector.load %arg8[%c0_13, %c0_14] : memref<128x128xbf16, #tpu.memory_space<vmem>>, vector<128x128xbf16>
    tpu.vector_store %arg8[%c0_13, %c0_14], %15 {strides = array<i32>} : memref<128x128xbf16, #tpu.memory_space<vmem>>, vector<128x128xbf16>,
    return
  }
  func.func @transform_0(%arg0: i32, %arg1: i32) -> (i32, i32) {
    %c0_i32 = arith.constant 0 : i32
    %c0_i32_0 = arith.constant 0 : i32
    return %arg0, %c0_i32 : i32, i32
  }
  func.func @transform_1(%arg0: i32, %arg1: i32) -> (i32, i32) {
    %c0_i32 = arith.constant 0 : i32
    %c0_i32_0 = arith.constant 0 : i32
    return %c0_i32, %arg1 : i32, i32
  }
  func.func @transform_2(%arg0: i32, %arg1: i32) -> (i32, i32) {
    %c0_i32 = arith.constant 0 : i32
    %c0_i32_0 = arith.constant 0 : i32
    return %c0_i32, %arg1 : i32, i32
  }
  func.func @transform_3(%arg0: i32, %arg1: i32) -> (i32, i32) {
    %c0_i32 = arith.constant 0 : i32
    %c0_i32_0 = arith.constant 0 : i32
    return %arg0, %c0_i32 : i32, i32
  }
  func.func @transform_4(%arg0: i32, %arg1: i32) -> (i32, i32) {
    %c0_i32 = arith.constant 0 : i32
    %c0_i32_0 = arith.constant 0 : i32
    return %c0_i32, %arg1 : i32, i32
  }
  func.func @transform_5(%arg0: i32, %arg1: i32) -> (i32, i32) {
    %c0_i32 = arith.constant 0 : i32
    %c0_i32_0 = arith.constant 0 : i32
    return %c0_i32, %arg1 : i32, i32
  }
  func.func @transform_6(%arg0: i32, %arg1: i32) -> (i32, i32) {
    %c0_i32 = arith.constant 0 : i32
    return %arg0, %arg1 : i32, i32
  }
}

</mosaic_0001>

<llo_original>
// kernel: bottleneck_forward.3
$region0: #{bottleneck_forward.3}
  #allocation0 [shape = 'u32[]', space=smem, size = 0x4, offset = 0x4, fixed_abs, tag = 'smem constant byte address 0x4 - core index']
  #allocation1 [shape = 'u32[144,128]{1,0:T(1,128)}', space=vmem, size = 0x12000, scoped, tag = 'internal scratch']
  %s0 = inlined_call_operand.vmem [shape: bf16[512,128], index: 0, kind: input, shape index: {}]
  %s1 = inlined_call_operand.vmem [shape: bf16[128,128], index: 1, kind: input, shape index: {}]
  %s2 = inlined_call_operand.vmem [shape: f32[1,128], index: 2, kind: input, shape index: {}]
  %s3 = inlined_call_operand.vmem [shape: bf16[512,128], index: 3, kind: output, shape index: {}]
  %s4 = sld [smem:[#allocation0]]
  $region22: #{bottleneck_forward.3} parent=0
    _
  %s6 = ssub.s32 1, %s4
  %s7 = scalar_select 0, %s6, %s4
  // Predicated region
  $region2: #{bottleneck_forward.3} parent=0 // pred_check
    _
  $region3: #{bottleneck_forward.3} parent=0 // pred_check_branch
    %9 = sbr.rel (0) target = $region5
  $region4: #{bottleneck_forward.3} parent=0 // pred_region
    _
  $region5: #{bottleneck_forward.3} parent=0 // pred_fallthru
    _
  // Predicated region
  $region6: #{bottleneck_forward.3} parent=0 // pred_check
    _
  $region7: #{bottleneck_forward.3} parent=0 // pred_check_branch
    %11 = sbr.rel (0) target = $region9
  $region8: #{bottleneck_forward.3} parent=0 // pred_region
    _
  $region9: #{bottleneck_forward.3} parent=0 // pred_fallthru
    _
  // Predicated region
  $region10: #{bottleneck_forward.3} parent=0 // pred_check
    _
  $region11: #{bottleneck_forward.3} parent=0 // pred_check_branch
    %13 = sbr.rel (0) target = $region13
  $region12: #{bottleneck_forward.3} parent=0 // pred_region
    _
  $region13: #{bottleneck_forward.3} parent=0 // pred_fallthru
    _
  %v15 = vld [vmem:[%s0] sm:$0xf]
  %v16 = vld [vmem:[%s0 + $0x4] sm:$0xf]
  %v17 = vld [vmem:[%s0 + $0x8] sm:$0xf]
  %v18 = vld [vmem:[%s0 + $0xc] sm:$0xf]
  %v19 = vld [vmem:[%s0 + $0x10] sm:$0xf]
  %v20 = vld [vmem:[%s0 + $0x14] sm:$0xf]
  %v21 = vld [vmem:[%s0 + $0x18] sm:$0xf]
  %v22 = vld [vmem:[%s0 + $0x1c] sm:$0xf]
  %v23 = vld [vmem:[%s0 + $0x20] sm:$0xf]
  %v24 = vld [vmem:[%s0 + $0x24] sm:$0xf]
  %v25 = vld [vmem:[%s0 + $0x28] sm:$0xf]
  %v26 = vld [vmem:[%s0 + $0x2c] sm:$0xf]
  %v27 = vld [vmem:[%s0 + $0x30] sm:$0xf]
  %v28 = vld [vmem:[%s0 + $0x34] sm:$0xf]
  %v29 = vld [vmem:[%s0 + $0x38] sm:$0xf]
  %v30 = vld [vmem:[%s0 + $0x3c] sm:$0xf]
  %v31 = vld [vmem:[%s0 + $0x40] sm:$0xf]
  %v32 = vld [vmem:[%s0 + $0x44] sm:$0xf]
  %v33 = vld [vmem:[%s0 + $0x48] sm:$0xf]
  %v34 = vld [vmem:[%s0 + $0x4c] sm:$0xf]
  %v35 = vld [vmem:[%s0 + $0x50] sm:$0xf]
  %v36 = vld [vmem:[%s0 + $0x54] sm:$0xf]
  %v37 = vld [vmem:[%s0 + $0x58] sm:$0xf]
  %v38 = vld [vmem:[%s0 + $0x5c] sm:$0xf]
  %v39 = vld [vmem:[%s0 + $0x60] sm:$0xf]
  %v40 = vld [vmem:[%s0 + $0x64] sm:$0xf]
  %v41 = vld [vmem:[%s0 + $0x68] sm:$0xf]
  %v42 = vld [vmem:[%s0 + $0x6c] sm:$0xf]
  %v43 = vld [vmem:[%s0 + $0x70] sm:$0xf]
  %v44 = vld [vmem:[%s0 + $0x74] sm:$0xf]
  %v45 = vld [vmem:[%s0 + $0x78] sm:$0xf]
  %v46 = vld [vmem:[%s0 + $0x7c] sm:$0xf]
  %v47 = vld [vmem:[%s0 + $0x80] sm:$0xf]
  %v48 = vld [vmem:[%s0 + $0x84] sm:$0xf]
  %v49 = vld [vmem:[%s0 + $0x88] sm:$0xf]
  %v50 = vld [vmem:[%s0 + $0x8c] sm:$0xf]
  %v51 = vld [vmem:[%s0 + $0x90] sm:$0xf]
  %v52 = vld [vmem:[%s0 + $0x94] sm:$0xf]
  %v53 = vld [vmem:[%s0 + $0x98] sm:$0xf]
  %v54 = vld [vmem:[%s0 + $0x9c] sm:$0xf]
  %v55 = vld [vmem:[%s0 + $0xa0] sm:$0xf]
  %v56 = vld [vmem:[%s0 + $0xa4] sm:$0xf]
  %v57 = vld [vmem:[%s0 + $0xa8] sm:$0xf]
  %v58 = vld [vmem:[%s0 + $0xac] sm:$0xf]
  %v59 = vld [vmem:[%s0 + $0xb0] sm:$0xf]
  %v60 = vld [vmem:[%s0 + $0xb4] sm:$0xf]
  %v61 = vld [vmem:[%s0 + $0xb8] sm:$0xf]
  %v62 = vld [vmem:[%s0 + $0xbc] sm:$0xf]
  %v63 = vld [vmem:[%s0 + $0xc0] sm:$0xf]
  %v64 = vld [vmem:[%s0 + $0xc4] sm:$0xf]
  %v65 = vld [vmem:[%s0 + $0xc8] sm:$0xf]
  %v66 = vld [vmem:[%s0 + $0xcc] sm:$0xf]
  %v67 = vld [vmem:[%s0 + $0xd0] sm:$0xf]
  %v68 = vld [vmem:[%s0 + $0xd4] sm:$0xf]
  %v69 = vld [vmem:[%s0 + $0xd8] sm:$0xf]
  %v70 = vld [vmem:[%s0 + $0xdc] sm:$0xf]
  %v71 = vld [vmem:[%s0 + $0xe0] sm:$0xf]
  %v72 = vld [vmem:[%s0 + $0xe4] sm:$0xf]
  %v73 = vld [vmem:[%s0 + $0xe8] sm:$0xf]
  %v74 = vld [vmem:[%s0 + $0xec] sm:$0xf]
  %v75 = vld [vmem:[%s0 + $0xf0] sm:$0xf]
  %v76 = vld [vmem:[%s0 + $0xf4] sm:$0xf]
  %v77 = vld [vmem:[%s0 + $0xf8] sm:$0xf]
  %v78 = vld [vmem:[%s0 + $0xfc] sm:$0xf]
  %v79 = vld [vmem:[%s1] sm:$0xf]
  %v80 = vld [vmem:[%s1 + $0x4] sm:$0xf]
  %v81 = vld [vmem:[%s1 + $0x8] sm:$0xf]
  %v82 = vld [vmem:[%s1 + $0xc] sm:$0xf]
  %v83 = vld [vmem:[%s1 + $0x10] sm:$0xf]
  %v84 = vld [vmem:[%s1 + $0x14] sm:$0xf]
  %v85 = vld [vmem:[%s1 + $0x18] sm:$0xf]
  %v86 = vld [vmem:[%s1 + $0x1c] sm:$0xf]
  %v87 = vld [vmem:[%s1 + $0x20] sm:$0xf]
  %v88 = vld [vmem:[%s1 + $0x24] sm:$0xf]
  %v89 = vld [vmem:[%s1 + $0x28] sm:$0xf]
  %v90 = vld [vmem:[%s1 + $0x2c] sm:$0xf]
  %v91 = vld [vmem:[%s1 + $0x30] sm:$0xf]
  %v92 = vld [vmem:[%s1 + $0x34] sm:$0xf]
  %v93 = vld [vmem:[%s1 + $0x38] sm:$0xf]
  %v94 = vld [vmem:[%s1 + $0x3c] sm:$0xf]
  %v95 = vld [vmem:[%s2] sm:$0x1]
  %v97 = vlaneseq
  %v98 = vshrl.u32 %v97, 7
  %v99 = vsub.s32 0, %v98
  %v100 = vrot.slane %v95, %v99
  %v166 = vunpack.c.l.b16 %v15
  %v167 = vunpack.c.l.b16 %v16
  %v168 = vunpack.c.l.b16 %v17
  %v169 = vunpack.c.l.b16 %v18
  %v170 = vunpack.c.l.b16 %v19
  %v171 = vunpack.c.l.b16 %v20
  %v172 = vunpack.c.l.b16 %v21
  %v173 = vunpack.c.l.b16 %v22
  %v174 = vunpack.c.l.b16 %v23
  %v175 = vunpack.c.l.b16 %v24
  %v176 = vunpack.c.l.b16 %v25
  %v177 = vunpack.c.l.b16 %v26
  %v178 = vunpack.c.l.b16 %v27
  %v179 = vunpack.c.l.b16 %v28
  %v180 = vunpack.c.l.b16 %v29
  %v181 = vunpack.c.l.b16 %v30
  %v182 = vunpack.c.l.b16 %v31
  %v183 = vunpack.c.l.b16 %v32
  %v184 = vunpack.c.l.b16 %v33
  %v185 = vunpack.c.l.b16 %v34
  %v186 = vunpack.c.l.b16 %v35
  %v187 = vunpack.c.l.b16 %v36
  %v188 = vunpack.c.l.b16 %v37
  %v189 = vunpack.c.l.b16 %v38
  %v190 = vunpack.c.l.b16 %v39
  %v191 = vunpack.c.l.b16 %v40
  %v192 = vunpack.c.l.b16 %v41
  %v193 = vunpack.c.l.b16 %v42
  %v194 = vunpack.c.l.b16 %v43
  %v195 = vunpack.c.l.b16 %v44
  %v196 = vunpack.c.l.b16 %v45
  %v197 = vunpack.c.l.b16 %v46
  %v198 = vunpack.c.l.b16 %v47
  %v199 = vunpack.c.l.b16 %v48
  %v200 = vunpack.c.l.b16 %v49
  %v201 = vunpack.c.l.b16 %v50
  %v202 = vunpack.c.l.b16 %v51
  %v203 = vunpack.c.l.b16 %v52
  %v204 = vunpack.c.l.b16 %v53
  %v205 = vunpack.c.l.b16 %v54
  %v206 = vunpack.c.l.b16 %v55
  %v207 = vunpack.c.l.b16 %v56
  %v208 = vunpack.c.l.b16 %v57
  %v209 = vunpack.c.l.b16 %v58
  %v210 = vunpack.c.l.b16 %v59
  %v211 = vunpack.c.l.b16 %v60
  %v212 = vunpack.c.l.b16 %v61
  %v213 = vunpack.c.l.b16 %v62
  %v214 = vunpack.c.l.b16 %v63
  %v215 = vunpack.c.l.b16 %v64
  %v216 = vunpack.c.l.b16 %v65
  %v217 = vunpack.c.l.b16 %v66
  %v218 = vunpack.c.l.b16 %v67
  %v219 = vunpack.c.l.b16 %v68
  %v220 = vunpack.c.l.b16 %v69
  %v221 = vunpack.c.l.b16 %v70
  %v222 = vunpack.c.l.b16 %v71
  %v223 = vunpack.c.l.b16 %v72
  %v224 = vunpack.c.l.b16 %v73
  %v225 = vunpack.c.l.b16 %v74
  %v226 = vunpack.c.l.b16 %v75
  %v227 = vunpack.c.l.b16 %v76
  %v228 = vunpack.c.l.b16 %v77
  %v229 = vunpack.c.l.b16 %v78
  %v230 = vpack.c.b16 %v167, %v166
  %v231 = vpack.c.b16 %v169, %v168
  %v232 = vpack.c.b16 %v171, %v170
  %v233 = vpack.c.b16 %v173, %v172
  %v234 = vpack.c.b16 %v175, %v174
  %v235 = vpack.c.b16 %v177, %v176
  %v236 = vpack.c.b16 %v179, %v178
  %v237 = vpack.c.b16 %v181, %v180
  %v238 = vpack.c.b16 %v183, %v182
  %v239 = vpack.c.b16 %v185, %v184
  %v240 = vpack.c.b16 %v187, %v186
  %v241 = vpack.c.b16 %v189, %v188
  %v242 = vpack.c.b16 %v191, %v190
  %v243 = vpack.c.b16 %v193, %v192
  %v244 = vpack.c.b16 %v195, %v194
  %v245 = vpack.c.b16 %v197, %v196
  %v246 = vpack.c.b16 %v199, %v198
  %v247 = vpack.c.b16 %v201, %v200
  %v248 = vpack.c.b16 %v203, %v202
  %v249 = vpack.c.b16 %v205, %v204
  %v250 = vpack.c.b16 %v207, %v206
  %v251 = vpack.c.b16 %v209, %v208
  %v252 = vpack.c.b16 %v211, %v210
  %v253 = vpack.c.b16 %v213, %v212
  %v254 = vpack.c.b16 %v215, %v214
  %v255 = vpack.c.b16 %v217, %v216
  %v256 = vpack.c.b16 %v219, %v218
  %v257 = vpack.c.b16 %v221, %v220
  %v258 = vpack.c.b16 %v223, %v222
  %v259 = vpack.c.b16 %v225, %v224
  %v260 = vpack.c.b16 %v227, %v226
  %v261 = vpack.c.b16 %v229, %v228
  %v310 = vunpack.c.l.b16 %v79
  %v311 = vunpack.c.l.b16 %v80
  %v312 = vunpack.c.l.b16 %v81
  %v313 = vunpack.c.l.b16 %v82
  %v314 = vunpack.c.l.b16 %v83
  %v315 = vunpack.c.l.b16 %v84
  %v316 = vunpack.c.l.b16 %v85
  %v317 = vunpack.c.l.b16 %v86
  %v318 = vunpack.c.l.b16 %v87
  %v319 = vunpack.c.l.b16 %v88
  %v320 = vunpack.c.l.b16 %v89
  %v321 = vunpack.c.l.b16 %v90
  %v322 = vunpack.c.l.b16 %v91
  %v323 = vunpack.c.l.b16 %v92
  %v324 = vunpack.c.l.b16 %v93
  %v325 = vunpack.c.l.b16 %v94
  %v326 = vpack.c.b16 %v311, %v310
  %v327 = vpack.c.b16 %v313, %v312
  %v328 = vpack.c.b16 %v315, %v314
  %v329 = vpack.c.b16 %v317, %v316
  %v330 = vpack.c.b16 %v319, %v318
  %v331 = vpack.c.b16 %v321, %v320
  %v332 = vpack.c.b16 %v323, %v322
  %v333 = vpack.c.b16 %v325, %v324
  %342 = vmatprep.subr.bf16.mxu0 0
  %343 = vmatpush1.bf16.msra.mxu0 %v333
  %344 = vmatprep.subr.bf16.mxu0 0
  %345 = vmatpush1.bf16.msra.mxu0 %v332
  %346 = vmatprep.subr.bf16.mxu0 0
  %347 = vmatpush1.bf16.msra.mxu0 %v331
  %348 = vmatprep.subr.bf16.mxu0 0
  %349 = vmatpush1.bf16.msra.mxu0 %v330
  %350 = vmatprep.subr.bf16.mxu0 0
  %351 = vmatpush1.bf16.msra.mxu0 %v329
  %352 = vmatprep.subr.bf16.mxu0 0
  %353 = vmatpush1.bf16.msra.mxu0 %v328
  %354 = vmatprep.subr.bf16.mxu0 0
  %355 = vmatpush1.bf16.msra.mxu0 %v327
  %356 = vmatprep.subr.bf16.mxu0 0
  %357 = vmatpush1.bf16.msra.mxu0 %v326
  %358 = vmatprep.subr.bf16.mxu0 0
  %359 = vmatpush2.bf16.msra.mxu0 0
  %360 = vmatprep.subr.bf16.mxu0 0
  %361 = vmatpush2.bf16.msra.mxu0 0
  %362 = vmatprep.subr.bf16.mxu0 0
  %363 = vmatpush2.bf16.msra.mxu0 0
  %364 = vmatprep.subr.bf16.mxu0 0
  %365 = vmatpush2.bf16.msra.mxu0 0
  %366 = vmatprep.subr.bf16.mxu0 0
  %367 = vmatpush2.bf16.msra.mxu0 0
  %368 = vmatprep.subr.bf16.mxu0 0
  %369 = vmatpush2.bf16.msra.mxu0 0
  %370 = vmatprep.subr.bf16.mxu0 0
  %371 = vmatpush2.bf16.msra.mxu0 0
  %372 = vmatprep.subr.bf16.mxu0 0
  %373 = vmatpush2.bf16.msra.mxu0 0
  %374 = vmatprep.mubr.bf16.mxu0 0
  %375 = vmatmul.mubr.bf16.gmra.mxu0 %v230
  %v376 = vpop.f32.mrf.mxu0
  %v377 = vadd.f32 %v100, %v376
  %v378 = vpop.f32.mrf.mxu0
  %v379 = vpop.f32.mrf.mxu0
  %v380 = vadd.f32 %v100, %v379
  %v381 = vpop.f32.mrf.mxu0
  %382 = vmatprep.mubr.bf16.mxu0 0
  %383 = vmatmul.mubr.bf16.gmra.mxu0 %v231
  %v384 = vpop.f32.mrf.mxu0
  %v385 = vadd.f32 %v100, %v384
  %v386 = vpop.f32.mrf.mxu0
  %v387 = vpop.f32.mrf.mxu0
  %v388 = vadd.f32 %v100, %v387
  %v389 = vpop.f32.mrf.mxu0
  %390 = vmatprep.mubr.bf16.mxu0 0
  %391 = vmatmul.mubr.bf16.gmra.mxu0 %v232
  %v392 = vpop.f32.mrf.mxu0
  %v393 = vadd.f32 %v100, %v392
  %v394 = vpop.f32.mrf.mxu0
  %v395 = vpop.f32.mrf.mxu0
  %v396 = vadd.f32 %v100, %v395
  %v397 = vpop.f32.mrf.mxu0
  %398 = vmatprep.mubr.bf16.mxu0 0
  %399 = vmatmul.mubr.bf16.gmra.mxu0 %v233
  %v400 = vpop.f32.mrf.mxu0
  %v401 = vadd.f32 %v100, %v400
  %v402 = vpop.f32.mrf.mxu0
  %v403 = vpop.f32.mrf.mxu0
  %v404 = vadd.f32 %v100, %v403
  %v405 = vpop.f32.mrf.mxu0
  %406 = vmatprep.mubr.bf16.mxu0 0
  %407 = vmatmul.mubr.bf16.gmra.mxu0 %v234
  %v408 = vpop.f32.mrf.mxu0
  %v409 = vadd.f32 %v100, %v408
  %v410 = vpop.f32.mrf.mxu0
  %v411 = vpop.f32.mrf.mxu0
  %v412 = vadd.f32 %v100, %v411
  %v413 = vpop.f32.mrf.mxu0
  %414 = vmatprep.mubr.bf16.mxu0 0
  %415 = vmatmul.mubr.bf16.gmra.mxu0 %v235
  %v416 = vpop.f32.mrf.mxu0
  %v417 = vadd.f32 %v100, %v416
  %v418 = vpop.f32.mrf.mxu0
  %v419 = vpop.f32.mrf.mxu0
  %v420 = vadd.f32 %v100, %v419
  %v421 = vpop.f32.mrf.mxu0
  %422 = vmatprep.mubr.bf16.mxu0 0
  %423 = vmatmul.mubr.bf16.gmra.mxu0 %v236
  %v424 = vpop.f32.mrf.mxu0
  %v425 = vadd.f32 %v100, %v424
  %v426 = vpop.f32.mrf.mxu0
  %v427 = vpop.f32.mrf.mxu0
  %v428 = vadd.f32 %v100, %v427
  %v429 = vpop.f32.mrf.mxu0
  %430 = vmatprep.mubr.bf16.mxu0 0
  %431 = vmatmul.mubr.bf16.gmra.mxu0 %v237
  %v432 = vpop.f32.mrf.mxu0
  %v433 = vadd.f32 %v100, %v432
  %v434 = vpop.f32.mrf.mxu0
  %v435 = vpop.f32.mrf.mxu0
  %v436 = vadd.f32 %v100, %v435
  %v437 = vpop.f32.mrf.mxu0
  %438 = vmatprep.mubr.bf16.mxu0 0
  %439 = vmatmul.mubr.bf16.gmra.mxu0 %v238
  %v440 = vpop.f32.mrf.mxu0
  %v441 = vadd.f32 %v100, %v440
  %v442 = vpop.f32.mrf.mxu0
  %v443 = vpop.f32.mrf.mxu0
  %v444 = vadd.f32 %v100, %v443
  %v445 = vpop.f32.mrf.mxu0
  %446 = vmatprep.mubr.bf16.mxu0 0
  %447 = vmatmul.mubr.bf16.gmra.mxu0 %v239
  %v448 = vpop.f32.mrf.mxu0
  %v449 = vadd.f32 %v100, %v448
  %v450 = vpop.f32.mrf.mxu0
  %v451 = vpop.f32.mrf.mxu0
  %v452 = vadd.f32 %v100, %v451
  %v453 = vpop.f32.mrf.mxu0
  %454 = vmatprep.mubr.bf16.mxu0 0
  %455 = vmatmul.mubr.bf16.gmra.mxu0 %v240
  %v456 = vpop.f32.mrf.mxu0
  %v457 = vadd.f32 %v100, %v456
  %v458 = vpop.f32.mrf.mxu0
  %v459 = vpop.f32.mrf.mxu0
  %v460 = vadd.f32 %v100, %v459
  %v461 = vpop.f32.mrf.mxu0
  %462 = vmatprep.mubr.bf16.mxu0 0
  %463 = vmatmul.mubr.bf16.gmra.mxu0 %v241
  %v464 = vpop.f32.mrf.mxu0
  %v465 = vadd.f32 %v100, %v464
  %v466 = vpop.f32.mrf.mxu0
  %v467 = vpop.f32.mrf.mxu0
  %v468 = vadd.f32 %v100, %v467
  %v469 = vpop.f32.mrf.mxu0
  %470 = vmatprep.mubr.bf16.mxu0 0
  %471 = vmatmul.mubr.bf16.gmra.mxu0 %v242
  %v472 = vpop.f32.mrf.mxu0
  %v473 = vadd.f32 %v100, %v472
  %v474 = vpop.f32.mrf.mxu0
  %v475 = vpop.f32.mrf.mxu0
  %v476 = vadd.f32 %v100, %v475
  %v477 = vpop.f32.mrf.mxu0
  %478 = vmatprep.mubr.bf16.mxu0 0
  %479 = vmatmul.mubr.bf16.gmra.mxu0 %v243
  %v480 = vpop.f32.mrf.mxu0
  %v481 = vadd.f32 %v100, %v480
  %v482 = vpop.f32.mrf.mxu0
  %v483 = vpop.f32.mrf.mxu0
  %v484 = vadd.f32 %v100, %v483
  %v485 = vpop.f32.mrf.mxu0
  %486 = vmatprep.mubr.bf16.mxu0 0
  %487 = vmatmul.mubr.bf16.gmra.mxu0 %v244
  %v488 = vpop.f32.mrf.mxu0
  %v489 = vadd.f32 %v100, %v488
  %v490 = vpop.f32.mrf.mxu0
  %v491 = vpop.f32.mrf.mxu0
  %v492 = vadd.f32 %v100, %v491
  %v493 = vpop.f32.mrf.mxu0
  %494 = vmatprep.mubr.bf16.mxu0 0
  %495 = vmatmul.mubr.bf16.gmra.mxu0 %v245
  %v496 = vpop.f32.mrf.mxu0
  %v497 = vadd.f32 %v100, %v496
  %v498 = vpop.f32.mrf.mxu0
  %v499 = vpop.f32.mrf.mxu0
  %v500 = vadd.f32 %v100, %v499
  %v501 = vpop.f32.mrf.mxu0
  %502 = vmatprep.mubr.bf16.mxu0 0
  %503 = vmatmul.mubr.bf16.gmra.mxu0 %v246
  %v504 = vpop.f32.mrf.mxu0
  %v505 = vadd.f32 %v100, %v504
  %v506 = vpop.f32.mrf.mxu0
  %v507 = vpop.f32.mrf.mxu0
  %v508 = vadd.f32 %v100, %v507
  %v509 = vpop.f32.mrf.mxu0
  %510 = vmatprep.mubr.bf16.mxu0 0
  %511 = vmatmul.mubr.bf16.gmra.mxu0 %v247
  %v512 = vpop.f32.mrf.mxu0
  %v513 = vadd.f32 %v100, %v512
  %v514 = vpop.f32.mrf.mxu0
  %v515 = vpop.f32.mrf.mxu0
  %v516 = vadd.f32 %v100, %v515
  %v517 = vpop.f32.mrf.mxu0
  %518 = vmatprep.mubr.bf16.mxu0 0
  %519 = vmatmul.mubr.bf16.gmra.mxu0 %v248
  %v520 = vpop.f32.mrf.mxu0
  %v521 = vadd.f32 %v100, %v520
  %v522 = vpop.f32.mrf.mxu0
  %v523 = vpop.f32.mrf.mxu0
  %v524 = vadd.f32 %v100, %v523
  %v525 = vpop.f32.mrf.mxu0
  %526 = vmatprep.mubr.bf16.mxu0 0
  %527 = vmatmul.mubr.bf16.gmra.mxu0 %v249
  %v528 = vpop.f32.mrf.mxu0
  %v529 = vadd.f32 %v100, %v528
  %v530 = vpop.f32.mrf.mxu0
  %v531 = vpop.f32.mrf.mxu0
  %v532 = vadd.f32 %v100, %v531
  %v533 = vpop.f32.mrf.mxu0
  %534 = vmatprep.mubr.bf16.mxu0 0
  %535 = vmatmul.mubr.bf16.gmra.mxu0 %v250
  %v536 = vpop.f32.mrf.mxu0
  %v537 = vadd.f32 %v100, %v536
  %v538 = vpop.f32.mrf.mxu0
  %v539 = vpop.f32.mrf.mxu0
  %v540 = vadd.f32 %v100, %v539
  %v541 = vpop.f32.mrf.mxu0
  %542 = vmatprep.mubr.bf16.mxu0 0
  %543 = vmatmul.mubr.bf16.gmra.mxu0 %v251
  %v544 = vpop.f32.mrf.mxu0
  %v545 = vadd.f32 %v100, %v544
  %v546 = vpop.f32.mrf.mxu0
  %v547 = vpop.f32.mrf.mxu0
  %v548 = vadd.f32 %v100, %v547
  %v549 = vpop.f32.mrf.mxu0
  %550 = vmatprep.mubr.bf16.mxu0 0
  %551 = vmatmul.mubr.bf16.gmra.mxu0 %v252
  %v552 = vpop.f32.mrf.mxu0
  %v553 = vadd.f32 %v100, %v552
  %v554 = vpop.f32.mrf.mxu0
  %v555 = vpop.f32.mrf.mxu0
  %v556 = vadd.f32 %v100, %v555
  %v557 = vpop.f32.mrf.mxu0
  %558 = vmatprep.mubr.bf16.mxu0 0
  %559 = vmatmul.mubr.bf16.gmra.mxu0 %v253
  %v560 = vpop.f32.mrf.mxu0
  %v561 = vadd.f32 %v100, %v560
  %v562 = vpop.f32.mrf.mxu0
  %v563 = vpop.f32.mrf.mxu0
  %v564 = vadd.f32 %v100, %v563
  %v565 = vpop.f32.mrf.mxu0
  %566 = vmatprep.mubr.bf16.mxu0 0
  %567 = vmatmul.mubr.bf16.gmra.mxu0 %v254
  %v568 = vpop.f32.mrf.mxu0
  %v569 = vadd.f32 %v100, %v568
  %v570 = vpop.f32.mrf.mxu0
  %v571 = vpop.f32.mrf.mxu0
  %v572 = vadd.f32 %v100, %v571
  %v573 = vpop.f32.mrf.mxu0
  %574 = vmatprep.mubr.bf16.mxu0 0
  %575 = vmatmul.mubr.bf16.gmra.mxu0 %v255
  %v576 = vpop.f32.mrf.mxu0
  %v577 = vadd.f32 %v100, %v576
  %v578 = vpop.f32.mrf.mxu0
  %v579 = vpop.f32.mrf.mxu0
  %v580 = vadd.f32 %v100, %v579
  %v581 = vpop.f32.mrf.mxu0
  %582 = vmatprep.mubr.bf16.mxu0 0
  %583 = vmatmul.mubr.bf16.gmra.mxu0 %v256
  %v584 = vpop.f32.mrf.mxu0
  %v585 = vadd.f32 %v100, %v584
  %v586 = vpop.f32.mrf.mxu0
  %v587 = vpop.f32.mrf.mxu0
  %v588 = vadd.f32 %v100, %v587
  %v589 = vpop.f32.mrf.mxu0
  %590 = vmatprep.mubr.bf16.mxu0 0
  %591 = vmatmul.mubr.bf16.gmra.mxu0 %v257
  %v592 = vpop.f32.mrf.mxu0
  %v593 = vadd.f32 %v100, %v592
  %v594 = vpop.f32.mrf.mxu0
  %v595 = vpop.f32.mrf.mxu0
  %v596 = vadd.f32 %v100, %v595
  %v597 = vpop.f32.mrf.mxu0
  %598 = vmatprep.mubr.bf16.mxu0 0
  %599 = vmatmul.mubr.bf16.gmra.mxu0 %v258
  %v600 = vpop.f32.mrf.mxu0
  %v601 = vadd.f32 %v100, %v600
  %v602 = vpop.f32.mrf.mxu0
  %v603 = vpop.f32.mrf.mxu0
  %v604 = vadd.f32 %v100, %v603
  %v605 = vpop.f32.mrf.mxu0
  %606 = vmatprep.mubr.bf16.mxu0 0
  %607 = vmatmul.mubr.bf16.gmra.mxu0 %v259
  %v608 = vpop.f32.mrf.mxu0
  %v609 = vadd.f32 %v100, %v608
  %v610 = vpop.f32.mrf.mxu0
  %v611 = vpop.f32.mrf.mxu0
  %v612 = vadd.f32 %v100, %v611
  %v613 = vpop.f32.mrf.mxu0
  %614 = vmatprep.mubr.bf16.mxu0 0
  %615 = vmatmul.mubr.bf16.gmra.mxu0 %v260
  %v616 = vpop.f32.mrf.mxu0
  %v617 = vadd.f32 %v100, %v616
  %v618 = vpop.f32.mrf.mxu0
  %v619 = vpop.f32.mrf.mxu0
  %v620 = vadd.f32 %v100, %v619
  %v621 = vpop.f32.mrf.mxu0
  %622 = vmatprep.mubr.bf16.mxu0 0
  %623 = vmatmul.mubr.bf16.gmra.mxu0 %v261
  %v624 = vpop.f32.mrf.mxu0
  %v625 = vadd.f32 %v100, %v624
  %v626 = vpop.f32.mrf.mxu0
  %v627 = vpop.f32.mrf.mxu0
  %v628 = vadd.f32 %v100, %v627
  %v629 = vpop.f32.mrf.mxu0
  %630 = vdwg.mxu0
  %v631 = vmax.f32 %v377, 0.0
  %v632 = vmax.f32 %v380, 0.0
  %v633 = vmax.f32 %v385, 0.0
  %v634 = vmax.f32 %v388, 0.0
  %v635 = vmax.f32 %v393, 0.0
  %v636 = vmax.f32 %v396, 0.0
  %v637 = vmax.f32 %v401, 0.0
  %v638 = vmax.f32 %v404, 0.0
  %v639 = vmax.f32 %v409, 0.0
  %v640 = vmax.f32 %v412, 0.0
  %v641 = vmax.f32 %v417, 0.0
  %v642 = vmax.f32 %v420, 0.0
  %v643 = vmax.f32 %v425, 0.0
  %v644 = vmax.f32 %v428, 0.0
  %v645 = vmax.f32 %v433, 0.0
  %v646 = vmax.f32 %v436, 0.0
  %v647 = vmax.f32 %v441, 0.0
  %v648 = vmax.f32 %v444, 0.0
  %v649 = vmax.f32 %v449, 0.0
  %v650 = vmax.f32 %v452, 0.0
  %v651 = vmax.f32 %v457, 0.0
  %v652 = vmax.f32 %v460, 0.0
  %v653 = vmax.f32 %v465, 0.0
  %v654 = vmax.f32 %v468, 0.0
  %v655 = vmax.f32 %v473, 0.0
  %v656 = vmax.f32 %v476, 0.0
  %v657 = vmax.f32 %v481, 0.0
  %v658 = vmax.f32 %v484, 0.0
  %v659 = vmax.f32 %v489, 0.0
  %v660 = vmax.f32 %v492, 0.0
  %v661 = vmax.f32 %v497, 0.0
  %v662 = vmax.f32 %v500, 0.0
  %v663 = vmax.f32 %v505, 0.0
  %v664 = vmax.f32 %v508, 0.0
  %v665 = vmax.f32 %v513, 0.0
  %v666 = vmax.f32 %v516, 0.0
  %v667 = vmax.f32 %v521, 0.0
  %v668 = vmax.f32 %v524, 0.0
  %v669 = vmax.f32 %v529, 0.0
  %v670 = vmax.f32 %v532, 0.0
  %v671 = vmax.f32 %v537, 0.0
  %v672 = vmax.f32 %v540, 0.0
  %v673 = vmax.f32 %v545, 0.0
  %v674 = vmax.f32 %v548, 0.0
  %v675 = vmax.f32 %v553, 0.0
  %v676 = vmax.f32 %v556, 0.0
  %v677 = vmax.f32 %v561, 0.0
  %v678 = vmax.f32 %v564, 0.0
  %v679 = vmax.f32 %v569, 0.0
  %v680 = vmax.f32 %v572, 0.0
  %v681 = vmax.f32 %v577, 0.0
  %v682 = vmax.f32 %v580, 0.0
  %v683 = vmax.f32 %v585, 0.0
  %v684 = vmax.f32 %v588, 0.0
  %v685 = vmax.f32 %v593, 0.0
  %v686 = vmax.f32 %v596, 0.0
  %v687 = vmax.f32 %v601, 0.0
  %v688 = vmax.f32 %v604, 0.0
  %v689 = vmax.f32 %v609, 0.0
  %v690 = vmax.f32 %v612, 0.0
  %v691 = vmax.f32 %v617, 0.0
  %v692 = vmax.f32 %v620, 0.0
  %v693 = vmax.f32 %v625, 0.0
  %v694 = vmax.f32 %v628, 0.0
  %v695 = vpack.c.bf16 %v632, %v631
  %v696 = vpack.c.bf16 %v634, %v633
  %v697 = vpack.c.bf16 %v636, %v635
  %v698 = vpack.c.bf16 %v638, %v637
  %v699 = vpack.c.bf16 %v640, %v639
  %v700 = vpack.c.bf16 %v642, %v641
  %v701 = vpack.c.bf16 %v644, %v643
  %v702 = vpack.c.bf16 %v646, %v645
  %v703 = vpack.c.bf16 %v648, %v647
  %v704 = vpack.c.bf16 %v650, %v649
  %v705 = vpack.c.bf16 %v652, %v651
  %v706 = vpack.c.bf16 %v654, %v653
  %v707 = vpack.c.bf16 %v656, %v655
  %v708 = vpack.c.bf16 %v658, %v657
  %v709 = vpack.c.bf16 %v660, %v659
  %v710 = vpack.c.bf16 %v662, %v661
  %v711 = vpack.c.bf16 %v664, %v663
  %v712 = vpack.c.bf16 %v666, %v665
  %v713 = vpack.c.bf16 %v668, %v667
  %v714 = vpack.c.bf16 %v670, %v669
  %v715 = vpack.c.bf16 %v672, %v671
  %v716 = vpack.c.bf16 %v674, %v673
  %v717 = vpack.c.bf16 %v676, %v675
  %v718 = vpack.c.bf16 %v678, %v677
  %v719 = vpack.c.bf16 %v680, %v679
  %v720 = vpack.c.bf16 %v682, %v681
  %v721 = vpack.c.bf16 %v684, %v683
  %v722 = vpack.c.bf16 %v686, %v685
  %v723 = vpack.c.bf16 %v688, %v687
  %v724 = vpack.c.bf16 %v690, %v689
  %v725 = vpack.c.bf16 %v692, %v691
  %v726 = vpack.c.bf16 %v694, %v693
  %v759 = vunpack.c.l.b16 %v695
  %v760 = vunpack.c.h.b16 %v695
  %v761 = vunpack.c.l.b16 %v696
  %v762 = vunpack.c.h.b16 %v696
  %v763 = vunpack.c.l.b16 %v697
  %v764 = vunpack.c.h.b16 %v697
  %v765 = vunpack.c.l.b16 %v698
  %v766 = vunpack.c.h.b16 %v698
  %v767 = vunpack.c.l.b16 %v699
  %v768 = vunpack.c.h.b16 %v699
  %v769 = vunpack.c.l.b16 %v700
  %v770 = vunpack.c.h.b16 %v700
  %v771 = vunpack.c.l.b16 %v701
  %v772 = vunpack.c.h.b16 %v701
  %v773 = vunpack.c.l.b16 %v702
  %v774 = vunpack.c.h.b16 %v702
  %v775 = vunpack.c.l.b16 %v703
  %v776 = vunpack.c.h.b16 %v703
  %v777 = vunpack.c.l.b16 %v704
  %v778 = vunpack.c.h.b16 %v704
  %v779 = vunpack.c.l.b16 %v705
  %v780 = vunpack.c.h.b16 %v705
  %v781 = vunpack.c.l.b16 %v706
  %v782 = vunpack.c.h.b16 %v706
  %v783 = vunpack.c.l.b16 %v707
  %v784 = vunpack.c.h.b16 %v707
  %v785 = vunpack.c.l.b16 %v708
  %v786 = vunpack.c.h.b16 %v708
  %v787 = vunpack.c.l.b16 %v709
  %v788 = vunpack.c.h.b16 %v709
  %v789 = vunpack.c.l.b16 %v710
  %v790 = vunpack.c.h.b16 %v710
  %v791 = vunpack.c.l.b16 %v711
  %v792 = vunpack.c.h.b16 %v711
  %v793 = vunpack.c.l.b16 %v712
  %v794 = vunpack.c.h.b16 %v712
  %v795 = vunpack.c.l.b16 %v713
  %v796 = vunpack.c.h.b16 %v713
  %v797 = vunpack.c.l.b16 %v714
  %v798 = vunpack.c.h.b16 %v714
  %v799 = vunpack.c.l.b16 %v715
  %v800 = vunpack.c.h.b16 %v715
  %v801 = vunpack.c.l.b16 %v716
  %v802 = vunpack.c.h.b16 %v716
  %v803 = vunpack.c.l.b16 %v717
  %v804 = vunpack.c.h.b16 %v717
  %v805 = vunpack.c.l.b16 %v718
  %v806 = vunpack.c.h.b16 %v718
  %v807 = vunpack.c.l.b16 %v719
  %v808 = vunpack.c.h.b16 %v719
  %v809 = vunpack.c.l.b16 %v720
  %v810 = vunpack.c.h.b16 %v720
  %v811 = vunpack.c.l.b16 %v721
  %v812 = vunpack.c.h.b16 %v721
  %v813 = vunpack.c.l.b16 %v722
  %v814 = vunpack.c.h.b16 %v722
  %v815 = vunpack.c.l.b16 %v723
  %v816 = vunpack.c.h.b16 %v723
  %v817 = vunpack.c.l.b16 %v724
  %v818 = vunpack.c.h.b16 %v724
  %v819 = vunpack.c.l.b16 %v725
  %v820 = vunpack.c.h.b16 %v725
  %v821 = vunpack.c.l.b16 %v726
  %v822 = vunpack.c.h.b16 %v726
  %v823 = vpack.c.b16 %v759, %v759
  %v824 = vpack.c.b16 %v760, %v760
  %v825 = vpack.c.b16 %v761, %v761
  %v826 = vpack.c.b16 %v762, %v762
  %v827 = vpack.c.b16 %v763, %v763
  %v828 = vpack.c.b16 %v764, %v764
  %v829 = vpack.c.b16 %v765, %v765
  %v830 = vpack.c.b16 %v766, %v766
  %v831 = vpack.c.b16 %v767, %v767
  %v832 = vpack.c.b16 %v768, %v768
  %v833 = vpack.c.b16 %v769, %v769
  %v834 = vpack.c.b16 %v770, %v770
  %v835 = vpack.c.b16 %v771, %v771
  %v836 = vpack.c.b16 %v772, %v772
  %v837 = vpack.c.b16 %v773, %v773
  %v838 = vpack.c.b16 %v774, %v774
  %v839 = vpack.c.b16 %v775, %v775
  %v840 = vpack.c.b16 %v776, %v776
  %v841 = vpack.c.b16 %v777, %v777
  %v842 = vpack.c.b16 %v778, %v778
  %v843 = vpack.c.b16 %v779, %v779
  %v844 = vpack.c.b16 %v780, %v780
  %v845 = vpack.c.b16 %v781, %v781
  %v846 = vpack.c.b16 %v782, %v782
  %v847 = vpack.c.b16 %v783, %v783
  %v848 = vpack.c.b16 %v784, %v784
  %v849 = vpack.c.b16 %v785, %v785
  %v850 = vpack.c.b16 %v786, %v786
  %v851 = vpack.c.b16 %v787, %v787
  %v852 = vpack.c.b16 %v788, %v788
  %v853 = vpack.c.b16 %v789, %v789
  %v854 = vpack.c.b16 %v790, %v790
  %v855 = vpack.c.b16 %v791, %v791
  %v856 = vpack.c.b16 %v792, %v792
  %v857 = vpack.c.b16 %v793, %v793
  %v858 = vpack.c.b16 %v794, %v794
  %v859 = vpack.c.b16 %v795, %v795
  %v860 = vpack.c.b16 %v796, %v796
  %v861 = vpack.c.b16 %v797, %v797
  %v862 = vpack.c.b16 %v798, %v798
  %v863 = vpack.c.b16 %v799, %v799
  %v864 = vpack.c.b16 %v800, %v800
  %v865 = vpack.c.b16 %v801, %v801
  %v866 = vpack.c.b16 %v802, %v802
  %v867 = vpack.c.b16 %v803, %v803
  %v868 = vpack.c.b16 %v804, %v804
  %v869 = vpack.c.b16 %v805, %v805
  %v870 = vpack.c.b16 %v806, %v806
  %v871 = vpack.c.b16 %v807, %v807
  %v872 = vpack.c.b16 %v808, %v808
  %v873 = vpack.c.b16 %v809, %v809
  %v874 = vpack.c.b16 %v810, %v810
  %v875 = vpack.c.b16 %v811, %v811
  %v876 = vpack.c.b16 %v812, %v812
  %v877 = vpack.c.b16 %v813, %v813
  %v878 = vpack.c.b16 %v814, %v814
  %v879 = vpack.c.b16 %v815, %v815
  %v880 = vpack.c.b16 %v816, %v816
  %v881 = vpack.c.b16 %v817, %v817
  %v882 = vpack.c.b16 %v818, %v818
  %v883 = vpack.c.b16 %v819, %v819
  %v884 = vpack.c.b16 %v820, %v820
  %v885 = vpack.c.b16 %v821, %v821
  %v886 = vpack.c.b16 %v822, %v822
  %951 = vst [vmem:[%s3] sm:$0xf] %v823
  %952 = vst [vmem:[%s3 + $0x4] sm:$0xf] %v824
  %953 = vst [vmem:[%s3 + $0x8] sm:$0xf] %v825
  %954 = vst [vmem:[%s3 + $0xc] sm:$0xf] %v826
  %955 = vst [vmem:[%s3 + $0x10] sm:$0xf] %v827
  %956 = vst [vmem:[%s3 + $0x14] sm:$0xf] %v828
  %957 = vst [vmem:[%s3 + $0x18] sm:$0xf] %v829
  %958 = vst [vmem:[%s3 + $0x1c] sm:$0xf] %v830
  %959 = vst [vmem:[%s3 + $0x20] sm:$0xf] %v831
  %960 = vst [vmem:[%s3 + $0x24] sm:$0xf] %v832
  %961 = vst [vmem:[%s3 + $0x28] sm:$0xf] %v833
  %962 = vst [vmem:[%s3 + $0x2c] sm:$0xf] %v834
  %963 = vst [vmem:[%s3 + $0x30] sm:$0xf] %v835
  %964 = vst [vmem:[%s3 + $0x34] sm:$0xf] %v836
  %965 = vst [vmem:[%s3 + $0x38] sm:$0xf] %v837
  %966 = vst [vmem:[%s3 + $0x3c] sm:$0xf] %v838
  %967 = vst [vmem:[%s3 + $0x40] sm:$0xf] %v839
  %968 = vst [vmem:[%s3 + $0x44] sm:$0xf] %v840
  %969 = vst [vmem:[%s3 + $0x48] sm:$0xf] %v841
  %970 = vst [vmem:[%s3 + $0x4c] sm:$0xf] %v842
  %971 = vst [vmem:[%s3 + $0x50] sm:$0xf] %v843
  %972 = vst [vmem:[%s3 + $0x54] sm:$0xf] %v844
  %973 = vst [vmem:[%s3 + $0x58] sm:$0xf] %v845
  %974 = vst [vmem:[%s3 + $0x5c] sm:$0xf] %v846
  %975 = vst [vmem:[%s3 + $0x60] sm:$0xf] %v847
  %976 = vst [vmem:[%s3 + $0x64] sm:$0xf] %v848
  %977 = vst [vmem:[%s3 + $0x68] sm:$0xf] %v849
  %978 = vst [vmem:[%s3 + $0x6c] sm:$0xf] %v850
  %979 = vst [vmem:[%s3 + $0x70] sm:$0xf] %v851
  %980 = vst [vmem:[%s3 + $0x74] sm:$0xf] %v852
  %981 = vst [vmem:[%s3 + $0x78] sm:$0xf] %v853
  %982 = vst [vmem:[%s3 + $0x7c] sm:$0xf] %v854
  %983 = vst [vmem:[%s3 + $0x80] sm:$0xf] %v855
  %984 = vst [vmem:[%s3 + $0x84] sm:$0xf] %v856
  %985 = vst [vmem:[%s3 + $0x88] sm:$0xf] %v857
  %986 = vst [vmem:[%s3 + $0x8c] sm:$0xf] %v858
  %987 = vst [vmem:[%s3 + $0x90] sm:$0xf] %v859
  %988 = vst [vmem:[%s3 + $0x94] sm:$0xf] %v860
  %989 = vst [vmem:[%s3 + $0x98] sm:$0xf] %v861
  %990 = vst [vmem:[%s3 + $0x9c] sm:$0xf] %v862
  %991 = vst [vmem:[%s3 + $0xa0] sm:$0xf] %v863
  %992 = vst [vmem:[%s3 + $0xa4] sm:$0xf] %v864
  %993 = vst [vmem:[%s3 + $0xa8] sm:$0xf] %v865
  %994 = vst [vmem:[%s3 + $0xac] sm:$0xf] %v866
  %995 = vst [vmem:[%s3 + $0xb0] sm:$0xf] %v867
  %996 = vst [vmem:[%s3 + $0xb4] sm:$0xf] %v868
  %997 = vst [vmem:[%s3 + $0xb8] sm:$0xf] %v869
  %998 = vst [vmem:[%s3 + $0xbc] sm:$0xf] %v870
  %999 = vst [vmem:[%s3 + $0xc0] sm:$0xf] %v871
  %1000 = vst [vmem:[%s3 + $0xc4] sm:$0xf] %v872
  %1001 = vst [vmem:[%s3 + $0xc8] sm:$0xf] %v873
  %1002 = vst [vmem:[%s3 + $0xcc] sm:$0xf] %v874
  %1003 = vst [vmem:[%s3 + $0xd0] sm:$0xf] %v875
  %1004 = vst [vmem:[%s3 + $0xd4] sm:$0xf] %v876
  %1005 = vst [vmem:[%s3 + $0xd8] sm:$0xf] %v877
  %1006 = vst [vmem:[%s3 + $0xdc] sm:$0xf] %v878
  %1007 = vst [vmem:[%s3 + $0xe0] sm:$0xf] %v879
  %1008 = vst [vmem:[%s3 + $0xe4] sm:$0xf] %v880
  %1009 = vst [vmem:[%s3 + $0xe8] sm:$0xf] %v881
  %1010 = vst [vmem:[%s3 + $0xec] sm:$0xf] %v882
  %1011 = vst [vmem:[%s3 + $0xf0] sm:$0xf] %v883
  %1012 = vst [vmem:[%s3 + $0xf4] sm:$0xf] %v884
  %1013 = vst [vmem:[%s3 + $0xf8] sm:$0xf] %v885
  %1014 = vst [vmem:[%s3 + $0xfc] sm:$0xf] %v886
  // Predicated region
  $region14: #{bottleneck_forward.3} parent=0 // pred_check
    _
  $region15: #{bottleneck_forward.3} parent=0 // pred_check_branch
    %1016 = sbr.rel (0) target = $region17
  $region16: #{bottleneck_forward.3} parent=0 // pred_region
    _
  $region17: #{bottleneck_forward.3} parent=0 // pred_fallthru
    _
  // Predicated region
  $region18: #{bottleneck_forward.3} parent=0 // pred_check
    _
  $region19: #{bottleneck_forward.3} parent=0 // pred_check_branch
    %1018 = sbr.rel (0) target = $region21
  $region20: #{bottleneck_forward.3} parent=0 // pred_region
    _
  $region21: #{bottleneck_forward.3} parent=0 // pred_fallthru
    _

// kernel: bottleneck_forward.4
$region0: #{bottleneck_forward.4}
  #allocation0 [shape = 'u32[]', space=smem, size = 0x4, offset = 0x4, fixed_abs, tag = 'smem constant byte address 0x4 - core index']
  #allocation1 [shape = 'u32[144,128]{1,0:T(1,128)}', space=vmem, size = 0x12000, scoped, tag = 'internal scratch']
  #allocation2 [shape = 'f32[64,128]{1,0:T(8,128)}', space=vmem, size = 0x8000, scoped, tag = 'scratch operand']
  %s0 = inlined_call_operand.vmem [shape: bf16[2,4,9,9,128], index: 0, kind: input, shape index: {}]
  %s1 = inlined_call_operand.vmem [shape: bf16[9,128,128], index: 1, kind: input, shape index: {}]
  %s2 = inlined_call_operand.vmem [shape: f32[1,128], index: 2, kind: input, shape index: {}]
  %s3 = inlined_call_operand.vmem [shape: bf16[2,64,128], index: 3, kind: output, shape index: {}]
  %s4 = sld [smem:[#allocation0]]
  $region45: #{bottleneck_forward.4} parent=0
    _
  %s6 = ssub.s32 1, %s4
  %s7 = scalar_select 0, %s6, %s4
  loop: start=0, step=1, limit=4
  $region2: #{bottleneck_forward.4} parent=0 // loop_pre_header
    _
  $region3: #{bottleneck_forward.4} parent=0 // loop_header
    %s9 = sphi 0, %s13
    %p10 = scmp.ge.s32.totalorder %s9, 4
    %s16 = sphi 0, %s28
    %s17 = sphi 0, %s24
    %s18 = sphi 0, %s16
    %s19 = sphi 0, %s17
    %s20 = sphi 0, %s18
    %s21 = sphi 0, %s19
    %s31 = sphi 0, %s33
    %s34 = sphi 0, %s31
    %s35 = sphi 0, %s34
    %s51 = sphi 0, %s35
    %s55 = sphi 0, %s55
    %s57 = sphi 0, %s55
    %s58 = sphi 0, %s57
    %s72 = sphi 0, %s58
    %s76 = sphi 0, %s76
    %s78 = sphi 0, %s76
    %s79 = sphi 0, %s78
    %s93 = sphi 0, %s79
    %s101 = sphi 0, %s103
    %s104 = sphi 0, %s101
    %s105 = sphi 0, %s104
    %s121 = sphi 0, %s105
  $region4: #{bottleneck_forward.4} parent=0 // loop_header_branch
    %12 = sbr.rel (%p10) target = $region8
  $region5: #{bottleneck_forward.4} parent=0 // loop_body
    %s14 = ssub.s32 %s9, 1
    %s15 = ssub.s32 %s9, 2
    %s22 = sadd.s32 1, %s17
    %p23 = scmp.ge.s32.totalorder %s22, 1
    %s24 = scalar_select %p23, 0, %s22
    %s25 = sadd.s32 1, %s16
    %s26 = scalar_select %p23, %s25, %s16
    %p27 = scmp.ge.s32.totalorder %s26, 2
    %s28 = scalar_select %p27, 0, %s26
    %s29 = ssub.s32 %s16, %s28
    %p30 = scmp.eq.s32.totalorder %s29, 0
    %s32 = sadd.s32 %s31, 1
    %s33 = scalar_select %p30, %s31, %s32
    %p36 = pneg %p30
    %p37 = scmp.eq.s32.totalorder %s9, 1
    %p38 = por %p36, %p37
    %p39 = scmp.ne.s32.totalorder %s31, %s34
    %p40 = scmp.eq.s32.totalorder %s9, 0
    %p41 = por %p39, %p40
    %p42 = scmp.ne.s32.totalorder %s31, %s34
    %p43 = scmp.eq.s32.totalorder %s14, 1
    %p44 = por %p42, %p43
    %p45 = scmp.ne.s32.totalorder %s34, %s35
    %p46 = scmp.eq.s32.totalorder %s14, 0
    %p47 = por %p45, %p46
    %p48 = scmp.ne.s32.totalorder %s34, %s35
    %p49 = scmp.eq.s32.totalorder %s15, 1
    %p50 = por %p48, %p49
    %p52 = scmp.ne.s32.totalorder %s35, %s51
    %p53 = scmp.eq.s32.totalorder %s15, 0
    %p54 = por %p52, %p53
    %s56 = sadd.s32 %s55, 1
    %p59 = scmp.eq.s32.totalorder %s9, 1
    %p60 = scmp.ne.s32.totalorder %s55, %s57
    %p61 = scmp.eq.s32.totalorder %s9, 0
    %p62 = por %p60, %p61
    %p63 = scmp.ne.s32.totalorder %s55, %s57
    %p64 = scmp.eq.s32.totalorder %s14, 1
    %p65 = por %p63, %p64
    %p66 = scmp.ne.s32.totalorder %s57, %s58
    %p67 = scmp.eq.s32.totalorder %s14, 0
    %p68 = por %p66, %p67
    %p69 = scmp.ne.s32.totalorder %s57, %s58
    %p70 = scmp.eq.s32.totalorder %s15, 1
    %p71 = por %p69, %p70
    %p73 = scmp.ne.s32.totalorder %s58, %s72
    %p74 = scmp.eq.s32.totalorder %s15, 0
    %p75 = por %p73, %p74
    %s77 = sadd.s32 %s76, 1
    %p80 = scmp.eq.s32.totalorder %s9, 1
    %p81 = scmp.ne.s32.totalorder %s76, %s78
    %p82 = scmp.eq.s32.totalorder %s9, 0
    %p83 = por %p81, %p82
    %p84 = scmp.ne.s32.totalorder %s76, %s78
    %p85 = scmp.eq.s32.totalorder %s14, 1
    %p86 = por %p84, %p85
    %p87 = scmp.ne.s32.totalorder %s78, %s79
    %p88 = scmp.eq.s32.totalorder %s14, 0
    %p89 = por %p87, %p88
    %p90 = scmp.ne.s32.totalorder %s78, %s79
    %p91 = scmp.eq.s32.totalorder %s15, 1
    %p92 = por %p90, %p91
    %p94 = scmp.ne.s32.totalorder %s79, %s93
    %p95 = scmp.eq.s32.totalorder %s15, 0
    %p96 = por %p94, %p95
    %s97 = ssub.s32 %s16, %s28
    %s98 = ssub.s32 %s17, %s24
    %s99 = sor.u32 %s97, %s98
    %p100 = scmp.eq.s32.totalorder %s99, 0
    %s102 = sadd.s32 %s101, 1
    %s103 = scalar_select %p100, %s101, %s102
    %p106 = pneg %p100
    %p107 = scmp.eq.s32.totalorder %s9, 1
    %p108 = por %p106, %p107
    %p109 = scmp.ne.s32.totalorder %s101, %s104
    %p110 = scmp.eq.s32.totalorder %s9, 0
    %p111 = por %p109, %p110
    %p112 = scmp.ne.s32.totalorder %s101, %s104
    %p113 = scmp.eq.s32.totalorder %s14, 1
    %p114 = por %p112, %p113
    %p115 = scmp.ne.s32.totalorder %s104, %s105
    %p116 = scmp.eq.s32.totalorder %s14, 0
    %p117 = por %p115, %p116
    %p118 = scmp.ne.s32.totalorder %s104, %s105
    %p119 = scmp.eq.s32.totalorder %s15, 1
    %p120 = por %p118, %p119
    %p122 = scmp.ne.s32.totalorder %s105, %s121
    %p123 = scmp.eq.s32.totalorder %s15, 0
    %p124 = por %p122, %p123
    %p125 = scmp.le.s32.totalorder 1, %s9
    %p126 = scmp.lt.s32.totalorder %s9, 3
    %p127 = pnand %p125, %p126
    %p128 = pneg %p127
    // Predicated region
    $region9: #{bottleneck_forward.4} parent=5 // pred_check
      _
    $region10: #{bottleneck_forward.4} parent=5 // pred_check_branch
      %130 = sbr.rel (%p127) target = $region12
    $region11: #{bottleneck_forward.4} parent=5 // pred_region
      %s131 = ssub.s32 %s9, 1
      // Predicated region
      $region13: #{bottleneck_forward.4} parent=11 // pred_check
        %p132 = pneg %p68
      $region14: #{bottleneck_forward.4} parent=11 // pred_check_branch
        %134 = sbr.rel (%p132) target = $region16
      $region15: #{bottleneck_forward.4} parent=11 // pred_region
        _
      $region16: #{bottleneck_forward.4} parent=11 // pred_fallthru
        _
      // Predicated region
      $region17: #{bottleneck_forward.4} parent=11 // pred_check
        %p135 = pneg %p89
      $region18: #{bottleneck_forward.4} parent=11 // pred_check_branch
        %137 = sbr.rel (%p135) target = $region20
      $region19: #{bottleneck_forward.4} parent=11 // pred_region
        _
      $region20: #{bottleneck_forward.4} parent=11 // pred_fallthru
        _
    $region12: #{bottleneck_forward.4} parent=5 // pred_fallthru
      _
    %p138 = scmp.lt.s32.totalorder %s9, 2
    // Predicated region
    $region21: #{bottleneck_forward.4} parent=5 // pred_check
      %p139 = pneg %p138
    $region22: #{bottleneck_forward.4} parent=5 // pred_check_branch
      %141 = sbr.rel (%p139) target = $region24
    $region23: #{bottleneck_forward.4} parent=5 // pred_region
      // Predicated region
      $region25: #{bottleneck_forward.4} parent=23 // pred_check
        %p142 = pneg %p41
      $region26: #{bottleneck_forward.4} parent=23 // pred_check_branch
        %144 = sbr.rel (%p142) target = $region28
      $region27: #{bottleneck_forward.4} parent=23 // pred_region
        %p145 = scmp.lt.s32.totalorder %s16, 1
        %s146 = scalar_select %p145, %s16, 1
        %s147 = smul.addr %s146, 72
        %s148 = smul.addr %s147, 4
        %s149 = scalar_lea.vmem %s0, %s148
      $region28: #{bottleneck_forward.4} parent=23 // pred_fallthru
        _
    $region24: #{bottleneck_forward.4} parent=5 // pred_fallthru
      _
    %p150 = scmp.le.s32.totalorder 1, %s9
    %p151 = scmp.lt.s32.totalorder %s9, 3
    %p152 = pnand %p150, %p151
    %p153 = pneg %p152
    // Predicated region
    $region29: #{bottleneck_forward.4} parent=5 // pred_check
      _
    $region30: #{bottleneck_forward.4} parent=5 // pred_check_branch
      %155 = sbr.rel (%p152) target = $region32
    $region31: #{bottleneck_forward.4} parent=5 // pred_region
      %s156 = ssub.s32 %s9, 1
      %p157 = scmp.lt.s32.totalorder %s18, 1
      %s158 = scalar_select %p157, %s18, 1
      %s159 = smul.addr %s158, 72
      %s160 = smul.addr %s159, 4
      %s161 = scalar_lea.vmem %s0, %s160
      %p162 = pneg %p47
      %p163 = pneg %p44
      %p164 = pneg %p68
      %p165 = pneg %p65
      %p166 = pneg %p89
      %p167 = pneg %p86
      %p168 = pneg %p117
      %p169 = pneg %p114
      %s170 = smul.u32 8, %s19
      %p171 = scmp.lt.s32.totalorder %s18, 1
      %s172 = scalar_select %p171, %s18, 1
      %p173 = scmp.lt.s32.totalorder %s170, 7
      %s174 = scalar_select %p173, %s170, 7
      %s175 = smul.addr %s172, 8
      %s176 = sadd.s32 %s174, %s175
      %s177 = smul.addr %s176, 4
      %s178 = scalar_lea.vmem %s3, %s177
      %p179 = scmp.lt.s32.totalorder %s18, 1
      %s180 = scalar_select %p179, %s18, 1
      %s181 = smul.addr %s180, 72
      %s182 = smul.addr %s181, 4
      %s183 = scalar_lea.vmem %s0, %s182
      %s184 = smul.u32 8, %s19
      %p185 = scmp.lt.s32.totalorder %s18, 1
      %s186 = scalar_select %p185, %s18, 1
      %p187 = scmp.lt.s32.totalorder %s184, 7
      %s188 = scalar_select %p187, %s184, 7
      %s189 = smul.addr %s186, 8
      %s190 = sadd.s32 %s188, %s189
      %s191 = smul.addr %s190, 4
      %s192 = scalar_lea.vmem %s3, %s191
      %s193 = smul.u32 8, %s19
      %v195 = vld [vmem:[%s183] sm:$0xf]
      %v196 = vld [vmem:[%s183 + $0x8] sm:$0xf]
      %v197 = vld [vmem:[%s183 + $0x10] sm:$0xf]
      %v198 = vld [vmem:[%s183 + $0x18] sm:$0xf]
      %v199 = vld [vmem:[%s183 + $0x20] sm:$0xf]
      %v200 = vld [vmem:[%s183 + $0x28] sm:$0xf]
      %v201 = vld [vmem:[%s183 + $0x30] sm:$0xf]
      %v202 = vld [vmem:[%s183 + $0x38] sm:$0xf]
      %v203 = vld [vmem:[%s183 + $0x40] sm:$0xf]
      %v204 = vld [vmem:[%s1] sm:$0xf]
      %v205 = vld [vmem:[%s1 + $0x4] sm:$0xf]
      %v206 = vld [vmem:[%s1 + $0x8] sm:$0xf]
      %v207 = vld [vmem:[%s1 + $0xc] sm:$0xf]
      %v208 = vld [vmem:[%s1 + $0x10] sm:$0xf]
      %v209 = vld [vmem:[%s1 + $0x14] sm:$0xf]
      %v210 = vld [vmem:[%s1 + $0x18] sm:$0xf]
      %v211 = vld [vmem:[%s1 + $0x1c] sm:$0xf]
      %v212 = vld [vmem:[%s1 + $0x20] sm:$0xf]
      %v213 = vld [vmem:[%s1 + $0x24] sm:$0xf]
      %v214 = vld [vmem:[%s1 + $0x28] sm:$0xf]
      %v215 = vld [vmem:[%s1 + $0x2c] sm:$0xf]
      %v216 = vld [vmem:[%s1 + $0x30] sm:$0xf]
      %v217 = vld [vmem:[%s1 + $0x34] sm:$0xf]
      %v218 = vld [vmem:[%s1 + $0x38] sm:$0xf]
      %v219 = vld [vmem:[%s1 + $0x3c] sm:$0xf]
      %v228 = vunpack.c.l.b16 %v195
      %v229 = vunpack.c.l.b16 %v196
      %v230 = vunpack.c.l.b16 %v197
      %v231 = vunpack.c.l.b16 %v198
      %v232 = vunpack.c.l.b16 %v199
      %v233 = vunpack.c.l.b16 %v200
      %v234 = vunpack.c.l.b16 %v201
      %v235 = vunpack.c.l.b16 %v202
      %v236 = vpack.c.b16 %v229, %v228
      %v237 = vpack.c.b16 %v231, %v230
      %v238 = vpack.c.b16 %v233, %v232
      %v239 = vpack.c.b16 %v235, %v234
      %v260 = vunpack.c.l.b16 %v204
      %v261 = vunpack.c.l.b16 %v205
      %v262 = vunpack.c.l.b16 %v206
      %v263 = vunpack.c.l.b16 %v207
      %v264 = vunpack.c.l.b16 %v208
      %v265 = vunpack.c.l.b16 %v209
      %v266 = vunpack.c.l.b16 %v210
      %v267 = vunpack.c.l.b16 %v211
      %v268 = vunpack.c.l.b16 %v212
      %v269 = vunpack.c.l.b16 %v213
      %v270 = vunpack.c.l.b16 %v214
      %v271 = vunpack.c.l.b16 %v215
      %v272 = vunpack.c.l.b16 %v216
      %v273 = vunpack.c.l.b16 %v217
      %v274 = vunpack.c.l.b16 %v218
      %v275 = vunpack.c.l.b16 %v219
      %v276 = vpack.c.b16 %v261, %v260
      %v277 = vpack.c.b16 %v263, %v262
      %v278 = vpack.c.b16 %v265, %v264
      %v279 = vpack.c.b16 %v267, %v266
      %v280 = vpack.c.b16 %v269, %v268
      %v281 = vpack.c.b16 %v271, %v270
      %v282 = vpack.c.b16 %v273, %v272
      %v283 = vpack.c.b16 %v275, %v274
      %292 = vmatprep.subr.bf16.mxu0 0
      %293 = vmatpush1.bf16.msra.mxu0 %v283
      %294 = vmatprep.subr.bf16.mxu0 0
      %295 = vmatpush1.bf16.msra.mxu0 %v282
      %296 = vmatprep.subr.bf16.mxu0 0
      %297 = vmatpush1.bf16.msra.mxu0 %v281
      %298 = vmatprep.subr.bf16.mxu0 0
      %299 = vmatpush1.bf16.msra.mxu0 %v280
      %300 = vmatprep.subr.bf16.mxu0 0
      %301 = vmatpush1.bf16.msra.mxu0 %v279
      %302 = vmatprep.subr.bf16.mxu0 0
      %303 = vmatpush1.bf16.msra.mxu0 %v278
      %304 = vmatprep.subr.bf16.mxu0 0
      %305 = vmatpush1.bf16.msra.mxu0 %v277
      %306 = vmatprep.subr.bf16.mxu0 0
      %307 = vmatpush1.bf16.msra.mxu0 %v276
      %308 = vmatprep.subr.bf16.mxu0 0
      %309 = vmatpush2.bf16.msra.mxu0 0
      %310 = vmatprep.subr.bf16.mxu0 0
      %311 = vmatpush2.bf16.msra.mxu0 0
      %312 = vmatprep.subr.bf16.mxu0 0
      %313 = vmatpush2.bf16.msra.mxu0 0
      %314 = vmatprep.subr.bf16.mxu0 0
      %315 = vmatpush2.bf16.msra.mxu0 0
      %316 = vmatprep.subr.bf16.mxu0 0
      %317 = vmatpush2.bf16.msra.mxu0 0
      %318 = vmatprep.subr.bf16.mxu0 0
      %319 = vmatpush2.bf16.msra.mxu0 0
      %320 = vmatprep.subr.bf16.mxu0 0
      %321 = vmatpush2.bf16.msra.mxu0 0
      %322 = vmatprep.subr.bf16.mxu0 0
      %323 = vmatpush2.bf16.msra.mxu0 0
      %324 = vmatprep.mubr.bf16.mxu0 0
      %325 = vmatmul.mubr.bf16.gmra.mxu0 %v236
      %v326 = vpop.f32.mrf.mxu0
      %v327 = vadd.f32 0.0, %v326
      %v328 = vpop.f32.mrf.mxu0
      %v329 = vpop.f32.mrf.mxu0
      %v330 = vadd.f32 0.0, %v329
      %v331 = vpop.f32.mrf.mxu0
      %332 = vmatprep.mubr.bf16.mxu0 0
      %333 = vmatmul.mubr.bf16.gmra.mxu0 %v237
      %v334 = vpop.f32.mrf.mxu0
      %v335 = vadd.f32 0.0, %v334
      %v336 = vpop.f32.mrf.mxu0
      %v337 = vpop.f32.mrf.mxu0
      %v338 = vadd.f32 0.0, %v337
      %v339 = vpop.f32.mrf.mxu0
      %340 = vmatprep.mubr.bf16.mxu0 0
      %341 = vmatmul.mubr.bf16.gmra.mxu0 %v238
      %v342 = vpop.f32.mrf.mxu0
      %v343 = vadd.f32 0.0, %v342
      %v344 = vpop.f32.mrf.mxu0
      %v345 = vpop.f32.mrf.mxu0
      %v346 = vadd.f32 0.0, %v345
      %v347 = vpop.f32.mrf.mxu0
      %348 = vmatprep.mubr.bf16.mxu0 0
      %349 = vmatmul.mubr.bf16.gmra.mxu0 %v239
      %v350 = vpop.f32.mrf.mxu0
      %v351 = vadd.f32 0.0, %v350
      %v352 = vpop.f32.mrf.mxu0
      %v353 = vpop.f32.mrf.mxu0
      %v354 = vadd.f32 0.0, %v353
      %v355 = vpop.f32.mrf.mxu0
      %356 = vdwg.mxu0
      %357 = vst [vmem:[#allocation2] sm:$0xff] %v327
      %358 = vst [vmem:[#allocation2 + $0x8] sm:$0xff] %v330
      %359 = vst [vmem:[#allocation2 + $0x10] sm:$0xff] %v335
      %360 = vst [vmem:[#allocation2 + $0x18] sm:$0xff] %v338
      %361 = vst [vmem:[#allocation2 + $0x20] sm:$0xff] %v343
      %362 = vst [vmem:[#allocation2 + $0x28] sm:$0xff] %v346
      %363 = vst [vmem:[#allocation2 + $0x30] sm:$0xff] %v351
      %364 = vst [vmem:[#allocation2 + $0x38] sm:$0xff] %v354
      %s365 = scalar_lea.vmem %s1, 384
      %v366 = vld [vmem:[%s365] sm:$0xf]
      %v367 = vld [vmem:[%s365 + $0x4] sm:$0xf]
      %v368 = vld [vmem:[%s365 + $0x8] sm:$0xf]
      %v369 = vld [vmem:[%s365 + $0xc] sm:$0xf]
      %v370 = vld [vmem:[%s365 + $0x10] sm:$0xf]
      %v371 = vld [vmem:[%s365 + $0x14] sm:$0xf]
      %v372 = vld [vmem:[%s365 + $0x18] sm:$0xf]
      %v373 = vld [vmem:[%s365 + $0x1c] sm:$0xf]
      %v374 = vld [vmem:[%s365 + $0x20] sm:$0xf]
      %v375 = vld [vmem:[%s365 + $0x24] sm:$0xf]
      %v376 = vld [vmem:[%s365 + $0x28] sm:$0xf]
      %v377 = vld [vmem:[%s365 + $0x2c] sm:$0xf]
      %v378 = vld [vmem:[%s365 + $0x30] sm:$0xf]
      %v379 = vld [vmem:[%s365 + $0x34] sm:$0xf]
      %v380 = vld [vmem:[%s365 + $0x38] sm:$0xf]
      %v381 = vld [vmem:[%s365 + $0x3c] sm:$0xf]
      %v383 = vunpack.c.l.b16 %v203
      %v384 = vpack.c.b16 %v230, %v229
      %v385 = vpack.c.b16 %v232, %v231
      %v386 = vpack.c.b16 %v234, %v233
      %v387 = vpack.c.b16 %v383, %v235
      %v408 = vunpack.c.l.b16 %v366
      %v409 = vunpack.c.l.b16 %v367
      %v410 = vunpack.c.l.b16 %v368
      %v411 = vunpack.c.l.b16 %v369
      %v412 = vunpack.c.l.b16 %v370
      %v413 = vunpack.c.l.b16 %v371
      %v414 = vunpack.c.l.b16 %v372
      %v415 = vunpack.c.l.b16 %v373
      %v416 = vunpack.c.l.b16 %v374
      %v417 = vunpack.c.l.b16 %v375
      %v418 = vunpack.c.l.b16 %v376
      %v419 = vunpack.c.l.b16 %v377
      %v420 = vunpack.c.l.b16 %v378
      %v421 = vunpack.c.l.b16 %v379
      %v422 = vunpack.c.l.b16 %v380
      %v423 = vunpack.c.l.b16 %v381
      %v424 = vpack.c.b16 %v409, %v408
      %v425 = vpack.c.b16 %v411, %v410
      %v426 = vpack.c.b16 %v413, %v412
      %v427 = vpack.c.b16 %v415, %v414
      %v428 = vpack.c.b16 %v417, %v416
      %v429 = vpack.c.b16 %v419, %v418
      %v430 = vpack.c.b16 %v421, %v420
      %v431 = vpack.c.b16 %v423, %v422
      %440 = vmatprep.subr.bf16.mxu0 0
      %441 = vmatpush1.bf16.msra.mxu0 %v431
      %442 = vmatprep.subr.bf16.mxu0 0
      %443 = vmatpush1.bf16.msra.mxu0 %v430
      %444 = vmatprep.subr.bf16.mxu0 0
      %445 = vmatpush1.bf16.msra.mxu0 %v429
      %446 = vmatprep.subr.bf16.mxu0 0
      %447 = vmatpush1.bf16.msra.mxu0 %v428
      %448 = vmatprep.subr.bf16.mxu0 0
      %449 = vmatpush1.bf16.msra.mxu0 %v427
      %450 = vmatprep.subr.bf16.mxu0 0
      %451 = vmatpush1.bf16.msra.mxu0 %v426
      %452 = vmatprep.subr.bf16.mxu0 0
      %453 = vmatpush1.bf16.msra.mxu0 %v425
      %454 = vmatprep.subr.bf16.mxu0 0
      %455 = vmatpush1.bf16.msra.mxu0 %v424
      %456 = vmatprep.subr.bf16.mxu0 0
      %457 = vmatpush2.bf16.msra.mxu0 0
      %458 = vmatprep.subr.bf16.mxu0 0
      %459 = vmatpush2.bf16.msra.mxu0 0
      %460 = vmatprep.subr.bf16.mxu0 0
      %461 = vmatpush2.bf16.msra.mxu0 0
      %462 = vmatprep.subr.bf16.mxu0 0
      %463 = vmatpush2.bf16.msra.mxu0 0
      %464 = vmatprep.subr.bf16.mxu0 0
      %465 = vmatpush2.bf16.msra.mxu0 0
      %466 = vmatprep.subr.bf16.mxu0 0
      %467 = vmatpush2.bf16.msra.mxu0 0
      %468 = vmatprep.subr.bf16.mxu0 0
      %469 = vmatpush2.bf16.msra.mxu0 0
      %470 = vmatprep.subr.bf16.mxu0 0
      %471 = vmatpush2.bf16.msra.mxu0 0
      %472 = vmatprep.mubr.bf16.mxu0 0
      %473 = vmatmul.mubr.bf16.gmra.mxu0 %v384
      %v474 = vpop.f32.mrf.mxu0
      %v475 = vadd.f32 0.0, %v474
      %v476 = vpop.f32.mrf.mxu0
      %v477 = vpop.f32.mrf.mxu0
      %v478 = vadd.f32 0.0, %v477
      %v479 = vpop.f32.mrf.mxu0
      %480 = vmatprep.mubr.bf16.mxu0 0
      %481 = vmatmul.mubr.bf16.gmra.mxu0 %v385
      %v482 = vpop.f32.mrf.mxu0
      %v483 = vadd.f32 0.0, %v482
      %v484 = vpop.f32.mrf.mxu0
      %v485 = vpop.f32.mrf.mxu0
      %v486 = vadd.f32 0.0, %v485
      %v487 = vpop.f32.mrf.mxu0
      %488 = vmatprep.mubr.bf16.mxu0 0
      %489 = vmatmul.mubr.bf16.gmra.mxu0 %v386
      %v490 = vpop.f32.mrf.mxu0
      %v491 = vadd.f32 0.0, %v490
      %v492 = vpop.f32.mrf.mxu0
      %v493 = vpop.f32.mrf.mxu0
      %v494 = vadd.f32 0.0, %v493
      %v495 = vpop.f32.mrf.mxu0
      %496 = vmatprep.mubr.bf16.mxu0 0
      %497 = vmatmul.mubr.bf16.gmra.mxu0 %v387
      %v498 = vpop.f32.mrf.mxu0
      %v499 = vadd.f32 0.0, %v498
      %v500 = vpop.f32.mrf.mxu0
      %v501 = vpop.f32.mrf.mxu0
      %v502 = vadd.f32 0.0, %v501
      %v503 = vpop.f32.mrf.mxu0
      %504 = vdwg.mxu0
      %v505 = vld [vmem:[#allocation2] sm:$0xff]
      %v506 = vld [vmem:[#allocation2 + $0x8] sm:$0xff]
      %v507 = vld [vmem:[#allocation2 + $0x10] sm:$0xff]
      %v508 = vld [vmem:[#allocation2 + $0x18] sm:$0xff]
      %v509 = vld [vmem:[#allocation2 + $0x20] sm:$0xff]
      %v510 = vld [vmem:[#allocation2 + $0x28] sm:$0xff]
      %v511 = vld [vmem:[#allocation2 + $0x30] sm:$0xff]
      %v512 = vld [vmem:[#allocation2 + $0x38] sm:$0xff]
      %v513 = vadd.f32 %v505, %v475
      %v514 = vadd.f32 %v506, %v478
      %v515 = vadd.f32 %v507, %v483
      %v516 = vadd.f32 %v508, %v486
      %v517 = vadd.f32 %v509, %v491
      %v518 = vadd.f32 %v510, %v494
      %v519 = vadd.f32 %v511, %v499
      %v520 = vadd.f32 %v512, %v502
      %521 = vst [vmem:[#allocation2] sm:$0xff] %v513
      %522 = vst [vmem:[#allocation2 + $0x8] sm:$0xff] %v514
      %523 = vst [vmem:[#allocation2 + $0x10] sm:$0xff] %v515
      %524 = vst [vmem:[#allocation2 + $0x18] sm:$0xff] %v516
      %525 = vst [vmem:[#allocation2 + $0x20] sm:$0xff] %v517
      %526 = vst [vmem:[#allocation2 + $0x28] sm:$0xff] %v518
      %527 = vst [vmem:[#allocation2 + $0x30] sm:$0xff] %v519
      %528 = vst [vmem:[#allocation2 + $0x38] sm:$0xff] %v520
      %v529 = vld [vmem:[%s183] sm:$0xf]
      %v530 = vld [vmem:[%s183 + $0x4] sm:$0x1]
      %v531 = vld [vmem:[%s183 + $0x8] sm:$0xf]
      %v532 = vld [vmem:[%s183 + $0xc] sm:$0x1]
      %v533 = vld [vmem:[%s183 + $0x10] sm:$0xf]
      %v534 = vld [vmem:[%s183 + $0x14] sm:$0x1]
      %v535 = vld [vmem:[%s183 + $0x18] sm:$0xf]
      %v536 = vld [vmem:[%s183 + $0x1c] sm:$0x1]
      %v537 = vld [vmem:[%s183 + $0x20] sm:$0xf]
      %v538 = vld [vmem:[%s183 + $0x24] sm:$0x1]
      %v539 = vld [vmem:[%s183 + $0x28] sm:$0xf]
      %v540 = vld [vmem:[%s183 + $0x2c] sm:$0x1]
      %v541 = vld [vmem:[%s183 + $0x30] sm:$0xf]
      %v542 = vld [vmem:[%s183 + $0x34] sm:$0x1]
      %v543 = vld [vmem:[%s183 + $0x38] sm:$0xf]
      %v544 = vld [vmem:[%s183 + $0x3c] sm:$0x1]
      %v545 = vld [vmem:[%s183 + $0x40] sm:$0xf]
      %v546 = vld [vmem:[%s183 + $0x44] sm:$0x1]
      %vm547 = vsmask.f32 3328
      %vm548 = vsmask.f32 7440
      %vm549 = vmor %vm547, %vm548
      %v551 = vshrl.u32 %v529, 16
      %v553 = vrot.slane %v551, 4
      %v554 = vshll.u32 %v529, 16
      %v556 = vrot.slane %v554, 5
      %v557 = vor.u32 %v553, %v556
      %v558 = vrot.slane %v557, 4
      %v560 = vshll.u32 %v530, 16
      %v562 = vrot.slane %v560, 5
      %v563 = vsel %vm549, %v558, %v562
      %v565 = vshrl.u32 %v531, 16
      %v567 = vrot.slane %v565, 4
      %v568 = vshll.u32 %v531, 16
      %v570 = vrot.slane %v568, 5
      %v571 = vor.u32 %v567, %v570
      %v572 = vrot.slane %v571, 4
      %v574 = vshll.u32 %v532, 16
      %v576 = vrot.slane %v574, 5
      %v577 = vsel %vm549, %v572, %v576
      %v579 = vshrl.u32 %v533, 16
      %v581 = vrot.slane %v579, 4
      %v582 = vshll.u32 %v533, 16
      %v584 = vrot.slane %v582, 5
      %v585 = vor.u32 %v581, %v584
      %v586 = vrot.slane %v585, 4
      %v588 = vshll.u32 %v534, 16
      %v590 = vrot.slane %v588, 5
      %v591 = vsel %vm549, %v586, %v590
      %v593 = vshrl.u32 %v535, 16
      %v595 = vrot.slane %v593, 4
      %v596 = vshll.u32 %v535, 16
      %v598 = vrot.slane %v596, 5
      %v599 = vor.u32 %v595, %v598
      %v600 = vrot.slane %v599, 4
      %v602 = vshll.u32 %v536, 16
      %v604 = vrot.slane %v602, 5
      %v605 = vsel %vm549, %v600, %v604
      %v607 = vshrl.u32 %v537, 16
      %v609 = vrot.slane %v607, 4
      %v610 = vshll.u32 %v537, 16
      %v612 = vrot.slane %v610, 5
      %v613 = vor.u32 %v609, %v612
      %v614 = vrot.slane %v613, 4
      %v616 = vshll.u32 %v538, 16
      %v618 = vrot.slane %v616, 5
      %v619 = vsel %vm549, %v614, %v618
      %v621 = vshrl.u32 %v539, 16
      %v623 = vrot.slane %v621, 4
      %v624 = vshll.u32 %v539, 16
      %v626 = vrot.slane %v624, 5
      %v627 = vor.u32 %v623, %v626
      %v628 = vrot.slane %v627, 4
      %v630 = vshll.u32 %v540, 16
      %v632 = vrot.slane %v630, 5
      %v633 = vsel %vm549, %v628, %v632
      %v635 = vshrl.u32 %v541, 16
      %v637 = vrot.slane %v635, 4
      %v638 = vshll.u32 %v541, 16
      %v640 = vrot.slane %v638, 5
      %v641 = vor.u32 %v637, %v640
      %v642 = vrot.slane %v641, 4
      %v644 = vshll.u32 %v542, 16
      %v646 = vrot.slane %v644, 5
      %v647 = vsel %vm549, %v642, %v646
      %v649 = vshrl.u32 %v543, 16
      %v651 = vrot.slane %v649, 4
      %v652 = vshll.u32 %v543, 16
      %v654 = vrot.slane %v652, 5
      %v655 = vor.u32 %v651, %v654
      %v656 = vrot.slane %v655, 4
      %v658 = vshll.u32 %v544, 16
      %v660 = vrot.slane %v658, 5
      %v661 = vsel %vm549, %v656, %v660
      %s662 = scalar_lea.vmem %s1, 128
      %v663 = vld [vmem:[%s662] sm:$0xf]
      %v664 = vld [vmem:[%s662 + $0x4] sm:$0xf]
      %v665 = vld [vmem:[%s662 + $0x8] sm:$0xf]
      %v666 = vld [vmem:[%s662 + $0xc] sm:$0xf]
      %v667 = vld [vmem:[%s662 + $0x10] sm:$0xf]
      %v668 = vld [vmem:[%s662 + $0x14] sm:$0xf]
      %v669 = vld [vmem:[%s662 + $0x18] sm:$0xf]
      %v670 = vld [vmem:[%s662 + $0x1c] sm:$0xf]
      %v671 = vld [vmem:[%s662 + $0x20] sm:$0xf]
      %v672 = vld [vmem:[%s662 + $0x24] sm:$0xf]
      %v673 = vld [vmem:[%s662 + $0x28] sm:$0xf]
      %v674 = vld [vmem:[%s662 + $0x2c] sm:$0xf]
      %v675 = vld [vmem:[%s662 + $0x30] sm:$0xf]
      %v676 = vld [vmem:[%s662 + $0x34] sm:$0xf]
      %v677 = vld [vmem:[%s662 + $0x38] sm:$0xf]
      %v678 = vld [vmem:[%s662 + $0x3c] sm:$0xf]
      %v679 = vunpack.c.l.b16 %v563
      %v680 = vunpack.c.l.b16 %v577
      %v681 = vunpack.c.l.b16 %v591
      %v682 = vunpack.c.l.b16 %v605
      %v683 = vunpack.c.l.b16 %v619
      %v684 = vunpack.c.l.b16 %v633
      %v685 = vunpack.c.l.b16 %v647
      %v686 = vunpack.c.l.b16 %v661
      %v687 = vpack.c.b16 %v680, %v679
      %v688 = vpack.c.b16 %v682, %v681
      %v689 = vpack.c.b16 %v684, %v683
      %v690 = vpack.c.b16 %v686, %v685
      %v711 = vunpack.c.l.b16 %v663
      %v712 = vunpack.c.l.b16 %v664
      %v713 = vunpack.c.l.b16 %v665
      %v714 = vunpack.c.l.b16 %v666
      %v715 = vunpack.c.l.b16 %v667
      %v716 = vunpack.c.l.b16 %v668
      %v717 = vunpack.c.l.b16 %v669
      %v718 = vunpack.c.l.b16 %v670
      %v719 = vunpack.c.l.b16 %v671
      %v720 = vunpack.c.l.b16 %v672
      %v721 = vunpack.c.l.b16 %v673
      %v722 = vunpack.c.l.b16 %v674
      %v723 = vunpack.c.l.b16 %v675
      %v724 = vunpack.c.l.b16 %v676
      %v725 = vunpack.c.l.b16 %v677
      %v726 = vunpack.c.l.b16 %v678
      %v727 = vpack.c.b16 %v712, %v711
      %v728 = vpack.c.b16 %v714, %v713
      %v729 = vpack.c.b16 %v716, %v715
      %v730 = vpack.c.b16 %v718, %v717
      %v731 = vpack.c.b16 %v720, %v719
      %v732 = vpack.c.b16 %v722, %v721
      %v733 = vpack.c.b16 %v724, %v723
      %v734 = vpack.c.b16 %v726, %v725
      %743 = vmatprep.subr.bf16.mxu0 0
      %744 = vmatpush1.bf16.msra.mxu0 %v734
      %745 = vmatprep.subr.bf16.mxu0 0
      %746 = vmatpush1.bf16.msra.mxu0 %v733
      %747 = vmatprep.subr.bf16.mxu0 0
      %748 = vmatpush1.bf16.msra.mxu0 %v732
      %749 = vmatprep.subr.bf16.mxu0 0
      %750 = vmatpush1.bf16.msra.mxu0 %v731
      %751 = vmatprep.subr.bf16.mxu0 0
      %752 = vmatpush1.bf16.msra.mxu0 %v730
      %753 = vmatprep.subr.bf16.mxu0 0
      %754 = vmatpush1.bf16.msra.mxu0 %v729
      %755 = vmatprep.subr.bf16.mxu0 0
      %756 = vmatpush1.bf16.msra.mxu0 %v728
      %757 = vmatprep.subr.bf16.mxu0 0
      %758 = vmatpush1.bf16.msra.mxu0 %v727
      %759 = vmatprep.subr.bf16.mxu0 0
      %760 = vmatpush2.bf16.msra.mxu0 0
      %761 = vmatprep.subr.bf16.mxu0 0
      %762 = vmatpush2.bf16.msra.mxu0 0
      %763 = vmatprep.subr.bf16.mxu0 0
      %764 = vmatpush2.bf16.msra.mxu0 0
      %765 = vmatprep.subr.bf16.mxu0 0
      %766 = vmatpush2.bf16.msra.mxu0 0
      %767 = vmatprep.subr.bf16.mxu0 0
      %768 = vmatpush2.bf16.msra.mxu0 0
      %769 = vmatprep.subr.bf16.mxu0 0
      %770 = vmatpush2.bf16.msra.mxu0 0
      %771 = vmatprep.subr.bf16.mxu0 0
      %772 = vmatpush2.bf16.msra.mxu0 0
      %773 = vmatprep.subr.bf16.mxu0 0
      %774 = vmatpush2.bf16.msra.mxu0 0
      %775 = vmatprep.mubr.bf16.mxu0 0
      %776 = vmatmul.mubr.bf16.gmra.mxu0 %v687
      %v777 = vpop.f32.mrf.mxu0
      %v778 = vadd.f32 0.0, %v777
      %v779 = vpop.f32.mrf.mxu0
      %v780 = vpop.f32.mrf.mxu0
      %v781 = vadd.f32 0.0, %v780
      %v782 = vpop.f32.mrf.mxu0
      %783 = vmatprep.mubr.bf16.mxu0 0
      %784 = vmatmul.mubr.bf16.gmra.mxu0 %v688
      %v785 = vpop.f32.mrf.mxu0
      %v786 = vadd.f32 0.0, %v785
      %v787 = vpop.f32.mrf.mxu0
      %v788 = vpop.f32.mrf.mxu0
      %v789 = vadd.f32 0.0, %v788
      %v790 = vpop.f32.mrf.mxu0
      %791 = vmatprep.mubr.bf16.mxu0 0
      %792 = vmatmul.mubr.bf16.gmra.mxu0 %v689
      %v793 = vpop.f32.mrf.mxu0
      %v794 = vadd.f32 0.0, %v793
      %v795 = vpop.f32.mrf.mxu0
      %v796 = vpop.f32.mrf.mxu0
      %v797 = vadd.f32 0.0, %v796
      %v798 = vpop.f32.mrf.mxu0
      %799 = vmatprep.mubr.bf16.mxu0 0
      %800 = vmatmul.mubr.bf16.gmra.mxu0 %v690
      %v801 = vpop.f32.mrf.mxu0
      %v802 = vadd.f32 0.0, %v801
      %v803 = vpop.f32.mrf.mxu0
      %v804 = vpop.f32.mrf.mxu0
      %v805 = vadd.f32 0.0, %v804
      %v806 = vpop.f32.mrf.mxu0
      %807 = vdwg.mxu0
      %v808 = vld [vmem:[#allocation2] sm:$0xff]
      %v809 = vld [vmem:[#allocation2 + $0x8] sm:$0xff]
      %v810 = vld [vmem:[#allocation2 + $0x10] sm:$0xff]
      %v811 = vld [vmem:[#allocation2 + $0x18] sm:$0xff]
      %v812 = vld [vmem:[#allocation2 + $0x20] sm:$0xff]
      %v813 = vld [vmem:[#allocation2 + $0x28] sm:$0xff]
      %v814 = vld [vmem:[#allocation2 + $0x30] sm:$0xff]
      %v815 = vld [vmem:[#allocation2 + $0x38] sm:$0xff]
      %v816 = vadd.f32 %v808, %v778
      %v817 = vadd.f32 %v809, %v781
      %v818 = vadd.f32 %v810, %v786
      %v819 = vadd.f32 %v811, %v789
      %v820 = vadd.f32 %v812, %v794
      %v821 = vadd.f32 %v813, %v797
      %v822 = vadd.f32 %v814, %v802
      %v823 = vadd.f32 %v815, %v805
      %824 = vst [vmem:[#allocation2] sm:$0xff] %v816
      %825 = vst [vmem:[#allocation2 + $0x8] sm:$0xff] %v817
      %826 = vst [vmem:[#allocation2 + $0x10] sm:$0xff] %v818
      %827 = vst [vmem:[#allocation2 + $0x18] sm:$0xff] %v819
      %828 = vst [vmem:[#allocation2 + $0x20] sm:$0xff] %v820
      %829 = vst [vmem:[#allocation2 + $0x28] sm:$0xff] %v821
      %830 = vst [vmem:[#allocation2 + $0x30] sm:$0xff] %v822
      %831 = vst [vmem:[#allocation2 + $0x38] sm:$0xff] %v823
      %v833 = vshrl.u32 %v545, 16
      %v835 = vrot.slane %v833, 4
      %v836 = vshll.u32 %v545, 16
      %v838 = vrot.slane %v836, 5
      %v839 = vor.u32 %v835, %v838
      %v840 = vrot.slane %v839, 4
      %v842 = vshll.u32 %v546, 16
      %v844 = vrot.slane %v842, 5
      %v845 = vsel %vm549, %v840, %v844
      %s846 = scalar_lea.vmem %s1, 512
      %v847 = vld [vmem:[%s846] sm:$0xf]
      %v848 = vld [vmem:[%s846 + $0x4] sm:$0xf]
      %v849 = vld [vmem:[%s846 + $0x8] sm:$0xf]
      %v850 = vld [vmem:[%s846 + $0xc] sm:$0xf]
      %v851 = vld [vmem:[%s846 + $0x10] sm:$0xf]
      %v852 = vld [vmem:[%s846 + $0x14] sm:$0xf]
      %v853 = vld [vmem:[%s846 + $0x18] sm:$0xf]
      %v854 = vld [vmem:[%s846 + $0x1c] sm:$0xf]
      %v855 = vld [vmem:[%s846 + $0x20] sm:$0xf]
      %v856 = vld [vmem:[%s846 + $0x24] sm:$0xf]
      %v857 = vld [vmem:[%s846 + $0x28] sm:$0xf]
      %v858 = vld [vmem:[%s846 + $0x2c] sm:$0xf]
      %v859 = vld [vmem:[%s846 + $0x30] sm:$0xf]
      %v860 = vld [vmem:[%s846 + $0x34] sm:$0xf]
      %v861 = vld [vmem:[%s846 + $0x38] sm:$0xf]
      %v862 = vld [vmem:[%s846 + $0x3c] sm:$0xf]
      %v863 = vunpack.c.l.b16 %v845
      %v864 = vpack.c.b16 %v681, %v680
      %v865 = vpack.c.b16 %v683, %v682
      %v866 = vpack.c.b16 %v685, %v684
      %v867 = vpack.c.b16 %v863, %v686
      %v888 = vunpack.c.l.b16 %v847
      %v889 = vunpack.c.l.b16 %v848
      %v890 = vunpack.c.l.b16 %v849
      %v891 = vunpack.c.l.b16 %v850
      %v892 = vunpack.c.l.b16 %v851
      %v893 = vunpack.c.l.b16 %v852
      %v894 = vunpack.c.l.b16 %v853
      %v895 = vunpack.c.l.b16 %v854
      %v896 = vunpack.c.l.b16 %v855
      %v897 = vunpack.c.l.b16 %v856
      %v898 = vunpack.c.l.b16 %v857
      %v899 = vunpack.c.l.b16 %v858
      %v900 = vunpack.c.l.b16 %v859
      %v901 = vunpack.c.l.b16 %v860
      %v902 = vunpack.c.l.b16 %v861
      %v903 = vunpack.c.l.b16 %v862
      %v904 = vpack.c.b16 %v889, %v888
      %v905 = vpack.c.b16 %v891, %v890
      %v906 = vpack.c.b16 %v893, %v892
      %v907 = vpack.c.b16 %v895, %v894
      %v908 = vpack.c.b16 %v897, %v896
      %v909 = vpack.c.b16 %v899, %v898
      %v910 = vpack.c.b16 %v901, %v900
      %v911 = vpack.c.b16 %v903, %v902
      %920 = vmatprep.subr.bf16.mxu0 0
      %921 = vmatpush1.bf16.msra.mxu0 %v911
      %922 = vmatprep.subr.bf16.mxu0 0
      %923 = vmatpush1.bf16.msra.mxu0 %v910
      %924 = vmatprep.subr.bf16.mxu0 0
      %925 = vmatpush1.bf16.msra.mxu0 %v909
      %926 = vmatprep.subr.bf16.mxu0 0
      %927 = vmatpush1.bf16.msra.mxu0 %v908
      %928 = vmatprep.subr.bf16.mxu0 0
      %929 = vmatpush1.bf16.msra.mxu0 %v907
      %930 = vmatprep.subr.bf16.mxu0 0
      %931 = vmatpush1.bf16.msra.mxu0 %v906
      %932 = vmatprep.subr.bf16.mxu0 0
      %933 = vmatpush1.bf16.msra.mxu0 %v905
      %934 = vmatprep.subr.bf16.mxu0 0
      %935 = vmatpush1.bf16.msra.mxu0 %v904
      %936 = vmatprep.subr.bf16.mxu0 0
      %937 = vmatpush2.bf16.msra.mxu0 0
      %938 = vmatprep.subr.bf16.mxu0 0
      %939 = vmatpush2.bf16.msra.mxu0 0
      %940 = vmatprep.subr.bf16.mxu0 0
      %941 = vmatpush2.bf16.msra.mxu0 0
      %942 = vmatprep.subr.bf16.mxu0 0
      %943 = vmatpush2.bf16.msra.mxu0 0
      %944 = vmatprep.subr.bf16.mxu0 0
      %945 = vmatpush2.bf16.msra.mxu0 0
      %946 = vmatprep.subr.bf16.mxu0 0
      %947 = vmatpush2.bf16.msra.mxu0 0
      %948 = vmatprep.subr.bf16.mxu0 0
      %949 = vmatpush2.bf16.msra.mxu0 0
      %950 = vmatprep.subr.bf16.mxu0 0
      %951 = vmatpush2.bf16.msra.mxu0 0
      %952 = vmatprep.mubr.bf16.mxu0 0
      %953 = vmatmul.mubr.bf16.gmra.mxu0 %v864
      %v954 = vpop.f32.mrf.mxu0
      %v955 = vadd.f32 0.0, %v954
      %v956 = vpop.f32.mrf.mxu0
      %v957 = vpop.f32.mrf.mxu0
      %v958 = vadd.f32 0.0, %v957
      %v959 = vpop.f32.mrf.mxu0
      %960 = vmatprep.mubr.bf16.mxu0 0
      %961 = vmatmul.mubr.bf16.gmra.mxu0 %v865
      %v962 = vpop.f32.mrf.mxu0
      %v963 = vadd.f32 0.0, %v962
      %v964 = vpop.f32.mrf.mxu0
      %v965 = vpop.f32.mrf.mxu0
      %v966 = vadd.f32 0.0, %v965
      %v967 = vpop.f32.mrf.mxu0
      %968 = vmatprep.mubr.bf16.mxu0 0
      %969 = vmatmul.mubr.bf16.gmra.mxu0 %v866
      %v970 = vpop.f32.mrf.mxu0
      %v971 = vadd.f32 0.0, %v970
      %v972 = vpop.f32.mrf.mxu0
      %v973 = vpop.f32.mrf.mxu0
      %v974 = vadd.f32 0.0, %v973
      %v975 = vpop.f32.mrf.mxu0
      %976 = vmatprep.mubr.bf16.mxu0 0
      %977 = vmatmul.mubr.bf16.gmra.mxu0 %v867
      %v978 = vpop.f32.mrf.mxu0
      %v979 = vadd.f32 0.0, %v978
      %v980 = vpop.f32.mrf.mxu0
      %v981 = vpop.f32.mrf.mxu0
      %v982 = vadd.f32 0.0, %v981
      %v983 = vpop.f32.mrf.mxu0
      %984 = vdwg.mxu0
      %v985 = vld [vmem:[#allocation2] sm:$0xff]
      %v986 = vld [vmem:[#allocation2 + $0x8] sm:$0xff]
      %v987 = vld [vmem:[#allocation2 + $0x10] sm:$0xff]
      %v988 = vld [vmem:[#allocation2 + $0x18] sm:$0xff]
      %v989 = vld [vmem:[#allocation2 + $0x20] sm:$0xff]
      %v990 = vld [vmem:[#allocation2 + $0x28] sm:$0xff]
      %v991 = vld [vmem:[#allocation2 + $0x30] sm:$0xff]
      %v992 = vld [vmem:[#allocation2 + $0x38] sm:$0xff]
      %v993 = vadd.f32 %v985, %v955
      %v994 = vadd.f32 %v986, %v958
      %v995 = vadd.f32 %v987, %v963
      %v996 = vadd.f32 %v988, %v966
      %v997 = vadd.f32 %v989, %v971
      %v998 = vadd.f32 %v990, %v974
      %v999 = vadd.f32 %v991, %v979
      %v1000 = vadd.f32 %v992, %v982
      %1001 = vst [vmem:[#allocation2] sm:$0xff] %v993
      %1002 = vst [vmem:[#allocation2 + $0x8] sm:$0xff] %v994
      %1003 = vst [vmem:[#allocation2 + $0x10] sm:$0xff] %v995
      %1004 = vst [vmem:[#allocation2 + $0x18] sm:$0xff] %v996
      %1005 = vst [vmem:[#allocation2 + $0x20] sm:$0xff] %v997
      %1006 = vst [vmem:[#allocation2 + $0x28] sm:$0xff] %v998
      %1007 = vst [vmem:[#allocation2 + $0x30] sm:$0xff] %v999
      %1008 = vst [vmem:[#allocation2 + $0x38] sm:$0xff] %v1000
      %s1009 = scalar_lea.vmem %s183, 72
      %v1010 = vld [vmem:[%s1009] sm:$0xf]
      %v1011 = vld [vmem:[%s1009 + $0x8] sm:$0xf]
      %v1012 = vld [vmem:[%s1009 + $0x10] sm:$0xf]
      %v1013 = vld [vmem:[%s1009 + $0x18] sm:$0xf]
      %v1014 = vld [vmem:[%s1009 + $0x20] sm:$0xf]
      %v1015 = vld [vmem:[%s1009 + $0x28] sm:$0xf]
      %v1016 = vld [vmem:[%s1009 + $0x30] sm:$0xf]
      %v1017 = vld [vmem:[%s1009 + $0x38] sm:$0xf]
      %v1018 = vld [vmem:[%s1009 + $0x40] sm:$0xf]
      %s1019 = scalar_lea.vmem %s1, 64
      %v1020 = vld [vmem:[%s1019] sm:$0xf]
      %v1021 = vld [vmem:[%s1019 + $0x4] sm:$0xf]
      %v1022 = vld [vmem:[%s1019 + $0x8] sm:$0xf]
      %v1023 = vld [vmem:[%s1019 + $0xc] sm:$0xf]
      %v1024 = vld [vmem:[%s1019 + $0x10] sm:$0xf]
      %v1025 = vld [vmem:[%s1019 + $0x14] sm:$0xf]
      %v1026 = vld [vmem:[%s1019 + $0x18] sm:$0xf]
      %v1027 = vld [vmem:[%s1019 + $0x1c] sm:$0xf]
      %v1028 = vld [vmem:[%s1019 + $0x20] sm:$0xf]
      %v1029 = vld [vmem:[%s1019 + $0x24] sm:$0xf]
      %v1030 = vld [vmem:[%s1019 + $0x28] sm:$0xf]
      %v1031 = vld [vmem:[%s1019 + $0x2c] sm:$0xf]
      %v1032 = vld [vmem:[%s1019 + $0x30] sm:$0xf]
      %v1033 = vld [vmem:[%s1019 + $0x34] sm:$0xf]
      %v1034 = vld [vmem:[%s1019 + $0x38] sm:$0xf]
      %v1035 = vld [vmem:[%s1019 + $0x3c] sm:$0xf]
      %v1044 = vunpack.c.l.b16 %v1010
      %v1045 = vunpack.c.l.b16 %v1011
      %v1046 = vunpack.c.l.b16 %v1012
      %v1047 = vunpack.c.l.b16 %v1013
      %v1048 = vunpack.c.l.b16 %v1014
      %v1049 = vunpack.c.l.b16 %v1015
      %v1050 = vunpack.c.l.b16 %v1016
      %v1051 = vunpack.c.l.b16 %v1017
      %v1052 = vpack.c.b16 %v1045, %v1044
      %v1053 = vpack.c.b16 %v1047, %v1046
      %v1054 = vpack.c.b16 %v1049, %v1048
      %v1055 = vpack.c.b16 %v1051, %v1050
      %v1076 = vunpack.c.l.b16 %v1020
      %v1077 = vunpack.c.l.b16 %v1021
      %v1078 = vunpack.c.l.b16 %v1022
      %v1079 = vunpack.c.l.b16 %v1023
      %v1080 = vunpack.c.l.b16 %v1024
      %v1081 = vunpack.c.l.b16 %v1025
      %v1082 = vunpack.c.l.b16 %v1026
      %v1083 = vunpack.c.l.b16 %v1027
      %v1084 = vunpack.c.l.b16 %v1028
      %v1085 = vunpack.c.l.b16 %v1029
      %v1086 = vunpack.c.l.b16 %v1030
      %v1087 = vunpack.c.l.b16 %v1031
      %v1088 = vunpack.c.l.b16 %v1032
      %v1089 = vunpack.c.l.b16 %v1033
      %v1090 = vunpack.c.l.b16 %v1034
      %v1091 = vunpack.c.l.b16 %v1035
      %v1092 = vpack.c.b16 %v1077, %v1076
      %v1093 = vpack.c.b16 %v1079, %v1078
      %v1094 = vpack.c.b16 %v1081, %v1080
      %v1095 = vpack.c.b16 %v1083, %v1082
      %v1096 = vpack.c.b16 %v1085, %v1084
      %v1097 = vpack.c.b16 %v1087, %v1086
      %v1098 = vpack.c.b16 %v1089, %v1088
      %v1099 = vpack.c.b16 %v1091, %v1090
      %1108 = vmatprep.subr.bf16.mxu0 0
      %1109 = vmatpush1.bf16.msra.mxu0 %v1099
      %1110 = vmatprep.subr.bf16.mxu0 0
      %1111 = vmatpush1.bf16.msra.mxu0 %v1098
      %1112 = vmatprep.subr.bf16.mxu0 0
      %1113 = vmatpush1.bf16.msra.mxu0 %v1097
      %1114 = vmatprep.subr.bf16.mxu0 0
      %1115 = vmatpush1.bf16.msra.mxu0 %v1096
      %1116 = vmatprep.subr.bf16.mxu0 0
      %1117 = vmatpush1.bf16.msra.mxu0 %v1095
      %1118 = vmatprep.subr.bf16.mxu0 0
      %1119 = vmatpush1.bf16.msra.mxu0 %v1094
      %1120 = vmatprep.subr.bf16.mxu0 0
      %1121 = vmatpush1.bf16.msra.mxu0 %v1093
      %1122 = vmatprep.subr.bf16.mxu0 0
      %1123 = vmatpush1.bf16.msra.mxu0 %v1092
      %1124 = vmatprep.subr.bf16.mxu0 0
      %1125 = vmatpush2.bf16.msra.mxu0 0
      %1126 = vmatprep.subr.bf16.mxu0 0
      %1127 = vmatpush2.bf16.msra.mxu0 0
      %1128 = vmatprep.subr.bf16.mxu0 0
      %1129 = vmatpush2.bf16.msra.mxu0 0
      %1130 = vmatprep.subr.bf16.mxu0 0
      %1131 = vmatpush2.bf16.msra.mxu0 0
      %1132 = vmatprep.subr.bf16.mxu0 0
      %1133 = vmatpush2.bf16.msra.mxu0 0
      %1134 = vmatprep.subr.bf16.mxu0 0
      %1135 = vmatpush2.bf16.msra.mxu0 0
      %1136 = vmatprep.subr.bf16.mxu0 0
      %1137 = vmatpush2.bf16.msra.mxu0 0
      %1138 = vmatprep.subr.bf16.mxu0 0
      %1139 = vmatpush2.bf16.msra.mxu0 0
      %1140 = vmatprep.mubr.bf16.mxu0 0
      %1141 = vmatmul.mubr.bf16.gmra.mxu0 %v1052
      %v1142 = vpop.f32.mrf.mxu0
      %v1143 = vadd.f32 0.0, %v1142
      %v1144 = vpop.f32.mrf.mxu0
      %v1145 = vpop.f32.mrf.mxu0
      %v1146 = vadd.f32 0.0, %v1145
      %v1147 = vpop.f32.mrf.mxu0
      %1148 = vmatprep.mubr.bf16.mxu0 0
      %1149 = vmatmul.mubr.bf16.gmra.mxu0 %v1053
      %v1150 = vpop.f32.mrf.mxu0
      %v1151 = vadd.f32 0.0, %v1150
      %v1152 = vpop.f32.mrf.mxu0
      %v1153 = vpop.f32.mrf.mxu0
      %v1154 = vadd.f32 0.0, %v1153
      %v1155 = vpop.f32.mrf.mxu0
      %1156 = vmatprep.mubr.bf16.mxu0 0
      %1157 = vmatmul.mubr.bf16.gmra.mxu0 %v1054
      %v1158 = vpop.f32.mrf.mxu0
      %v1159 = vadd.f32 0.0, %v1158
      %v1160 = vpop.f32.mrf.mxu0
      %v1161 = vpop.f32.mrf.mxu0
      %v1162 = vadd.f32 0.0, %v1161
      %v1163 = vpop.f32.mrf.mxu0
      %1164 = vmatprep.mubr.bf16.mxu0 0
      %1165 = vmatmul.mubr.bf16.gmra.mxu0 %v1055
      %v1166 = vpop.f32.mrf.mxu0
      %v1167 = vadd.f32 0.0, %v1166
      %v1168 = vpop.f32.mrf.mxu0
      %v1169 = vpop.f32.mrf.mxu0
      %v1170 = vadd.f32 0.0, %v1169
      %v1171 = vpop.f32.mrf.mxu0
      %1172 = vdwg.mxu0
      %v1173 = vld [vmem:[#allocation2] sm:$0xff]
      %v1174 = vld [vmem:[#allocation2 + $0x8] sm:$0xff]
      %v1175 = vld [vmem:[#allocation2 + $0x10] sm:$0xff]
      %v1176 = vld [vmem:[#allocation2 + $0x18] sm:$0xff]
      %v1177 = vld [vmem:[#allocation2 + $0x20] sm:$0xff]
      %v1178 = vld [vmem:[#allocation2 + $0x28] sm:$0xff]
      %v1179 = vld [vmem:[#allocation2 + $0x30] sm:$0xff]
      %v1180 = vld [vmem:[#allocation2 + $0x38] sm:$0xff]
      %v1181 = vadd.f32 %v1173, %v1143
      %v1182 = vadd.f32 %v1174, %v1146
      %v1183 = vadd.f32 %v1175, %v1151
      %v1184 = vadd.f32 %v1176, %v1154
      %v1185 = vadd.f32 %v1177, %v1159
      %v1186 = vadd.f32 %v1178, %v1162
      %v1187 = vadd.f32 %v1179, %v1167
      %v1188 = vadd.f32 %v1180, %v1170
      %1189 = vst [vmem:[#allocation2] sm:$0xff] %v1181
      %1190 = vst [vmem:[#allocation2 + $0x8] sm:$0xff] %v1182
      %1191 = vst [vmem:[#allocation2 + $0x10] sm:$0xff] %v1183
      %1192 = vst [vmem:[#allocation2 + $0x18] sm:$0xff] %v1184
      %1193 = vst [vmem:[#allocation2 + $0x20] sm:$0xff] %v1185
      %1194 = vst [vmem:[#allocation2 + $0x28] sm:$0xff] %v1186
      %1195 = vst [vmem:[#allocation2 + $0x30] sm:$0xff] %v1187
      %1196 = vst [vmem:[#allocation2 + $0x38] sm:$0xff] %v1188
      %s1197 = scalar_lea.vmem %s1, 448
      %v1198 = vld [vmem:[%s1197] sm:$0xf]
      %v1199 = vld [vmem:[%s1197 + $0x4] sm:$0xf]
      %v1200 = vld [vmem:[%s1197 + $0x8] sm:$0xf]
      %v1201 = vld [vmem:[%s1197 + $0xc] sm:$0xf]
      %v1202 = vld [vmem:[%s1197 + $0x10] sm:$0xf]
      %v1203 = vld [vmem:[%s1197 + $0x14] sm:$0xf]
      %v1204 = vld [vmem:[%s1197 + $0x18] sm:$0xf]
      %v1205 = vld [vmem:[%s1197 + $0x1c] sm:$0xf]
      %v1206 = vld [vmem:[%s1197 + $0x20] sm:$0xf]
      %v1207 = vld [vmem:[%s1197 + $0x24] sm:$0xf]
      %v1208 = vld [vmem:[%s1197 + $0x28] sm:$0xf]
      %v1209 = vld [vmem:[%s1197 + $0x2c] sm:$0xf]
      %v1210 = vld [vmem:[%s1197 + $0x30] sm:$0xf]
      %v1211 = vld [vmem:[%s1197 + $0x34] sm:$0xf]
      %v1212 = vld [vmem:[%s1197 + $0x38] sm:$0xf]
      %v1213 = vld [vmem:[%s1197 + $0x3c] sm:$0xf]
      %v1215 = vunpack.c.l.b16 %v1018
      %v1216 = vpack.c.b16 %v1046, %v1045
      %v1217 = vpack.c.b16 %v1048, %v1047
      %v1218 = vpack.c.b16 %v1050, %v1049
      %v1219 = vpack.c.b16 %v1215, %v1051
      %v1240 = vunpack.c.l.b16 %v1198
      %v1241 = vunpack.c.l.b16 %v1199
      %v1242 = vunpack.c.l.b16 %v1200
      %v1243 = vunpack.c.l.b16 %v1201
      %v1244 = vunpack.c.l.b16 %v1202
      %v1245 = vunpack.c.l.b16 %v1203
      %v1246 = vunpack.c.l.b16 %v1204
      %v1247 = vunpack.c.l.b16 %v1205
      %v1248 = vunpack.c.l.b16 %v1206
      %v1249 = vunpack.c.l.b16 %v1207
      %v1250 = vunpack.c.l.b16 %v1208
      %v1251 = vunpack.c.l.b16 %v1209
      %v1252 = vunpack.c.l.b16 %v1210
      %v1253 = vunpack.c.l.b16 %v1211
      %v1254 = vunpack.c.l.b16 %v1212
      %v1255 = vunpack.c.l.b16 %v1213
      %v1256 = vpack.c.b16 %v1241, %v1240
      %v1257 = vpack.c.b16 %v1243, %v1242
      %v1258 = vpack.c.b16 %v1245, %v1244
      %v1259 = vpack.c.b16 %v1247, %v1246
      %v1260 = vpack.c.b16 %v1249, %v1248
      %v1261 = vpack.c.b16 %v1251, %v1250
      %v1262 = vpack.c.b16 %v1253, %v1252
      %v1263 = vpack.c.b16 %v1255, %v1254
      %1272 = vmatprep.subr.bf16.mxu0 0
      %1273 = vmatpush1.bf16.msra.mxu0 %v1263
      %1274 = vmatprep.subr.bf16.mxu0 0
      %1275 = vmatpush1.bf16.msra.mxu0 %v1262
      %1276 = vmatprep.subr.bf16.mxu0 0
      %1277 = vmatpush1.bf16.msra.mxu0 %v1261
      %1278 = vmatprep.subr.bf16.mxu0 0
      %1279 = vmatpush1.bf16.msra.mxu0 %v1260
      %1280 = vmatprep.subr.bf16.mxu0 0
      %1281 = vmatpush1.bf16.msra.mxu0 %v1259
      %1282 = vmatprep.subr.bf16.mxu0 0
      %1283 = vmatpush1.bf16.msra.mxu0 %v1258
      %1284 = vmatprep.subr.bf16.mxu0 0
      %1285 = vmatpush1.bf16.msra.mxu0 %v1257
      %1286 = vmatprep.subr.bf16.mxu0 0
      %1287 = vmatpush1.bf16.msra.mxu0 %v1256
      %1288 = vmatprep.subr.bf16.mxu0 0
      %1289 = vmatpush2.bf16.msra.mxu0 0
      %1290 = vmatprep.subr.bf16.mxu0 0
      %1291 = vmatpush2.bf16.msra.mxu0 0
      %1292 = vmatprep.subr.bf16.mxu0 0
      %1293 = vmatpush2.bf16.msra.mxu0 0
      %1294 = vmatprep.subr.bf16.mxu0 0
      %1295 = vmatpush2.bf16.msra.mxu0 0
      %1296 = vmatprep.subr.bf16.mxu0 0
      %1297 = vmatpush2.bf16.msra.mxu0 0
      %1298 = vmatprep.subr.bf16.mxu0 0
      %1299 = vmatpush2.bf16.msra.mxu0 0
      %1300 = vmatprep.subr.bf16.mxu0 0
      %1301 = vmatpush2.bf16.msra.mxu0 0
      %1302 = vmatprep.subr.bf16.mxu0 0
      %1303 = vmatpush2.bf16.msra.mxu0 0
      %1304 = vmatprep.mubr.bf16.mxu0 0
      %1305 = vmatmul.mubr.bf16.gmra.mxu0 %v1216
      %v1306 = vpop.f32.mrf.mxu0
      %v1307 = vadd.f32 0.0, %v1306
      %v1308 = vpop.f32.mrf.mxu0
      %v1309 = vpop.f32.mrf.mxu0
      %v1310 = vadd.f32 0.0, %v1309
      %v1311 = vpop.f32.mrf.mxu0
      %1312 = vmatprep.mubr.bf16.mxu0 0
      %1313 = vmatmul.mubr.bf16.gmra.mxu0 %v1217
      %v1314 = vpop.f32.mrf.mxu0
      %v1315 = vadd.f32 0.0, %v1314
      %v1316 = vpop.f32.mrf.mxu0
      %v1317 = vpop.f32.mrf.mxu0
      %v1318 = vadd.f32 0.0, %v1317
      %v1319 = vpop.f32.mrf.mxu0
      %1320 = vmatprep.mubr.bf16.mxu0 0
      %1321 = vmatmul.mubr.bf16.gmra.mxu0 %v1218
      %v1322 = vpop.f32.mrf.mxu0
      %v1323 = vadd.f32 0.0, %v1322
      %v1324 = vpop.f32.mrf.mxu0
      %v1325 = vpop.f32.mrf.mxu0
      %v1326 = vadd.f32 0.0, %v1325
      %v1327 = vpop.f32.mrf.mxu0
      %1328 = vmatprep.mubr.bf16.mxu0 0
      %1329 = vmatmul.mubr.bf16.gmra.mxu0 %v1219
      %v1330 = vpop.f32.mrf.mxu0
      %v1331 = vadd.f32 0.0, %v1330
      %v1332 = vpop.f32.mrf.mxu0
      %v1333 = vpop.f32.mrf.mxu0
      %v1334 = vadd.f32 0.0, %v1333
      %v1335 = vpop.f32.mrf.mxu0
      %1336 = vdwg.mxu0
      %v1337 = vld [vmem:[#allocation2] sm:$0xff]
      %v1338 = vld [vmem:[#allocation2 + $0x8] sm:$0xff]
      %v1339 = vld [vmem:[#allocation2 + $0x10] sm:$0xff]
      %v1340 = vld [vmem:[#allocation2 + $0x18] sm:$0xff]
      %v1341 = vld [vmem:[#allocation2 + $0x20] sm:$0xff]
      %v1342 = vld [vmem:[#allocation2 + $0x28] sm:$0xff]
      %v1343 = vld [vmem:[#allocation2 + $0x30] sm:$0xff]
      %v1344 = vld [vmem:[#allocation2 + $0x38] sm:$0xff]
      %v1345 = vadd.f32 %v1337, %v1307
      %v1346 = vadd.f32 %v1338, %v1310
      %v1347 = vadd.f32 %v1339, %v1315
      %v1348 = vadd.f32 %v1340, %v1318
      %v1349 = vadd.f32 %v1341, %v1323
      %v1350 = vadd.f32 %v1342, %v1326
      %v1351 = vadd.f32 %v1343, %v1331
      %v1352 = vadd.f32 %v1344, %v1334
      %1353 = vst [vmem:[#allocation2] sm:$0xff] %v1345
      %1354 = vst [vmem:[#allocation2 + $0x8] sm:$0xff] %v1346
      %1355 = vst [vmem:[#allocation2 + $0x10] sm:$0xff] %v1347
      %1356 = vst [vmem:[#allocation2 + $0x18] sm:$0xff] %v1348
      %1357 = vst [vmem:[#allocation2 + $0x20] sm:$0xff] %v1349
      %1358 = vst [vmem:[#allocation2 + $0x28] sm:$0xff] %v1350
      %1359 = vst [vmem:[#allocation2 + $0x30] sm:$0xff] %v1351
      %1360 = vst [vmem:[#allocation2 + $0x38] sm:$0xff] %v1352
      %s1361 = scalar_lea.vmem %s183, 144
      %v1362 = vld [vmem:[%s1361] sm:$0xf]
      %v1363 = vld [vmem:[%s1361 + $0x8] sm:$0xf]
      %v1364 = vld [vmem:[%s1361 + $0x10] sm:$0xf]
      %v1365 = vld [vmem:[%s1361 + $0x18] sm:$0xf]
      %v1366 = vld [vmem:[%s1361 + $0x20] sm:$0xf]
      %v1367 = vld [vmem:[%s1361 + $0x28] sm:$0xf]
      %v1368 = vld [vmem:[%s1361 + $0x30] sm:$0xf]
      %v1369 = vld [vmem:[%s1361 + $0x38] sm:$0xf]
      %s1370 = scalar_lea.vmem %s1, 192
      %v1371 = vld [vmem:[%s1370] sm:$0xf]
      %v1372 = vld [vmem:[%s1370 + $0x4] sm:$0xf]
      %v1373 = vld [vmem:[%s1370 + $0x8] sm:$0xf]
      %v1374 = vld [vmem:[%s1370 + $0xc] sm:$0xf]
      %v1375 = vld [vmem:[%s1370 + $0x10] sm:$0xf]
      %v1376 = vld [vmem:[%s1370 + $0x14] sm:$0xf]
      %v1377 = vld [vmem:[%s1370 + $0x18] sm:$0xf]
      %v1378 = vld [vmem:[%s1370 + $0x1c] sm:$0xf]
      %v1379 = vld [vmem:[%s1370 + $0x20] sm:$0xf]
      %v1380 = vld [vmem:[%s1370 + $0x24] sm:$0xf]
      %v1381 = vld [vmem:[%s1370 + $0x28] sm:$0xf]
      %v1382 = vld [vmem:[%s1370 + $0x2c] sm:$0xf]
      %v1383 = vld [vmem:[%s1370 + $0x30] sm:$0xf]
      %v1384 = vld [vmem:[%s1370 + $0x34] sm:$0xf]
      %v1385 = vld [vmem:[%s1370 + $0x38] sm:$0xf]
      %v1386 = vld [vmem:[%s1370 + $0x3c] sm:$0xf]
      %v1395 = vunpack.c.l.b16 %v1362
      %v1396 = vunpack.c.l.b16 %v1363
      %v1397 = vunpack.c.l.b16 %v1364
      %v1398 = vunpack.c.l.b16 %v1365
      %v1399 = vunpack.c.l.b16 %v1366
      %v1400 = vunpack.c.l.b16 %v1367
      %v1401 = vunpack.c.l.b16 %v1368
      %v1402 = vunpack.c.l.b16 %v1369
      %v1403 = vpack.c.b16 %v1396, %v1395
      %v1404 = vpack.c.b16 %v1398, %v1397
      %v1405 = vpack.c.b16 %v1400, %v1399
      %v1406 = vpack.c.b16 %v1402, %v1401
      %v1427 = vunpack.c.l.b16 %v1371
      %v1428 = vunpack.c.l.b16 %v1372
      %v1429 = vunpack.c.l.b16 %v1373
      %v1430 = vunpack.c.l.b16 %v1374
      %v1431 = vunpack.c.l.b16 %v1375
      %v1432 = vunpack.c.l.b16 %v1376
      %v1433 = vunpack.c.l.b16 %v1377
      %v1434 = vunpack.c.l.b16 %v1378
      %v1435 = vunpack.c.l.b16 %v1379
      %v1436 = vunpack.c.l.b16 %v1380
      %v1437 = vunpack.c.l.b16 %v1381
      %v1438 = vunpack.c.l.b16 %v1382
      %v1439 = vunpack.c.l.b16 %v1383
      %v1440 = vunpack.c.l.b16 %v1384
      %v1441 = vunpack.c.l.b16 %v1385
      %v1442 = vunpack.c.l.b16 %v1386
      %v1443 = vpack.c.b16 %v1428, %v1427
      %v1444 = vpack.c.b16 %v1430, %v1429
      %v1445 = vpack.c.b16 %v1432, %v1431
      %v1446 = vpack.c.b16 %v1434, %v1433
      %v1447 = vpack.c.b16 %v1436, %v1435
      %v1448 = vpack.c.b16 %v1438, %v1437
      %v1449 = vpack.c.b16 %v1440, %v1439
      %v1450 = vpack.c.b16 %v1442, %v1441
      %1459 = vmatprep.subr.bf16.mxu0 0
      %1460 = vmatpush1.bf16.msra.mxu0 %v1450
      %1461 = vmatprep.subr.bf16.mxu0 0
      %1462 = vmatpush1.bf16.msra.mxu0 %v1449
      %1463 = vmatprep.subr.bf16.mxu0 0
      %1464 = vmatpush1.bf16.msra.mxu0 %v1448
      %1465 = vmatprep.subr.bf16.mxu0 0
      %1466 = vmatpush1.bf16.msra.mxu0 %v1447
      %1467 = vmatprep.subr.bf16.mxu0 0
      %1468 = vmatpush1.bf16.msra.mxu0 %v1446
      %1469 = vmatprep.subr.bf16.mxu0 0
      %1470 = vmatpush1.bf16.msra.mxu0 %v1445
      %1471 = vmatprep.subr.bf16.mxu0 0
      %1472 = vmatpush1.bf16.msra.mxu0 %v1444
      %1473 = vmatprep.subr.bf16.mxu0 0
      %1474 = vmatpush1.bf16.msra.mxu0 %v1443
      %1475 = vmatprep.subr.bf16.mxu0 0
      %1476 = vmatpush2.bf16.msra.mxu0 0
      %1477 = vmatprep.subr.bf16.mxu0 0
      %1478 = vmatpush2.bf16.msra.mxu0 0
      %1479 = vmatprep.subr.bf16.mxu0 0
      %1480 = vmatpush2.bf16.msra.mxu0 0
      %1481 = vmatprep.subr.bf16.mxu0 0
      %1482 = vmatpush2.bf16.msra.mxu0 0
      %1483 = vmatprep.subr.bf16.mxu0 0
      %1484 = vmatpush2.bf16.msra.mxu0 0
      %1485 = vmatprep.subr.bf16.mxu0 0
      %1486 = vmatpush2.bf16.msra.mxu0 0
      %1487 = vmatprep.subr.bf16.mxu0 0
      %1488 = vmatpush2.bf16.msra.mxu0 0
      %1489 = vmatprep.subr.bf16.mxu0 0
      %1490 = vmatpush2.bf16.msra.mxu0 0
      %1491 = vmatprep.mubr.bf16.mxu0 0
      %1492 = vmatmul.mubr.bf16.gmra.mxu0 %v1403
      %v1493 = vpop.f32.mrf.mxu0
      %v1494 = vadd.f32 0.0, %v1493
      %v1495 = vpop.f32.mrf.mxu0
      %v1496 = vpop.f32.mrf.mxu0
      %v1497 = vadd.f32 0.0, %v1496
      %v1498 = vpop.f32.mrf.mxu0
      %1499 = vmatprep.mubr.bf16.mxu0 0
      %1500 = vmatmul.mubr.bf16.gmra.mxu0 %v1404
      %v1501 = vpop.f32.mrf.mxu0
      %v1502 = vadd.f32 0.0, %v1501
      %v1503 = vpop.f32.mrf.mxu0
      %v1504 = vpop.f32.mrf.mxu0
      %v1505 = vadd.f32 0.0, %v1504
      %v1506 = vpop.f32.mrf.mxu0
      %1507 = vmatprep.mubr.bf16.mxu0 0
      %1508 = vmatmul.mubr.bf16.gmra.mxu0 %v1405
      %v1509 = vpop.f32.mrf.mxu0
      %v1510 = vadd.f32 0.0, %v1509
      %v1511 = vpop.f32.mrf.mxu0
      %v1512 = vpop.f32.mrf.mxu0
      %v1513 = vadd.f32 0.0, %v1512
      %v1514 = vpop.f32.mrf.mxu0
      %1515 = vmatprep.mubr.bf16.mxu0 0
      %1516 = vmatmul.mubr.bf16.gmra.mxu0 %v1406
      %v1517 = vpop.f32.mrf.mxu0
      %v1518 = vadd.f32 0.0, %v1517
      %v1519 = vpop.f32.mrf.mxu0
      %v1520 = vpop.f32.mrf.mxu0
      %v1521 = vadd.f32 0.0, %v1520
      %v1522 = vpop.f32.mrf.mxu0
      %1523 = vdwg.mxu0
      %v1524 = vld [vmem:[#allocation2] sm:$0xff]
      %v1525 = vld [vmem:[#allocation2 + $0x8] sm:$0xff]
      %v1526 = vld [vmem:[#allocation2 + $0x10] sm:$0xff]
      %v1527 = vld [vmem:[#allocation2 + $0x18] sm:$0xff]
      %v1528 = vld [vmem:[#allocation2 + $0x20] sm:$0xff]
      %v1529 = vld [vmem:[#allocation2 + $0x28] sm:$0xff]
      %v1530 = vld [vmem:[#allocation2 + $0x30] sm:$0xff]
      %v1531 = vld [vmem:[#allocation2 + $0x38] sm:$0xff]
      %v1532 = vadd.f32 %v1524, %v1494
      %v1533 = vadd.f32 %v1525, %v1497
      %v1534 = vadd.f32 %v1526, %v1502
      %v1535 = vadd.f32 %v1527, %v1505
      %v1536 = vadd.f32 %v1528, %v1510
      %v1537 = vadd.f32 %v1529, %v1513
      %v1538 = vadd.f32 %v1530, %v1518
      %v1539 = vadd.f32 %v1531, %v1521
      %1540 = vst [vmem:[#allocation2] sm:$0xff] %v1532
      %1541 = vst [vmem:[#allocation2 + $0x8] sm:$0xff] %v1533
      %1542 = vst [vmem:[#allocation2 + $0x10] sm:$0xff] %v1534
      %1543 = vst [vmem:[#allocation2 + $0x18] sm:$0xff] %v1535
      %1544 = vst [vmem:[#allocation2 + $0x20] sm:$0xff] %v1536
      %1545 = vst [vmem:[#allocation2 + $0x28] sm:$0xff] %v1537
      %1546 = vst [vmem:[#allocation2 + $0x30] sm:$0xff] %v1538
      %1547 = vst [vmem:[#allocation2 + $0x38] sm:$0xff] %v1539
      %v1548 = vld [vmem:[%s1361] sm:$0xf]
      %v1549 = vld [vmem:[%s1361 + $0x4] sm:$0x1]
      %v1550 = vld [vmem:[%s1361 + $0x8] sm:$0xf]
      %v1551 = vld [vmem:[%s1361 + $0xc] sm:$0x1]
      %v1552 = vld [vmem:[%s1361 + $0x10] sm:$0xf]
      %v1553 = vld [vmem:[%s1361 + $0x14] sm:$0x1]
      %v1554 = vld [vmem:[%s1361 + $0x18] sm:$0xf]
      %v1555 = vld [vmem:[%s1361 + $0x1c] sm:$0x1]
      %v1556 = vld [vmem:[%s1361 + $0x20] sm:$0xf]
      %v1557 = vld [vmem:[%s1361 + $0x24] sm:$0x1]
      %v1558 = vld [vmem:[%s1361 + $0x28] sm:$0xf]
      %v1559 = vld [vmem:[%s1361 + $0x2c] sm:$0x1]
      %v1560 = vld [vmem:[%s1361 + $0x30] sm:$0xf]
      %v1561 = vld [vmem:[%s1361 + $0x34] sm:$0x1]
      %v1562 = vld [vmem:[%s1361 + $0x38] sm:$0xf]
      %v1563 = vld [vmem:[%s1361 + $0x3c] sm:$0x1]
      %v1565 = vshrl.u32 %v1548, 16
      %v1567 = vrot.slane %v1565, 4
      %v1568 = vshll.u32 %v1548, 16
      %v1570 = vrot.slane %v1568, 5
      %v1571 = vor.u32 %v1567, %v1570
      %v1572 = vrot.slane %v1571, 4
      %v1574 = vshll.u32 %v1549, 16
      %v1576 = vrot.slane %v1574, 5
      %v1577 = vsel %vm549, %v1572, %v1576
      %v1579 = vshrl.u32 %v1550, 16
      %v1581 = vrot.slane %v1579, 4
      %v1582 = vshll.u32 %v1550, 16
      %v1584 = vrot.slane %v1582, 5
      %v1585 = vor.u32 %v1581, %v1584
      %v1586 = vrot.slane %v1585, 4
      %v1588 = vshll.u32 %v1551, 16
      %v1590 = vrot.slane %v1588, 5
      %v1591 = vsel %vm549, %v1586, %v1590
      %v1593 = vshrl.u32 %v1552, 16
      %v1595 = vrot.slane %v1593, 4
      %v1596 = vshll.u32 %v1552, 16
      %v1598 = vrot.slane %v1596, 5
      %v1599 = vor.u32 %v1595, %v1598
      %v1600 = vrot.slane %v1599, 4
      %v1602 = vshll.u32 %v1553, 16
      %v1604 = vrot.slane %v1602, 5
      %v1605 = vsel %vm549, %v1600, %v1604
      %v1607 = vshrl.u32 %v1554, 16
      %v1609 = vrot.slane %v1607, 4
      %v1610 = vshll.u32 %v1554, 16
      %v1612 = vrot.slane %v1610, 5
      %v1613 = vor.u32 %v1609, %v1612
      %v1614 = vrot.slane %v1613, 4
      %v1616 = vshll.u32 %v1555, 16
      %v1618 = vrot.slane %v1616, 5
      %v1619 = vsel %vm549, %v1614, %v1618
      %v1621 = vshrl.u32 %v1556, 16
      %v1623 = vrot.slane %v1621, 4
      %v1624 = vshll.u32 %v1556, 16
      %v1626 = vrot.slane %v1624, 5
      %v1627 = vor.u32 %v1623, %v1626
      %v1628 = vrot.slane %v1627, 4
      %v1630 = vshll.u32 %v1557, 16
      %v1632 = vrot.slane %v1630, 5
      %v1633 = vsel %vm549, %v1628, %v1632
      %v1635 = vshrl.u32 %v1558, 16
      %v1637 = vrot.slane %v1635, 4
      %v1638 = vshll.u32 %v1558, 16
      %v1640 = vrot.slane %v1638, 5
      %v1641 = vor.u32 %v1637, %v1640
      %v1642 = vrot.slane %v1641, 4
      %v1644 = vshll.u32 %v1559, 16
      %v1646 = vrot.slane %v1644, 5
      %v1647 = vsel %vm549, %v1642, %v1646
      %v1649 = vshrl.u32 %v1560, 16
      %v1651 = vrot.slane %v1649, 4
      %v1652 = vshll.u32 %v1560, 16
      %v1654 = vrot.slane %v1652, 5
      %v1655 = vor.u32 %v1651, %v1654
      %v1656 = vrot.slane %v1655, 4
      %v1658 = vshll.u32 %v1561, 16
      %v1660 = vrot.slane %v1658, 5
      %v1661 = vsel %vm549, %v1656, %v1660
      %v1663 = vshrl.u32 %v1562, 16
      %v1665 = vrot.slane %v1663, 4
      %v1666 = vshll.u32 %v1562, 16
      %v1668 = vrot.slane %v1666, 5
      %v1669 = vor.u32 %v1665, %v1668
      %v1670 = vrot.slane %v1669, 4
      %v1672 = vshll.u32 %v1563, 16
      %v1674 = vrot.slane %v1672, 5
      %v1675 = vsel %vm549, %v1670, %v1674
      %s1676 = scalar_lea.vmem %s1, 320
      %v1677 = vld [vmem:[%s1676] sm:$0xf]
      %v1678 = vld [vmem:[%s1676 + $0x4] sm:$0xf]
      %v1679 = vld [vmem:[%s1676 + $0x8] sm:$0xf]
      %v1680 = vld [vmem:[%s1676 + $0xc] sm:$0xf]
      %v1681 = vld [vmem:[%s1676 + $0x10] sm:$0xf]
      %v1682 = vld [vmem:[%s1676 + $0x14] sm:$0xf]
      %v1683 = vld [vmem:[%s1676 + $0x18] sm:$0xf]
      %v1684 = vld [vmem:[%s1676 + $0x1c] sm:$0xf]
      %v1685 = vld [vmem:[%s1676 + $0x20] sm:$0xf]
      %v1686 = vld [vmem:[%s1676 + $0x24] sm:$0xf]
      %v1687 = vld [vmem:[%s1676 + $0x28] sm:$0xf]
      %v1688 = vld [vmem:[%s1676 + $0x2c] sm:$0xf]
      %v1689 = vld [vmem:[%s1676 + $0x30] sm:$0xf]
      %v1690 = vld [vmem:[%s1676 + $0x34] sm:$0xf]
      %v1691 = vld [vmem:[%s1676 + $0x38] sm:$0xf]
      %v1692 = vld [vmem:[%s1676 + $0x3c] sm:$0xf]
      %v1693 = vunpack.c.l.b16 %v1577
      %v1694 = vunpack.c.l.b16 %v1591
      %v1695 = vunpack.c.l.b16 %v1605
      %v1696 = vunpack.c.l.b16 %v1619
      %v1697 = vunpack.c.l.b16 %v1633
      %v1698 = vunpack.c.l.b16 %v1647
      %v1699 = vunpack.c.l.b16 %v1661
      %v1700 = vunpack.c.l.b16 %v1675
      %v1701 = vpack.c.b16 %v1694, %v1693
      %v1702 = vpack.c.b16 %v1696, %v1695
      %v1703 = vpack.c.b16 %v1698, %v1697
      %v1704 = vpack.c.b16 %v1700, %v1699
      %v1725 = vunpack.c.l.b16 %v1677
      %v1726 = vunpack.c.l.b16 %v1678
      %v1727 = vunpack.c.l.b16 %v1679
      %v1728 = vunpack.c.l.b16 %v1680
      %v1729 = vunpack.c.l.b16 %v1681
      %v1730 = vunpack.c.l.b16 %v1682
      %v1731 = vunpack.c.l.b16 %v1683
      %v1732 = vunpack.c.l.b16 %v1684
      %v1733 = vunpack.c.l.b16 %v1685
      %v1734 = vunpack.c.l.b16 %v1686
      %v1735 = vunpack.c.l.b16 %v1687
      %v1736 = vunpack.c.l.b16 %v1688
      %v1737 = vunpack.c.l.b16 %v1689
      %v1738 = vunpack.c.l.b16 %v1690
      %v1739 = vunpack.c.l.b16 %v1691
      %v1740 = vunpack.c.l.b16 %v1692
      %v1741 = vpack.c.b16 %v1726, %v1725
      %v1742 = vpack.c.b16 %v1728, %v1727
      %v1743 = vpack.c.b16 %v1730, %v1729
      %v1744 = vpack.c.b16 %v1732, %v1731
      %v1745 = vpack.c.b16 %v1734, %v1733
      %v1746 = vpack.c.b16 %v1736, %v1735
      %v1747 = vpack.c.b16 %v1738, %v1737
      %v1748 = vpack.c.b16 %v1740, %v1739
      %1757 = vmatprep.subr.bf16.mxu0 0
      %1758 = vmatpush1.bf16.msra.mxu0 %v1748
      %1759 = vmatprep.subr.bf16.mxu0 0
      %1760 = vmatpush1.bf16.msra.mxu0 %v1747
      %1761 = vmatprep.subr.bf16.mxu0 0
      %1762 = vmatpush1.bf16.msra.mxu0 %v1746
      %1763 = vmatprep.subr.bf16.mxu0 0
      %1764 = vmatpush1.bf16.msra.mxu0 %v1745
      %1765 = vmatprep.subr.bf16.mxu0 0
      %1766 = vmatpush1.bf16.msra.mxu0 %v1744
      %1767 = vmatprep.subr.bf16.mxu0 0
      %1768 = vmatpush1.bf16.msra.mxu0 %v1743
      %1769 = vmatprep.subr.bf16.mxu0 0
      %1770 = vmatpush1.bf16.msra.mxu0 %v1742
      %1771 = vmatprep.subr.bf16.mxu0 0
      %1772 = vmatpush1.bf16.msra.mxu0 %v1741
      %1773 = vmatprep.subr.bf16.mxu0 0
      %1774 = vmatpush2.bf16.msra.mxu0 0
      %1775 = vmatprep.subr.bf16.mxu0 0
      %1776 = vmatpush2.bf16.msra.mxu0 0
      %1777 = vmatprep.subr.bf16.mxu0 0
      %1778 = vmatpush2.bf16.msra.mxu0 0
      %1779 = vmatprep.subr.bf16.mxu0 0
      %1780 = vmatpush2.bf16.msra.mxu0 0
      %1781 = vmatprep.subr.bf16.mxu0 0
      %1782 = vmatpush2.bf16.msra.mxu0 0
      %1783 = vmatprep.subr.bf16.mxu0 0
      %1784 = vmatpush2.bf16.msra.mxu0 0
      %1785 = vmatprep.subr.bf16.mxu0 0
      %1786 = vmatpush2.bf16.msra.mxu0 0
      %1787 = vmatprep.subr.bf16.mxu0 0
      %1788 = vmatpush2.bf16.msra.mxu0 0
      %1789 = vmatprep.mubr.bf16.mxu0 0
      %1790 = vmatmul.mubr.bf16.gmra.mxu0 %v1701
      %v1791 = vpop.f32.mrf.mxu0
      %v1792 = vadd.f32 0.0, %v1791
      %v1793 = vpop.f32.mrf.mxu0
      %v1794 = vpop.f32.mrf.mxu0
      %v1795 = vadd.f32 0.0, %v1794
      %v1796 = vpop.f32.mrf.mxu0
      %1797 = vmatprep.mubr.bf16.mxu0 0
      %1798 = vmatmul.mubr.bf16.gmra.mxu0 %v1702
      %v1799 = vpop.f32.mrf.mxu0
      %v1800 = vadd.f32 0.0, %v1799
      %v1801 = vpop.f32.mrf.mxu0
      %v1802 = vpop.f32.mrf.mxu0
      %v1803 = vadd.f32 0.0, %v1802
      %v1804 = vpop.f32.mrf.mxu0
      %1805 = vmatprep.mubr.bf16.mxu0 0
      %1806 = vmatmul.mubr.bf16.gmra.mxu0 %v1703
      %v1807 = vpop.f32.mrf.mxu0
      %v1808 = vadd.f32 0.0, %v1807
      %v1809 = vpop.f32.mrf.mxu0
      %v1810 = vpop.f32.mrf.mxu0
      %v1811 = vadd.f32 0.0, %v1810
      %v1812 = vpop.f32.mrf.mxu0
      %1813 = vmatprep.mubr.bf16.mxu0 0
      %1814 = vmatmul.mubr.bf16.gmra.mxu0 %v1704
      %v1815 = vpop.f32.mrf.mxu0
      %v1816 = vadd.f32 0.0, %v1815
      %v1817 = vpop.f32.mrf.mxu0
      %v1818 = vpop.f32.mrf.mxu0
      %v1819 = vadd.f32 0.0, %v1818
      %v1820 = vpop.f32.mrf.mxu0
      %1821 = vdwg.mxu0
      %v1822 = vld [vmem:[#allocation2] sm:$0xff]
      %v1823 = vld [vmem:[#allocation2 + $0x8] sm:$0xff]
      %v1824 = vld [vmem:[#allocation2 + $0x10] sm:$0xff]
      %v1825 = vld [vmem:[#allocation2 + $0x18] sm:$0xff]
      %v1826 = vld [vmem:[#allocation2 + $0x20] sm:$0xff]
      %v1827 = vld [vmem:[#allocation2 + $0x28] sm:$0xff]
      %v1828 = vld [vmem:[#allocation2 + $0x30] sm:$0xff]
      %v1829 = vld [vmem:[#allocation2 + $0x38] sm:$0xff]
      %v1830 = vadd.f32 %v1822, %v1792
      %v1831 = vadd.f32 %v1823, %v1795
      %v1832 = vadd.f32 %v1824, %v1800
      %v1833 = vadd.f32 %v1825, %v1803
      %v1834 = vadd.f32 %v1826, %v1808
      %v1835 = vadd.f32 %v1827, %v1811
      %v1836 = vadd.f32 %v1828, %v1816
      %v1837 = vadd.f32 %v1829, %v1819
      %1838 = vst [vmem:[#allocation2] sm:$0xff] %v1830
      %1839 = vst [vmem:[#allocation2 + $0x8] sm:$0xff] %v1831
      %1840 = vst [vmem:[#allocation2 + $0x10] sm:$0xff] %v1832
      %1841 = vst [vmem:[#allocation2 + $0x18] sm:$0xff] %v1833
      %1842 = vst [vmem:[#allocation2 + $0x20] sm:$0xff] %v1834
      %1843 = vst [vmem:[#allocation2 + $0x28] sm:$0xff] %v1835
      %1844 = vst [vmem:[#allocation2 + $0x30] sm:$0xff] %v1836
      %1845 = vst [vmem:[#allocation2 + $0x38] sm:$0xff] %v1837
      %s1846 = scalar_lea.vmem %s183, 216
      %v1847 = vld [vmem:[%s1846] sm:$0xf]
      %v1848 = vld [vmem:[%s1846 + $0x8] sm:$0xf]
      %v1849 = vld [vmem:[%s1846 + $0x10] sm:$0xf]
      %v1850 = vld [vmem:[%s1846 + $0x18] sm:$0xf]
      %v1851 = vld [vmem:[%s1846 + $0x20] sm:$0xf]
      %v1852 = vld [vmem:[%s1846 + $0x28] sm:$0xf]
      %v1853 = vld [vmem:[%s1846 + $0x30] sm:$0xf]
      %v1854 = vld [vmem:[%s1846 + $0x38] sm:$0xf]
      %s1855 = scalar_lea.vmem %s1, 256
      %v1856 = vld [vmem:[%s1855] sm:$0xf]
      %v1857 = vld [vmem:[%s1855 + $0x4] sm:$0xf]
      %v1858 = vld [vmem:[%s1855 + $0x8] sm:$0xf]
      %v1859 = vld [vmem:[%s1855 + $0xc] sm:$0xf]
      %v1860 = vld [vmem:[%s1855 + $0x10] sm:$0xf]
      %v1861 = vld [vmem:[%s1855 + $0x14] sm:$0xf]
      %v1862 = vld [vmem:[%s1855 + $0x18] sm:$0xf]
      %v1863 = vld [vmem:[%s1855 + $0x1c] sm:$0xf]
      %v1864 = vld [vmem:[%s1855 + $0x20] sm:$0xf]
      %v1865 = vld [vmem:[%s1855 + $0x24] sm:$0xf]
      %v1866 = vld [vmem:[%s1855 + $0x28] sm:$0xf]
      %v1867 = vld [vmem:[%s1855 + $0x2c] sm:$0xf]
      %v1868 = vld [vmem:[%s1855 + $0x30] sm:$0xf]
      %v1869 = vld [vmem:[%s1855 + $0x34] sm:$0xf]
      %v1870 = vld [vmem:[%s1855 + $0x38] sm:$0xf]
      %v1871 = vld [vmem:[%s1855 + $0x3c] sm:$0xf]
      %v1880 = vunpack.c.l.b16 %v1847
      %v1881 = vunpack.c.l.b16 %v1848
      %v1882 = vunpack.c.l.b16 %v1849
      %v1883 = vunpack.c.l.b16 %v1850
      %v1884 = vunpack.c.l.b16 %v1851
      %v1885 = vunpack.c.l.b16 %v1852
      %v1886 = vunpack.c.l.b16 %v1853
      %v1887 = vunpack.c.l.b16 %v1854
      %v1888 = vpack.c.b16 %v1881, %v1880
      %v1889 = vpack.c.b16 %v1883, %v1882
      %v1890 = vpack.c.b16 %v1885, %v1884
      %v1891 = vpack.c.b16 %v1887, %v1886
      %v1912 = vunpack.c.l.b16 %v1856
      %v1913 = vunpack.c.l.b16 %v1857
      %v1914 = vunpack.c.l.b16 %v1858
      %v1915 = vunpack.c.l.b16 %v1859
      %v1916 = vunpack.c.l.b16 %v1860
      %v1917 = vunpack.c.l.b16 %v1861
      %v1918 = vunpack.c.l.b16 %v1862
      %v1919 = vunpack.c.l.b16 %v1863
      %v1920 = vunpack.c.l.b16 %v1864
      %v1921 = vunpack.c.l.b16 %v1865
      %v1922 = vunpack.c.l.b16 %v1866
      %v1923 = vunpack.c.l.b16 %v1867
      %v1924 = vunpack.c.l.b16 %v1868
      %v1925 = vunpack.c.l.b16 %v1869
      %v1926 = vunpack.c.l.b16 %v1870
      %v1927 = vunpack.c.l.b16 %v1871
      %v1928 = vpack.c.b16 %v1913, %v1912
      %v1929 = vpack.c.b16 %v1915, %v1914
      %v1930 = vpack.c.b16 %v1917, %v1916
      %v1931 = vpack.c.b16 %v1919, %v1918
      %v1932 = vpack.c.b16 %v1921, %v1920
      %v1933 = vpack.c.b16 %v1923, %v1922
      %v1934 = vpack.c.b16 %v1925, %v1924
      %v1935 = vpack.c.b16 %v1927, %v1926
      %1944 = vmatprep.subr.bf16.mxu0 0
      %1945 = vmatpush1.bf16.msra.mxu0 %v1935
      %1946 = vmatprep.subr.bf16.mxu0 0
      %1947 = vmatpush1.bf16.msra.mxu0 %v1934
      %1948 = vmatprep.subr.bf16.mxu0 0
      %1949 = vmatpush1.bf16.msra.mxu0 %v1933
      %1950 = vmatprep.subr.bf16.mxu0 0
      %1951 = vmatpush1.bf16.msra.mxu0 %v1932
      %1952 = vmatprep.subr.bf16.mxu0 0
      %1953 = vmatpush1.bf16.msra.mxu0 %v1931
      %1954 = vmatprep.subr.bf16.mxu0 0
      %1955 = vmatpush1.bf16.msra.mxu0 %v1930
      %1956 = vmatprep.subr.bf16.mxu0 0
      %1957 = vmatpush1.bf16.msra.mxu0 %v1929
      %1958 = vmatprep.subr.bf16.mxu0 0
      %1959 = vmatpush1.bf16.msra.mxu0 %v1928
      %1960 = vmatprep.subr.bf16.mxu0 0
      %1961 = vmatpush2.bf16.msra.mxu0 0
      %1962 = vmatprep.subr.bf16.mxu0 0
      %1963 = vmatpush2.bf16.msra.mxu0 0
      %1964 = vmatprep.subr.bf16.mxu0 0
      %1965 = vmatpush2.bf16.msra.mxu0 0
      %1966 = vmatprep.subr.bf16.mxu0 0
      %1967 = vmatpush2.bf16.msra.mxu0 0
      %1968 = vmatprep.subr.bf16.mxu0 0
      %1969 = vmatpush2.bf16.msra.mxu0 0
      %1970 = vmatprep.subr.bf16.mxu0 0
      %1971 = vmatpush2.bf16.msra.mxu0 0
      %1972 = vmatprep.subr.bf16.mxu0 0
      %1973 = vmatpush2.bf16.msra.mxu0 0
      %1974 = vmatprep.subr.bf16.mxu0 0
      %1975 = vmatpush2.bf16.msra.mxu0 0
      %1976 = vmatprep.mubr.bf16.mxu0 0
      %1977 = vmatmul.mubr.bf16.gmra.mxu0 %v1888
      %v1978 = vpop.f32.mrf.mxu0
      %v1979 = vadd.f32 0.0, %v1978
      %v1980 = vpop.f32.mrf.mxu0
      %v1981 = vpop.f32.mrf.mxu0
      %v1982 = vadd.f32 0.0, %v1981
      %v1983 = vpop.f32.mrf.mxu0
      %1984 = vmatprep.mubr.bf16.mxu0 0
      %1985 = vmatmul.mubr.bf16.gmra.mxu0 %v1889
      %v1986 = vpop.f32.mrf.mxu0
      %v1987 = vadd.f32 0.0, %v1986
      %v1988 = vpop.f32.mrf.mxu0
      %v1989 = vpop.f32.mrf.mxu0
      %v1990 = vadd.f32 0.0, %v1989
      %v1991 = vpop.f32.mrf.mxu0
      %1992 = vmatprep.mubr.bf16.mxu0 0
      %1993 = vmatmul.mubr.bf16.gmra.mxu0 %v1890
      %v1994 = vpop.f32.mrf.mxu0
      %v1995 = vadd.f32 0.0, %v1994
      %v1996 = vpop.f32.mrf.mxu0
      %v1997 = vpop.f32.mrf.mxu0
      %v1998 = vadd.f32 0.0, %v1997
      %v1999 = vpop.f32.mrf.mxu0
      %2000 = vmatprep.mubr.bf16.mxu0 0
      %2001 = vmatmul.mubr.bf16.gmra.mxu0 %v1891
      %v2002 = vpop.f32.mrf.mxu0
      %v2003 = vadd.f32 0.0, %v2002
      %v2004 = vpop.f32.mrf.mxu0
      %v2005 = vpop.f32.mrf.mxu0
      %v2006 = vadd.f32 0.0, %v2005
      %v2007 = vpop.f32.mrf.mxu0
      %2008 = vdwg.mxu0
      %v2009 = vld [vmem:[#allocation2] sm:$0xff]
      %v2010 = vld [vmem:[#allocation2 + $0x8] sm:$0xff]
      %v2011 = vld [vmem:[#allocation2 + $0x10] sm:$0xff]
      %v2012 = vld [vmem:[#allocation2 + $0x18] sm:$0xff]
      %v2013 = vld [vmem:[#allocation2 + $0x20] sm:$0xff]
      %v2014 = vld [vmem:[#allocation2 + $0x28] sm:$0xff]
      %v2015 = vld [vmem:[#allocation2 + $0x30] sm:$0xff]
      %v2016 = vld [vmem:[#allocation2 + $0x38] sm:$0xff]
      %v2017 = vadd.f32 %v2009, %v1979
      %v2018 = vadd.f32 %v2010, %v1982
      %v2019 = vadd.f32 %v2011, %v1987
      %v2020 = vadd.f32 %v2012, %v1990
      %v2021 = vadd.f32 %v2013, %v1995
      %v2022 = vadd.f32 %v2014, %v1998
      %v2023 = vadd.f32 %v2015, %v2003
      %v2024 = vadd.f32 %v2016, %v2006
      %2025 = vst [vmem:[#allocation2] sm:$0xff] %v2017
      %2026 = vst [vmem:[#allocation2 + $0x8] sm:$0xff] %v2018
      %2027 = vst [vmem:[#allocation2 + $0x10] sm:$0xff] %v2019
      %2028 = vst [vmem:[#allocation2 + $0x18] sm:$0xff] %v2020
      %2029 = vst [vmem:[#allocation2 + $0x20] sm:$0xff] %v2021
      %2030 = vst [vmem:[#allocation2 + $0x28] sm:$0xff] %v2022
      %2031 = vst [vmem:[#allocation2 + $0x30] sm:$0xff] %v2023
      %2032 = vst [vmem:[#allocation2 + $0x38] sm:$0xff] %v2024
      %v2033 = vld [vmem:[#allocation2] sm:$0xff]
      %v2034 = vld [vmem:[#allocation2 + $0x8] sm:$0xff]
      %v2035 = vld [vmem:[#allocation2 + $0x10] sm:$0xff]
      %v2036 = vld [vmem:[#allocation2 + $0x18] sm:$0xff]
      %v2037 = vld [vmem:[#allocation2 + $0x20] sm:$0xff]
      %v2038 = vld [vmem:[#allocation2 + $0x28] sm:$0xff]
      %v2039 = vld [vmem:[#allocation2 + $0x30] sm:$0xff]
      %v2040 = vld [vmem:[#allocation2 + $0x38] sm:$0xff]
      %v2041 = vld [vmem:[%s2] sm:$0x1]
      %v2043 = vlaneseq
      %v2044 = vshrl.u32 %v2043, 7
      %v2045 = vsub.s32 0, %v2044
      %v2046 = vrot.slane %v2041, %v2045
      %v2048 = vadd.f32 %v2033, %v2046
      %v2049 = vadd.f32 %v2034, %v2046
      %v2050 = vadd.f32 %v2035, %v2046
      %v2051 = vadd.f32 %v2036, %v2046
      %v2052 = vadd.f32 %v2037, %v2046
      %v2053 = vadd.f32 %v2038, %v2046
      %v2054 = vadd.f32 %v2039, %v2046
      %v2055 = vadd.f32 %v2040, %v2046
      %v2056 = vmax.f32 %v2048, 0.0
      %v2057 = vmax.f32 %v2049, 0.0
      %v2058 = vmax.f32 %v2050, 0.0
      %v2059 = vmax.f32 %v2051, 0.0
      %v2060 = vmax.f32 %v2052, 0.0
      %v2061 = vmax.f32 %v2053, 0.0
      %v2062 = vmax.f32 %v2054, 0.0
      %v2063 = vmax.f32 %v2055, 0.0
      %v2064 = vpack.c.bf16 %v2057, %v2056
      %v2065 = vpack.c.bf16 %v2059, %v2058
      %v2066 = vpack.c.bf16 %v2061, %v2060
      %v2067 = vpack.c.bf16 %v2063, %v2062
      %v2072 = vunpack.c.l.b16 %v2064
      %v2073 = vunpack.c.h.b16 %v2064
      %v2074 = vunpack.c.l.b16 %v2065
      %v2075 = vunpack.c.h.b16 %v2065
      %v2076 = vunpack.c.l.b16 %v2066
      %v2077 = vunpack.c.h.b16 %v2066
      %v2078 = vunpack.c.l.b16 %v2067
      %v2079 = vunpack.c.h.b16 %v2067
      %v2080 = vpack.c.b16 %v2072, %v2072
      %v2081 = vpack.c.b16 %v2073, %v2073
      %v2082 = vpack.c.b16 %v2074, %v2074
      %v2083 = vpack.c.b16 %v2075, %v2075
      %v2084 = vpack.c.b16 %v2076, %v2076
      %v2085 = vpack.c.b16 %v2077, %v2077
      %v2086 = vpack.c.b16 %v2078, %v2078
      %v2087 = vpack.c.b16 %v2079, %v2079
      %2096 = vst [vmem:[%s192] sm:$0xf] %v2080
      %2097 = vst [vmem:[%s192 + $0x4] sm:$0xf] %v2081
      %2098 = vst [vmem:[%s192 + $0x8] sm:$0xf] %v2082
      %2099 = vst [vmem:[%s192 + $0xc] sm:$0xf] %v2083
      %2100 = vst [vmem:[%s192 + $0x10] sm:$0xf] %v2084
      %2101 = vst [vmem:[%s192 + $0x14] sm:$0xf] %v2085
      %2102 = vst [vmem:[%s192 + $0x18] sm:$0xf] %v2086
      %2103 = vst [vmem:[%s192 + $0x1c] sm:$0xf] %v2087
      %s2104 = smul.u32 8, %s19
      %p2105 = scmp.lt.s32.totalorder %s18, 1
      %s2106 = scalar_select %p2105, %s18, 1
      %p2107 = scmp.lt.s32.totalorder %s2104, 7
      %s2108 = scalar_select %p2107, %s2104, 7
      %s2109 = smul.addr %s2106, 8
      %s2110 = sadd.s32 %s2108, %s2109
      %s2111 = smul.addr %s2110, 4
      %s2112 = scalar_lea.vmem %s3, %s2111
      // Predicated region
      $region33: #{bottleneck_forward.4} parent=31 // pred_check
        %p2113 = pneg %p114
      $region34: #{bottleneck_forward.4} parent=31 // pred_check_branch
        %2115 = sbr.rel (%p2113) target = $region36
      $region35: #{bottleneck_forward.4} parent=31 // pred_region
        %s2116 = smul.u32 8, %s19
      $region36: #{bottleneck_forward.4} parent=31 // pred_fallthru
        _
    $region32: #{bottleneck_forward.4} parent=5 // pred_fallthru
      _
    %p2117 = scmp.le.s32.totalorder 2, %s9
    // Predicated region
    $region37: #{bottleneck_forward.4} parent=5 // pred_check
      %p2118 = pneg %p2117
    $region38: #{bottleneck_forward.4} parent=5 // pred_check_branch
      %2120 = sbr.rel (%p2118) target = $region40
    $region39: #{bottleneck_forward.4} parent=5 // pred_region
      %s2121 = ssub.s32 %s9, 2
      // Predicated region
      $region41: #{bottleneck_forward.4} parent=39 // pred_check
        %p2122 = pneg %p120
      $region42: #{bottleneck_forward.4} parent=39 // pred_check_branch
        %2124 = sbr.rel (%p2122) target = $region44
      $region43: #{bottleneck_forward.4} parent=39 // pred_region
        %s2125 = smul.u32 8, %s21
        %p2126 = scmp.lt.s32.totalorder %s20, 1
        %s2127 = scalar_select %p2126, %s20, 1
        %p2128 = scmp.lt.s32.totalorder %s2125, 7
        %s2129 = scalar_select %p2128, %s2125, 7
        %s2130 = smul.addr %s2127, 8
        %s2131 = sadd.s32 %s2129, %s2130
        %s2132 = smul.addr %s2131, 4
        %s2133 = scalar_lea.vmem %s3, %s2132
      $region44: #{bottleneck_forward.4} parent=39 // pred_fallthru
        _
    $region40: #{bottleneck_forward.4} parent=5 // pred_fallthru
      _
  $region6: #{bottleneck_forward.4} parent=0 // loop_footer
    %s13 = sadd.s32 1, %s9
  $region7: #{bottleneck_forward.4} parent=0 // loop_footer_branch
    %8 = sbr.rel target = $region3
  $region8: #{bottleneck_forward.4} parent=0 // loop_exit
    _

// kernel: bottleneck_forward.5
$region0: #{bottleneck_forward.5}
  #allocation0 [shape = 'u32[]', space=smem, size = 0x4, offset = 0x4, fixed_abs, tag = 'smem constant byte address 0x4 - core index']
  #allocation1 [shape = 'u32[144,128]{1,0:T(1,128)}', space=vmem, size = 0x12000, scoped, tag = 'internal scratch']
  %s0 = inlined_call_operand.vmem [shape: bf16[128,128], index: 0, kind: input, shape index: {}]
  %s1 = inlined_call_operand.vmem [shape: bf16[128,128], index: 1, kind: input, shape index: {}]
  %s2 = inlined_call_operand.vmem [shape: f32[1,128], index: 2, kind: input, shape index: {}]
  %s3 = inlined_call_operand.vmem [shape: bf16[128,128], index: 3, kind: input, shape index: {}]
  %s4 = inlined_call_operand.vmem [shape: bf16[128,128], index: 4, kind: input, shape index: {}]
  %s5 = inlined_call_operand.vmem [shape: f32[1,128], index: 5, kind: input, shape index: {}]
  %s6 = inlined_call_operand.vmem [shape: bf16[128,128], index: 6, kind: output, shape index: {}]
  %s7 = sld [smem:[#allocation0]]
  $region34: #{bottleneck_forward.5} parent=0
    _
  %s9 = ssub.s32 1, %s7
  %s10 = scalar_select 0, %s9, %s7
  // Predicated region
  $region2: #{bottleneck_forward.5} parent=0 // pred_check
    _
  $region3: #{bottleneck_forward.5} parent=0 // pred_check_branch
    %12 = sbr.rel (0) target = $region5
  $region4: #{bottleneck_forward.5} parent=0 // pred_region
    _
  $region5: #{bottleneck_forward.5} parent=0 // pred_fallthru
    _
  // Predicated region
  $region6: #{bottleneck_forward.5} parent=0 // pred_check
    _
  $region7: #{bottleneck_forward.5} parent=0 // pred_check_branch
    %14 = sbr.rel (0) target = $region9
  $region8: #{bottleneck_forward.5} parent=0 // pred_region
    _
  $region9: #{bottleneck_forward.5} parent=0 // pred_fallthru
    _
  // Predicated region
  $region10: #{bottleneck_forward.5} parent=0 // pred_check
    _
  $region11: #{bottleneck_forward.5} parent=0 // pred_check_branch
    %16 = sbr.rel (0) target = $region13
  $region12: #{bottleneck_forward.5} parent=0 // pred_region
    _
  $region13: #{bottleneck_forward.5} parent=0 // pred_fallthru
    _
  // Predicated region
  $region14: #{bottleneck_forward.5} parent=0 // pred_check
    _
  $region15: #{bottleneck_forward.5} parent=0 // pred_check_branch
    %18 = sbr.rel (0) target = $region17
  $region16: #{bottleneck_forward.5} parent=0 // pred_region
    _
  $region17: #{bottleneck_forward.5} parent=0 // pred_fallthru
    _
  // Predicated region
  $region18: #{bottleneck_forward.5} parent=0 // pred_check
    _
  $region19: #{bottleneck_forward.5} parent=0 // pred_check_branch
    %20 = sbr.rel (0) target = $region21
  $region20: #{bottleneck_forward.5} parent=0 // pred_region
    _
  $region21: #{bottleneck_forward.5} parent=0 // pred_fallthru
    _
  // Predicated region
  $region22: #{bottleneck_forward.5} parent=0 // pred_check
    _
  $region23: #{bottleneck_forward.5} parent=0 // pred_check_branch
    %22 = sbr.rel (0) target = $region25
  $region24: #{bottleneck_forward.5} parent=0 // pred_region
    _
  $region25: #{bottleneck_forward.5} parent=0 // pred_fallthru
    _
  %v24 = vld [vmem:[%s0] sm:$0xf]
  %v25 = vld [vmem:[%s0 + $0x4] sm:$0xf]
  %v26 = vld [vmem:[%s0 + $0x8] sm:$0xf]
  %v27 = vld [vmem:[%s0 + $0xc] sm:$0xf]
  %v28 = vld [vmem:[%s0 + $0x10] sm:$0xf]
  %v29 = vld [vmem:[%s0 + $0x14] sm:$0xf]
  %v30 = vld [vmem:[%s0 + $0x18] sm:$0xf]
  %v31 = vld [vmem:[%s0 + $0x1c] sm:$0xf]
  %v32 = vld [vmem:[%s0 + $0x20] sm:$0xf]
  %v33 = vld [vmem:[%s0 + $0x24] sm:$0xf]
  %v34 = vld [vmem:[%s0 + $0x28] sm:$0xf]
  %v35 = vld [vmem:[%s0 + $0x2c] sm:$0xf]
  %v36 = vld [vmem:[%s0 + $0x30] sm:$0xf]
  %v37 = vld [vmem:[%s0 + $0x34] sm:$0xf]
  %v38 = vld [vmem:[%s0 + $0x38] sm:$0xf]
  %v39 = vld [vmem:[%s0 + $0x3c] sm:$0xf]
  %v40 = vld [vmem:[%s1] sm:$0xf]
  %v41 = vld [vmem:[%s1 + $0x4] sm:$0xf]
  %v42 = vld [vmem:[%s1 + $0x8] sm:$0xf]
  %v43 = vld [vmem:[%s1 + $0xc] sm:$0xf]
  %v44 = vld [vmem:[%s1 + $0x10] sm:$0xf]
  %v45 = vld [vmem:[%s1 + $0x14] sm:$0xf]
  %v46 = vld [vmem:[%s1 + $0x18] sm:$0xf]
  %v47 = vld [vmem:[%s1 + $0x1c] sm:$0xf]
  %v48 = vld [vmem:[%s1 + $0x20] sm:$0xf]
  %v49 = vld [vmem:[%s1 + $0x24] sm:$0xf]
  %v50 = vld [vmem:[%s1 + $0x28] sm:$0xf]
  %v51 = vld [vmem:[%s1 + $0x2c] sm:$0xf]
  %v52 = vld [vmem:[%s1 + $0x30] sm:$0xf]
  %v53 = vld [vmem:[%s1 + $0x34] sm:$0xf]
  %v54 = vld [vmem:[%s1 + $0x38] sm:$0xf]
  %v55 = vld [vmem:[%s1 + $0x3c] sm:$0xf]
  %v56 = vld [vmem:[%s2] sm:$0x1]
  %v58 = vlaneseq
  %v59 = vshrl.u32 %v58, 7
  %v60 = vsub.s32 0, %v59
  %v61 = vrot.slane %v56, %v60
  %v79 = vunpack.c.l.b16 %v24
  %v80 = vunpack.c.l.b16 %v25
  %v81 = vunpack.c.l.b16 %v26
  %v82 = vunpack.c.l.b16 %v27
  %v83 = vunpack.c.l.b16 %v28
  %v84 = vunpack.c.l.b16 %v29
  %v85 = vunpack.c.l.b16 %v30
  %v86 = vunpack.c.l.b16 %v31
  %v87 = vunpack.c.l.b16 %v32
  %v88 = vunpack.c.l.b16 %v33
  %v89 = vunpack.c.l.b16 %v34
  %v90 = vunpack.c.l.b16 %v35
  %v91 = vunpack.c.l.b16 %v36
  %v92 = vunpack.c.l.b16 %v37
  %v93 = vunpack.c.l.b16 %v38
  %v94 = vunpack.c.l.b16 %v39
  %v95 = vpack.c.b16 %v80, %v79
  %v96 = vpack.c.b16 %v82, %v81
  %v97 = vpack.c.b16 %v84, %v83
  %v98 = vpack.c.b16 %v86, %v85
  %v99 = vpack.c.b16 %v88, %v87
  %v100 = vpack.c.b16 %v90, %v89
  %v101 = vpack.c.b16 %v92, %v91
  %v102 = vpack.c.b16 %v94, %v93
  %v127 = vunpack.c.l.b16 %v40
  %v128 = vunpack.c.l.b16 %v41
  %v129 = vunpack.c.l.b16 %v42
  %v130 = vunpack.c.l.b16 %v43
  %v131 = vunpack.c.l.b16 %v44
  %v132 = vunpack.c.l.b16 %v45
  %v133 = vunpack.c.l.b16 %v46
  %v134 = vunpack.c.l.b16 %v47
  %v135 = vunpack.c.l.b16 %v48
  %v136 = vunpack.c.l.b16 %v49
  %v137 = vunpack.c.l.b16 %v50
  %v138 = vunpack.c.l.b16 %v51
  %v139 = vunpack.c.l.b16 %v52
  %v140 = vunpack.c.l.b16 %v53
  %v141 = vunpack.c.l.b16 %v54
  %v142 = vunpack.c.l.b16 %v55
  %v143 = vpack.c.b16 %v128, %v127
  %v144 = vpack.c.b16 %v130, %v129
  %v145 = vpack.c.b16 %v132, %v131
  %v146 = vpack.c.b16 %v134, %v133
  %v147 = vpack.c.b16 %v136, %v135
  %v148 = vpack.c.b16 %v138, %v137
  %v149 = vpack.c.b16 %v140, %v139
  %v150 = vpack.c.b16 %v142, %v141
  %159 = vmatprep.subr.bf16.mxu0 0
  %160 = vmatpush1.bf16.msra.mxu0 %v150
  %161 = vmatprep.subr.bf16.mxu0 0
  %162 = vmatpush1.bf16.msra.mxu0 %v149
  %163 = vmatprep.subr.bf16.mxu0 0
  %164 = vmatpush1.bf16.msra.mxu0 %v148
  %165 = vmatprep.subr.bf16.mxu0 0
  %166 = vmatpush1.bf16.msra.mxu0 %v147
  %167 = vmatprep.subr.bf16.mxu0 0
  %168 = vmatpush1.bf16.msra.mxu0 %v146
  %169 = vmatprep.subr.bf16.mxu0 0
  %170 = vmatpush1.bf16.msra.mxu0 %v145
  %171 = vmatprep.subr.bf16.mxu0 0
  %172 = vmatpush1.bf16.msra.mxu0 %v144
  %173 = vmatprep.subr.bf16.mxu0 0
  %174 = vmatpush1.bf16.msra.mxu0 %v143
  %175 = vmatprep.subr.bf16.mxu0 0
  %176 = vmatpush2.bf16.msra.mxu0 0
  %177 = vmatprep.subr.bf16.mxu0 0
  %178 = vmatpush2.bf16.msra.mxu0 0
  %179 = vmatprep.subr.bf16.mxu0 0
  %180 = vmatpush2.bf16.msra.mxu0 0
  %181 = vmatprep.subr.bf16.mxu0 0
  %182 = vmatpush2.bf16.msra.mxu0 0
  %183 = vmatprep.subr.bf16.mxu0 0
  %184 = vmatpush2.bf16.msra.mxu0 0
  %185 = vmatprep.subr.bf16.mxu0 0
  %186 = vmatpush2.bf16.msra.mxu0 0
  %187 = vmatprep.subr.bf16.mxu0 0
  %188 = vmatpush2.bf16.msra.mxu0 0
  %189 = vmatprep.subr.bf16.mxu0 0
  %190 = vmatpush2.bf16.msra.mxu0 0
  %191 = vmatprep.mubr.bf16.mxu0 0
  %192 = vmatmul.mubr.bf16.gmra.mxu0 %v95
  %v193 = vpop.f32.mrf.mxu0
  %v194 = vadd.f32 %v61, %v193
  %v195 = vpop.f32.mrf.mxu0
  %v196 = vpop.f32.mrf.mxu0
  %v197 = vadd.f32 %v61, %v196
  %v198 = vpop.f32.mrf.mxu0
  %199 = vmatprep.mubr.bf16.mxu0 0
  %200 = vmatmul.mubr.bf16.gmra.mxu0 %v96
  %v201 = vpop.f32.mrf.mxu0
  %v202 = vadd.f32 %v61, %v201
  %v203 = vpop.f32.mrf.mxu0
  %v204 = vpop.f32.mrf.mxu0
  %v205 = vadd.f32 %v61, %v204
  %v206 = vpop.f32.mrf.mxu0
  %207 = vmatprep.mubr.bf16.mxu0 0
  %208 = vmatmul.mubr.bf16.gmra.mxu0 %v97
  %v209 = vpop.f32.mrf.mxu0
  %v210 = vadd.f32 %v61, %v209
  %v211 = vpop.f32.mrf.mxu0
  %v212 = vpop.f32.mrf.mxu0
  %v213 = vadd.f32 %v61, %v212
  %v214 = vpop.f32.mrf.mxu0
  %215 = vmatprep.mubr.bf16.mxu0 0
  %216 = vmatmul.mubr.bf16.gmra.mxu0 %v98
  %v217 = vpop.f32.mrf.mxu0
  %v218 = vadd.f32 %v61, %v217
  %v219 = vpop.f32.mrf.mxu0
  %v220 = vpop.f32.mrf.mxu0
  %v221 = vadd.f32 %v61, %v220
  %v222 = vpop.f32.mrf.mxu0
  %223 = vmatprep.mubr.bf16.mxu0 0
  %224 = vmatmul.mubr.bf16.gmra.mxu0 %v99
  %v225 = vpop.f32.mrf.mxu0
  %v226 = vadd.f32 %v61, %v225
  %v227 = vpop.f32.mrf.mxu0
  %v228 = vpop.f32.mrf.mxu0
  %v229 = vadd.f32 %v61, %v228
  %v230 = vpop.f32.mrf.mxu0
  %231 = vmatprep.mubr.bf16.mxu0 0
  %232 = vmatmul.mubr.bf16.gmra.mxu0 %v100
  %v233 = vpop.f32.mrf.mxu0
  %v234 = vadd.f32 %v61, %v233
  %v235 = vpop.f32.mrf.mxu0
  %v236 = vpop.f32.mrf.mxu0
  %v237 = vadd.f32 %v61, %v236
  %v238 = vpop.f32.mrf.mxu0
  %239 = vmatprep.mubr.bf16.mxu0 0
  %240 = vmatmul.mubr.bf16.gmra.mxu0 %v101
  %v241 = vpop.f32.mrf.mxu0
  %v242 = vadd.f32 %v61, %v241
  %v243 = vpop.f32.mrf.mxu0
  %v244 = vpop.f32.mrf.mxu0
  %v245 = vadd.f32 %v61, %v244
  %v246 = vpop.f32.mrf.mxu0
  %247 = vmatprep.mubr.bf16.mxu0 0
  %248 = vmatmul.mubr.bf16.gmra.mxu0 %v102
  %v249 = vpop.f32.mrf.mxu0
  %v250 = vadd.f32 %v61, %v249
  %v251 = vpop.f32.mrf.mxu0
  %v252 = vpop.f32.mrf.mxu0
  %v253 = vadd.f32 %v61, %v252
  %v254 = vpop.f32.mrf.mxu0
  %255 = vdwg.mxu0
  %v256 = vld [vmem:[%s3] sm:$0xf]
  %v257 = vld [vmem:[%s3 + $0x4] sm:$0xf]
  %v258 = vld [vmem:[%s3 + $0x8] sm:$0xf]
  %v259 = vld [vmem:[%s3 + $0xc] sm:$0xf]
  %v260 = vld [vmem:[%s3 + $0x10] sm:$0xf]
  %v261 = vld [vmem:[%s3 + $0x14] sm:$0xf]
  %v262 = vld [vmem:[%s3 + $0x18] sm:$0xf]
  %v263 = vld [vmem:[%s3 + $0x1c] sm:$0xf]
  %v264 = vld [vmem:[%s3 + $0x20] sm:$0xf]
  %v265 = vld [vmem:[%s3 + $0x24] sm:$0xf]
  %v266 = vld [vmem:[%s3 + $0x28] sm:$0xf]
  %v267 = vld [vmem:[%s3 + $0x2c] sm:$0xf]
  %v268 = vld [vmem:[%s3 + $0x30] sm:$0xf]
  %v269 = vld [vmem:[%s3 + $0x34] sm:$0xf]
  %v270 = vld [vmem:[%s3 + $0x38] sm:$0xf]
  %v271 = vld [vmem:[%s3 + $0x3c] sm:$0xf]
  %v272 = vld [vmem:[%s4] sm:$0xf]
  %v273 = vld [vmem:[%s4 + $0x4] sm:$0xf]
  %v274 = vld [vmem:[%s4 + $0x8] sm:$0xf]
  %v275 = vld [vmem:[%s4 + $0xc] sm:$0xf]
  %v276 = vld [vmem:[%s4 + $0x10] sm:$0xf]
  %v277 = vld [vmem:[%s4 + $0x14] sm:$0xf]
  %v278 = vld [vmem:[%s4 + $0x18] sm:$0xf]
  %v279 = vld [vmem:[%s4 + $0x1c] sm:$0xf]
  %v280 = vld [vmem:[%s4 + $0x20] sm:$0xf]
  %v281 = vld [vmem:[%s4 + $0x24] sm:$0xf]
  %v282 = vld [vmem:[%s4 + $0x28] sm:$0xf]
  %v283 = vld [vmem:[%s4 + $0x2c] sm:$0xf]
  %v284 = vld [vmem:[%s4 + $0x30] sm:$0xf]
  %v285 = vld [vmem:[%s4 + $0x34] sm:$0xf]
  %v286 = vld [vmem:[%s4 + $0x38] sm:$0xf]
  %v287 = vld [vmem:[%s4 + $0x3c] sm:$0xf]
  %v288 = vld [vmem:[%s5] sm:$0x1]
  %v290 = vlaneseq
  %v291 = vshrl.u32 %v290, 7
  %v292 = vsub.s32 0, %v291
  %v293 = vrot.slane %v288, %v292
  %v311 = vunpack.c.l.b16 %v256
  %v312 = vunpack.c.l.b16 %v257
  %v313 = vunpack.c.l.b16 %v258
  %v314 = vunpack.c.l.b16 %v259
  %v315 = vunpack.c.l.b16 %v260
  %v316 = vunpack.c.l.b16 %v261
  %v317 = vunpack.c.l.b16 %v262
  %v318 = vunpack.c.l.b16 %v263
  %v319 = vunpack.c.l.b16 %v264
  %v320 = vunpack.c.l.b16 %v265
  %v321 = vunpack.c.l.b16 %v266
  %v322 = vunpack.c.l.b16 %v267
  %v323 = vunpack.c.l.b16 %v268
  %v324 = vunpack.c.l.b16 %v269
  %v325 = vunpack.c.l.b16 %v270
  %v326 = vunpack.c.l.b16 %v271
  %v327 = vpack.c.b16 %v312, %v311
  %v328 = vpack.c.b16 %v314, %v313
  %v329 = vpack.c.b16 %v316, %v315
  %v330 = vpack.c.b16 %v318, %v317
  %v331 = vpack.c.b16 %v320, %v319
  %v332 = vpack.c.b16 %v322, %v321
  %v333 = vpack.c.b16 %v324, %v323
  %v334 = vpack.c.b16 %v326, %v325
  %v359 = vunpack.c.l.b16 %v272
  %v360 = vunpack.c.l.b16 %v273
  %v361 = vunpack.c.l.b16 %v274
  %v362 = vunpack.c.l.b16 %v275
  %v363 = vunpack.c.l.b16 %v276
  %v364 = vunpack.c.l.b16 %v277
  %v365 = vunpack.c.l.b16 %v278
  %v366 = vunpack.c.l.b16 %v279
  %v367 = vunpack.c.l.b16 %v280
  %v368 = vunpack.c.l.b16 %v281
  %v369 = vunpack.c.l.b16 %v282
  %v370 = vunpack.c.l.b16 %v283
  %v371 = vunpack.c.l.b16 %v284
  %v372 = vunpack.c.l.b16 %v285
  %v373 = vunpack.c.l.b16 %v286
  %v374 = vunpack.c.l.b16 %v287
  %v375 = vpack.c.b16 %v360, %v359
  %v376 = vpack.c.b16 %v362, %v361
  %v377 = vpack.c.b16 %v364, %v363
  %v378 = vpack.c.b16 %v366, %v365
  %v379 = vpack.c.b16 %v368, %v367
  %v380 = vpack.c.b16 %v370, %v369
  %v381 = vpack.c.b16 %v372, %v371
  %v382 = vpack.c.b16 %v374, %v373
  %391 = vmatprep.subr.bf16.mxu0 0
  %392 = vmatpush1.bf16.msra.mxu0 %v382
  %393 = vmatprep.subr.bf16.mxu0 0
  %394 = vmatpush1.bf16.msra.mxu0 %v381
  %395 = vmatprep.subr.bf16.mxu0 0
  %396 = vmatpush1.bf16.msra.mxu0 %v380
  %397 = vmatprep.subr.bf16.mxu0 0
  %398 = vmatpush1.bf16.msra.mxu0 %v379
  %399 = vmatprep.subr.bf16.mxu0 0
  %400 = vmatpush1.bf16.msra.mxu0 %v378
  %401 = vmatprep.subr.bf16.mxu0 0
  %402 = vmatpush1.bf16.msra.mxu0 %v377
  %403 = vmatprep.subr.bf16.mxu0 0
  %404 = vmatpush1.bf16.msra.mxu0 %v376
  %405 = vmatprep.subr.bf16.mxu0 0
  %406 = vmatpush1.bf16.msra.mxu0 %v375
  %407 = vmatprep.subr.bf16.mxu0 0
  %408 = vmatpush2.bf16.msra.mxu0 0
  %409 = vmatprep.subr.bf16.mxu0 0
  %410 = vmatpush2.bf16.msra.mxu0 0
  %411 = vmatprep.subr.bf16.mxu0 0
  %412 = vmatpush2.bf16.msra.mxu0 0
  %413 = vmatprep.subr.bf16.mxu0 0
  %414 = vmatpush2.bf16.msra.mxu0 0
  %415 = vmatprep.subr.bf16.mxu0 0
  %416 = vmatpush2.bf16.msra.mxu0 0
  %417 = vmatprep.subr.bf16.mxu0 0
  %418 = vmatpush2.bf16.msra.mxu0 0
  %419 = vmatprep.subr.bf16.mxu0 0
  %420 = vmatpush2.bf16.msra.mxu0 0
  %421 = vmatprep.subr.bf16.mxu0 0
  %422 = vmatpush2.bf16.msra.mxu0 0
  %423 = vmatprep.mubr.bf16.mxu0 0
  %424 = vmatmul.mubr.bf16.gmra.mxu0 %v327
  %v425 = vpop.f32.mrf.mxu0
  %v426 = vadd.f32 %v293, %v425
  %v427 = vpop.f32.mrf.mxu0
  %v428 = vpop.f32.mrf.mxu0
  %v429 = vadd.f32 %v293, %v428
  %v430 = vpop.f32.mrf.mxu0
  %431 = vmatprep.mubr.bf16.mxu0 0
  %432 = vmatmul.mubr.bf16.gmra.mxu0 %v328
  %v433 = vpop.f32.mrf.mxu0
  %v434 = vadd.f32 %v293, %v433
  %v435 = vpop.f32.mrf.mxu0
  %v436 = vpop.f32.mrf.mxu0
  %v437 = vadd.f32 %v293, %v436
  %v438 = vpop.f32.mrf.mxu0
  %439 = vmatprep.mubr.bf16.mxu0 0
  %440 = vmatmul.mubr.bf16.gmra.mxu0 %v329
  %v441 = vpop.f32.mrf.mxu0
  %v442 = vadd.f32 %v293, %v441
  %v443 = vpop.f32.mrf.mxu0
  %v444 = vpop.f32.mrf.mxu0
  %v445 = vadd.f32 %v293, %v444
  %v446 = vpop.f32.mrf.mxu0
  %447 = vmatprep.mubr.bf16.mxu0 0
  %448 = vmatmul.mubr.bf16.gmra.mxu0 %v330
  %v449 = vpop.f32.mrf.mxu0
  %v450 = vadd.f32 %v293, %v449
  %v451 = vpop.f32.mrf.mxu0
  %v452 = vpop.f32.mrf.mxu0
  %v453 = vadd.f32 %v293, %v452
  %v454 = vpop.f32.mrf.mxu0
  %455 = vmatprep.mubr.bf16.mxu0 0
  %456 = vmatmul.mubr.bf16.gmra.mxu0 %v331
  %v457 = vpop.f32.mrf.mxu0
  %v458 = vadd.f32 %v293, %v457
  %v459 = vpop.f32.mrf.mxu0
  %v460 = vpop.f32.mrf.mxu0
  %v461 = vadd.f32 %v293, %v460
  %v462 = vpop.f32.mrf.mxu0
  %463 = vmatprep.mubr.bf16.mxu0 0
  %464 = vmatmul.mubr.bf16.gmra.mxu0 %v332
  %v465 = vpop.f32.mrf.mxu0
  %v466 = vadd.f32 %v293, %v465
  %v467 = vpop.f32.mrf.mxu0
  %v468 = vpop.f32.mrf.mxu0
  %v469 = vadd.f32 %v293, %v468
  %v470 = vpop.f32.mrf.mxu0
  %471 = vmatprep.mubr.bf16.mxu0 0
  %472 = vmatmul.mubr.bf16.gmra.mxu0 %v333
  %v473 = vpop.f32.mrf.mxu0
  %v474 = vadd.f32 %v293, %v473
  %v475 = vpop.f32.mrf.mxu0
  %v476 = vpop.f32.mrf.mxu0
  %v477 = vadd.f32 %v293, %v476
  %v478 = vpop.f32.mrf.mxu0
  %479 = vmatprep.mubr.bf16.mxu0 0
  %480 = vmatmul.mubr.bf16.gmra.mxu0 %v334
  %v481 = vpop.f32.mrf.mxu0
  %v482 = vadd.f32 %v293, %v481
  %v483 = vpop.f32.mrf.mxu0
  %v484 = vpop.f32.mrf.mxu0
  %v485 = vadd.f32 %v293, %v484
  %v486 = vpop.f32.mrf.mxu0
  %487 = vdwg.mxu0
  %v488 = vadd.f32 %v194, %v426
  %v489 = vadd.f32 %v197, %v429
  %v490 = vadd.f32 %v202, %v434
  %v491 = vadd.f32 %v205, %v437
  %v492 = vadd.f32 %v210, %v442
  %v493 = vadd.f32 %v213, %v445
  %v494 = vadd.f32 %v218, %v450
  %v495 = vadd.f32 %v221, %v453
  %v496 = vadd.f32 %v226, %v458
  %v497 = vadd.f32 %v229, %v461
  %v498 = vadd.f32 %v234, %v466
  %v499 = vadd.f32 %v237, %v469
  %v500 = vadd.f32 %v242, %v474
  %v501 = vadd.f32 %v245, %v477
  %v502 = vadd.f32 %v250, %v482
  %v503 = vadd.f32 %v253, %v485
  %v504 = vmax.f32 %v488, 0.0
  %v505 = vmax.f32 %v489, 0.0
  %v506 = vmax.f32 %v490, 0.0
  %v507 = vmax.f32 %v491, 0.0
  %v508 = vmax.f32 %v492, 0.0
  %v509 = vmax.f32 %v493, 0.0
  %v510 = vmax.f32 %v494, 0.0
  %v511 = vmax.f32 %v495, 0.0
  %v512 = vmax.f32 %v496, 0.0
  %v513 = vmax.f32 %v497, 0.0
  %v514 = vmax.f32 %v498, 0.0
  %v515 = vmax.f32 %v499, 0.0
  %v516 = vmax.f32 %v500, 0.0
  %v517 = vmax.f32 %v501, 0.0
  %v518 = vmax.f32 %v502, 0.0
  %v519 = vmax.f32 %v503, 0.0
  %v520 = vpack.c.bf16 %v505, %v504
  %v521 = vpack.c.bf16 %v507, %v506
  %v522 = vpack.c.bf16 %v509, %v508
  %v523 = vpack.c.bf16 %v511, %v510
  %v524 = vpack.c.bf16 %v513, %v512
  %v525 = vpack.c.bf16 %v515, %v514
  %v526 = vpack.c.bf16 %v517, %v516
  %v527 = vpack.c.bf16 %v519, %v518
  %v536 = vunpack.c.l.b16 %v520
  %v537 = vunpack.c.h.b16 %v520
  %v538 = vunpack.c.l.b16 %v521
  %v539 = vunpack.c.h.b16 %v521
  %v540 = vunpack.c.l.b16 %v522
  %v541 = vunpack.c.h.b16 %v522
  %v542 = vunpack.c.l.b16 %v523
  %v543 = vunpack.c.h.b16 %v523
  %v544 = vunpack.c.l.b16 %v524
  %v545 = vunpack.c.h.b16 %v524
  %v546 = vunpack.c.l.b16 %v525
  %v547 = vunpack.c.h.b16 %v525
  %v548 = vunpack.c.l.b16 %v526
  %v549 = vunpack.c.h.b16 %v526
  %v550 = vunpack.c.l.b16 %v527
  %v551 = vunpack.c.h.b16 %v527
  %v552 = vpack.c.b16 %v536, %v536
  %v553 = vpack.c.b16 %v537, %v537
  %v554 = vpack.c.b16 %v538, %v538
  %v555 = vpack.c.b16 %v539, %v539
  %v556 = vpack.c.b16 %v540, %v540
  %v557 = vpack.c.b16 %v541, %v541
  %v558 = vpack.c.b16 %v542, %v542
  %v559 = vpack.c.b16 %v543, %v543
  %v560 = vpack.c.b16 %v544, %v544
  %v561 = vpack.c.b16 %v545, %v545
  %v562 = vpack.c.b16 %v546, %v546
  %v563 = vpack.c.b16 %v547, %v547
  %v564 = vpack.c.b16 %v548, %v548
  %v565 = vpack.c.b16 %v549, %v549
  %v566 = vpack.c.b16 %v550, %v550
  %v567 = vpack.c.b16 %v551, %v551
  %584 = vst [vmem:[%s6] sm:$0xf] %v552
  %585 = vst [vmem:[%s6 + $0x4] sm:$0xf] %v553
  %586 = vst [vmem:[%s6 + $0x8] sm:$0xf] %v554
  %587 = vst [vmem:[%s6 + $0xc] sm:$0xf] %v555
  %588 = vst [vmem:[%s6 + $0x10] sm:$0xf] %v556
  %589 = vst [vmem:[%s6 + $0x14] sm:$0xf] %v557
  %590 = vst [vmem:[%s6 + $0x18] sm:$0xf] %v558
  %591 = vst [vmem:[%s6 + $0x1c] sm:$0xf] %v559
  %592 = vst [vmem:[%s6 + $0x20] sm:$0xf] %v560
  %593 = vst [vmem:[%s6 + $0x24] sm:$0xf] %v561
  %594 = vst [vmem:[%s6 + $0x28] sm:$0xf] %v562
  %595 = vst [vmem:[%s6 + $0x2c] sm:$0xf] %v563
  %596 = vst [vmem:[%s6 + $0x30] sm:$0xf] %v564
  %597 = vst [vmem:[%s6 + $0x34] sm:$0xf] %v565
  %598 = vst [vmem:[%s6 + $0x38] sm:$0xf] %v566
  %599 = vst [vmem:[%s6 + $0x3c] sm:$0xf] %v567
  // Predicated region
  $region26: #{bottleneck_forward.5} parent=0 // pred_check
    _
  $region27: #{bottleneck_forward.5} parent=0 // pred_check_branch
    %601 = sbr.rel (0) target = $region29
  $region28: #{bottleneck_forward.5} parent=0 // pred_region
    _
  $region29: #{bottleneck_forward.5} parent=0 // pred_fallthru
    _
  // Predicated region
  $region30: #{bottleneck_forward.5} parent=0 // pred_check
    _
  $region31: #{bottleneck_forward.5} parent=0 // pred_check_branch
    %603 = sbr.rel (0) target = $region33
  $region32: #{bottleneck_forward.5} parent=0 // pred_region
    _
  $region33: #{bottleneck_forward.5} parent=0 // pred_fallthru
    _

</llo_original>
